<compile_context>
chip_gen: v6e
topology: v6e:2x2x1
jax: 0.10.0
libtpu: 0.0.40
codegen_flags: <defaults>
</compile_context>

<pallas_src>
import math
import functools

import jax
import jax.numpy as jnp
from jax import lax
from jax.experimental import pallas as pl
from jax.experimental.pallas import tpu as pltpu

_NEG_INF = float("-inf")


def _layernorm(x, eps=1e-6):
    """torch-style LN: (x - mean) / (unbiased_std + eps), single fused pass."""
    d = x.shape[-1]
    s1 = jnp.sum(x, axis=-1, keepdims=True)
    s2 = jnp.sum(x * x, axis=-1, keepdims=True)
    mean = s1 * (1.0 / d)
    var = (s2 - d * mean * mean) * (1.0 / (d - 1))      # unbiased (ddof=1)
    std = jnp.sqrt(jnp.maximum(var, 0.0))
    return (x - mean) / (std + eps)                     # exact division (parity)


# --------------------------- kernel 1: pre-LN + QKV ---------------------------
def _qkv_kernel(x_ref, wqT_ref, bq_ref, wkT_ref, bk_ref, wvT_ref, bv_ref,
                q_ref, k_ref, v_ref, *, inv_sqrt_dk):
    bf16 = jnp.bfloat16
    h1 = _layernorm(x_ref[0]).astype(bf16)                      # (ts, D)
    q = jnp.dot(h1, wqT_ref[...], preferred_element_type=jnp.float32) + bq_ref[...]
    k = jnp.dot(h1, wkT_ref[...], preferred_element_type=jnp.float32) + bk_ref[...]
    v = jnp.dot(h1, wvT_ref[...], preferred_element_type=jnp.float32) + bv_ref[...]
    q_ref[0] = (q * inv_sqrt_dk).astype(bf16)   # fold 1/sqrt(dk) into q (once)
    k_ref[0] = k.astype(bf16)
    v_ref[0] = v.astype(bf16)


# -------- kernel 2: flash attention + Wo + residual + LN + FFN + residual -----
def _attn_ffn_kernel(q_ref, k_ref, v_ref, x_ref,
                     woT_ref, bo_ref, w1T_ref, b1_ref, w2T_ref, b2_ref,
                     out_ref, m_scr, l_scr, acc_scr, *, num_heads):
    ki = pl.program_id(2)
    bf16 = jnp.bfloat16
    D = acc_scr.shape[-1]
    dk = D // num_heads

    @pl.when(ki == 0)
    def _():
        m_scr[...] = jnp.full(m_scr.shape, _NEG_INF, dtype=jnp.float32)
        l_scr[...] = jnp.zeros(l_scr.shape, dtype=jnp.float32)
        acc_scr[...] = jnp.zeros(acc_scr.shape, dtype=jnp.float32)

    q = q_ref[0]            # (tq, D) bf16, pre-scaled by 1/sqrt(dk)
    k = k_ref[0]            # (tk, D) bf16
    v = v_ref[0]            # (tk, D) bf16

    # Per-head lane-aligned 128-wide column slices (free views); statically
    # unrolled head loop -> no einshape / transpose relayouts.
    for hh in range(num_heads):
        sl = slice(hh * dk, (hh + 1) * dk)
        s = lax.dot_general(q[:, sl], k[:, sl], (((1,), (1,)), ((), ())),
                            preferred_element_type=jnp.float32)       # (tq, tk)
        m_prev = m_scr[hh]                                             # (tq, 1)
        m_new = jnp.maximum(m_prev, jnp.max(s, axis=-1, keepdims=True))
        alpha = jnp.exp(m_prev - m_new)
        p = jnp.exp(s - m_new)
        l_scr[hh] = alpha * l_scr[hh] + jnp.sum(p, axis=-1, keepdims=True)
        acc_scr[:, sl] = alpha * acc_scr[:, sl] + jnp.dot(
            p.astype(bf16), v[:, sl], preferred_element_type=jnp.float32)
        m_scr[hh] = m_new

    @pl.when(ki == pl.num_programs(2) - 1)
    def _():
        # Normalize each head's accumulator in place (heads sit side-by-side).
        for hh in range(num_heads):
            sl = slice(hh * dk, (hh + 1) * dk)
            acc_scr[:, sl] = acc_scr[:, sl] * pl.reciprocal(l_scr[hh], approx=True)
        attn = acc_scr[...].astype(bf16)                               # (tq, D)
        y = jnp.dot(attn, woT_ref[...],
                    preferred_element_type=jnp.float32) + bo_ref[...]
        x1 = x_ref[0] + y                                              # residual 1
        h2 = _layernorm(x1).astype(bf16)
        ff = jnp.dot(h2, w1T_ref[...],
                     preferred_element_type=jnp.float32) + b1_ref[...]
        ff = jnp.maximum(ff, 0.0)                                      # relu
        ff = jnp.dot(ff.astype(bf16), w2T_ref[...],
                     preferred_element_type=jnp.float32) + b2_ref[...]
        out_ref[0] = x1 + ff                                           # residual 2


# ------------------------------- host wrapper ---------------------------------
def _vmem_cap_bytes():
    try:
        cap = getattr(pltpu.get_tpu_info(), "vmem_capacity_bytes", None)
        if cap:
            return int(cap)
    except Exception:
        pass
    return 64 * 1024 * 1024        # conservative default (v7x per-TC VMEM)


def _vmem_limit(footprint_bytes):
    cap = _vmem_cap_bytes()
    want = int(footprint_bytes * 1.5) + (4 << 20)   # headroom for compiler temps
    return int(max(16 << 20, min(want, cap - (4 << 20))))


def _forward(x, params, *, h, single_buffer_weights, tile=128):
    B, S, D = x.shape
    DFF = params["w1"].shape[0]
    assert D % h == 0, "d_model is not divisible by h"
    dk = D // h
    ts = tq = tk = min(tile, S)
    assert S % ts == 0, "S must be a multiple of the tile size"

    bf16, f32 = jnp.bfloat16, jnp.float32

    # nn.Linear stores W:(out,in); pre-transpose once (y = x @ W.T) and cast to
    # bf16 on the host -> no in-kernel transposes, half the weight DMA/VMEM.
    wqT = params["wq"].T.astype(bf16); wkT = params["wk"].T.astype(bf16)
    wvT = params["wv"].T.astype(bf16); woT = params["wo"].T.astype(bf16)
    w1T = params["w1"].T.astype(bf16); w2T = params["w2"].T.astype(bf16)
    bq = params["bq"].reshape(1, D).astype(f32)
    bk = params["bk"].reshape(1, D).astype(f32)
    bv = params["bv"].reshape(1, D).astype(f32)
    bo = params["bo"].reshape(1, D).astype(f32)
    b1 = params["b1"].reshape(1, DFF).astype(f32)
    b2 = params["b2"].reshape(1, D).astype(f32)

    # Grid-invariant blocks (weights/biases) never need a second pipeline buffer.
    wkw = {"pipeline_mode": pl.Buffered(1)} if single_buffer_weights else {}

    # ------------------ kernel 1: pre-LN + QKV projection --------------------
    def const2(shape):
        return pl.BlockSpec(shape, lambda b, i: (0,) * len(shape), **wkw)

    qkv_footprint = (
        2 * ts * D * 4                        # x block (double-buffered)
        + 3 * 2 * ts * D * 2                  # q/k/v output blocks
        + 3 * D * D * 2 + 3 * 8 * D * 4       # weights (1x) + padded biases
        + 5 * ts * D * 4)                     # live f32 intermediates
    q, k, v = pl.pallas_call(
        functools.partial(_qkv_kernel, inv_sqrt_dk=1.0 / math.sqrt(dk)),
        out_shape=(jax.ShapeDtypeStruct((B, S, D), bf16),) * 3,
        grid_spec=pltpu.PrefetchScalarGridSpec(
            num_scalar_prefetch=0,
            grid=(B, S // ts),
            in_specs=[
                pl.BlockSpec((1, ts, D), lambda b, i: (b, i, 0)),   # x
                const2((D, D)), const2((1, D)),                     # wqT, bq
                const2((D, D)), const2((1, D)),                     # wkT, bk
                const2((D, D)), const2((1, D)),                     # wvT, bv
            ],
            out_specs=[pl.BlockSpec((1, ts, D), lambda b, i: (b, i, 0))] * 3,
        ),
        compiler_params=pltpu.CompilerParams(
            dimension_semantics=("parallel", "parallel"),
            vmem_limit_bytes=_vmem_limit(qkv_footprint)),
    )(x, wqT, bq, wkT, bk, wvT, bv)

    # ---- kernel 2: flash attention + Wo + residual + LN + FFN + residual ----
    def const3(shape):
        return pl.BlockSpec(shape, lambda b, qi, ki: (0,) * len(shape), **wkw)

    attn_footprint = (
        2 * tq * D * 2 + 2 * 2 * tk * D * 2                      # q, k, v blocks
        + 2 * tq * D * 4 + 2 * tq * D * 4                        # x, out blocks
        + (D * D + 2 * D * DFF) * 2 + (2 * 8 * D + 8 * DFF + 8 * D) * 4   # weights+biases
        + 2 * h * tq * 128 * 4 + tq * D * 4                      # m/l/acc scratch
        + (2 * tq * tk + tq * DFF + 4 * tq * D) * 4)             # live intermediates
    out = pl.pallas_call(
        functools.partial(_attn_ffn_kernel, num_heads=h),
        out_shape=jax.ShapeDtypeStruct((B, S, D), f32),
        grid_spec=pltpu.PrefetchScalarGridSpec(
            num_scalar_prefetch=0,
            grid=(B, S // tq, S // tk),
            in_specs=[
                pl.BlockSpec((1, tq, D), lambda b, qi, ki: (b, qi, 0)),   # q
                pl.BlockSpec((1, tk, D), lambda b, qi, ki: (b, ki, 0)),   # k
                pl.BlockSpec((1, tk, D), lambda b, qi, ki: (b, ki, 0)),   # v
                pl.BlockSpec((1, tq, D), lambda b, qi, ki: (b, qi, 0)),   # x (residual)
                const3((D, D)), const3((1, D)),                           # woT, bo
                const3((D, DFF)), const3((1, DFF)),                       # w1T, b1
                const3((DFF, D)), const3((1, D)),                         # w2T, b2
            ],
            out_specs=pl.BlockSpec((1, tq, D), lambda b, qi, ki: (b, qi, 0)),
            scratch_shapes=[
                pltpu.VMEM((h, tq, 1), f32),    # running max per head
                pltpu.VMEM((h, tq, 1), f32),    # running sum per head
                pltpu.VMEM((tq, D), f32),       # output accumulator (heads concat)
            ],
        ),
        compiler_params=pltpu.CompilerParams(
            dimension_semantics=("parallel", "parallel", "arbitrary"),
            vmem_limit_bytes=_vmem_limit(attn_footprint)),
    )(q, k, v, x, woT, bo, w1T, b1, w2T, b2)
    return out


def encoder_block(x, params, *, h, src_mask=None):
    """EncoderBlock forward. src_mask is accepted but ignored: the reference's
    masked_fill is not in-place, so the mask is a no-op in the PyTorch code."""
    del src_mask
    try:
        return _forward(x, params, h=h, single_buffer_weights=True)
    except Exception:
        # Fallback if this jax build rejects pipeline_mode=pl.Buffered(1):
        # rerun with default (double-buffered) weight blocks instead of failing.
        return _forward(x, params, h=h, single_buffer_weights=False)


# ----------------------------- pure-JAX reference -----------------------------
def _reference(x, params, *, h):
    B, S, D = x.shape
    dk = D // h

    def ln(t):
        mean = jnp.mean(t, axis=-1, keepdims=True)
        var = jnp.sum((t - mean) ** 2, axis=-1, keepdims=True) / (t.shape[-1] - 1)
        return (t - mean) / (jnp.sqrt(var) + 1e-6)

    def lin(t, w, b):
        return t @ w.T + b

    h1 = ln(x)
    q = lin(h1, params["wq"], params["bq"]).reshape(B, S, h, dk).transpose(0, 2, 1, 3)
    k = lin(h1, params["wk"], params["bk"]).reshape(B, S, h, dk).transpose(0, 2, 1, 3)
    v = lin(h1, params["wv"], params["bv"]).reshape(B, S, h, dk).transpose(0, 2, 1, 3)
    scores = jnp.einsum("bhqd,bhkd->bhqk", q, k) / math.sqrt(dk)
    p = jax.nn.softmax(scores, axis=-1)
    attn = jnp.einsum("bhqk,bhkd->bhqd", p, v).transpose(0, 2, 1, 3).reshape(B, S, D)
    x1 = x + lin(attn, params["wo"], params["bo"])
    h2 = ln(x1)
    ff = lin(jnp.maximum(lin(h2, params["w1"], params["b1"]), 0.0),
             params["w2"], params["b2"])
    return x1 + ff


if __name__ == "__main__":
    # Small but lane-aligned shapes: dk = D // H = 128, two q-tiles, two kv-tiles.
    B, S, D, H, DFF = 2, 256, 256, 2, 512

    key = jax.random.PRNGKey(0)
    keys = jax.random.split(key, 13)
    scale = 0.02
    params = {
        "wq": scale * jax.random.normal(keys[0], (D, D), jnp.float32),
        "bq": scale * jax.random.normal(keys[1], (D,), jnp.float32),
        "wk": scale * jax.random.normal(keys[2], (D, D), jnp.float32),
        "bk": scale * jax.random.normal(keys[3], (D,), jnp.float32),
        "wv": scale * jax.random.normal(keys[4], (D, D), jnp.float32),
        "bv": scale * jax.random.normal(keys[5], (D,), jnp.float32),
        "wo": scale * jax.random.normal(keys[6], (D, D), jnp.float32),
        "bo": scale * jax.random.normal(keys[7], (D,), jnp.float32),
        "w1": scale * jax.random.normal(keys[8], (DFF, D), jnp.float32),
        "b1": scale * jax.random.normal(keys[9], (DFF,), jnp.float32),
        "w2": scale * jax.random.normal(keys[10], (D, DFF), jnp.float32),
        "b2": scale * jax.random.normal(keys[11], (D,), jnp.float32),
    }
    x = jax.random.normal(keys[12], (B, S, D), jnp.float32)

    out = jax.block_until_ready(encoder_block(x, params, h=H))

    ref = _reference(x, params, h=H)
    assert out.shape == (B, S, D)
    err = float(jnp.max(jnp.abs(out - ref)))
    # bf16 MXU inputs / bf16 q,k,v intermediates + approx softmax reciprocal
    # vs. the fp32 reference -> ~1e-3 level error.
    assert jnp.allclose(out, ref, atol=1e-2, rtol=1e-2), (
        f"mismatch vs reference: max abs err {err}")

    print("KERNEL_OK")
</pallas_src>

<mosaic_0001>
module attributes {stable_mosaic.version = 11 : i64} {
  func.func @_qkv_kernel(%arg0: i32, %arg1: i32, %arg2: memref<1x128x256xf32, #tpu.memory_space<vmem>>, %arg3: memref<256x256xbf16, #tpu.memory_space<vmem>>, %arg4: memref<1x256xf32, #tpu.memory_space<vmem>>, %arg5: memref<256x256xbf16, #tpu.memory_space<vmem>>, %arg6: memref<1x256xf32, #tpu.memory_space<vmem>>, %arg7: memref<256x256xbf16, #tpu.memory_space<vmem>>, %arg8: memref<1x256xf32, #tpu.memory_space<vmem>>, %arg9: memref<1x128x256xbf16, #tpu.memory_space<vmem>>, %arg10: memref<1x128x256xbf16, #tpu.memory_space<vmem>>, %arg11: memref<1x128x256xbf16, #tpu.memory_space<vmem>>) attributes {dimension_semantics = [#tpu.dimension_semantics<parallel>, #tpu.dimension_semantics<parallel>], iteration_bounds = array<i64: 2, 2>, scalar_prefetch = 0 : i64, scratch_operands = 0 : i64, tpu.core_type = #tpu.core_type<tc>, window_params = [{transform_indices = @transform_0, window_bounds = array<i64: 1, 128, 256>}, {pipeline_mode = #tpu.pipeline_mode<synchronous>, transform_indices = @transform_1, window_bounds = array<i64: 256, 256>}, {pipeline_mode = #tpu.pipeline_mode<synchronous>, transform_indices = @transform_2, window_bounds = array<i64: 1, 256>}, {pipeline_mode = #tpu.pipeline_mode<synchronous>, transform_indices = @transform_3, window_bounds = array<i64: 256, 256>}, {pipeline_mode = #tpu.pipeline_mode<synchronous>, transform_indices = @transform_4, window_bounds = array<i64: 1, 256>}, {pipeline_mode = #tpu.pipeline_mode<synchronous>, transform_indices = @transform_5, window_bounds = array<i64: 256, 256>}, {pipeline_mode = #tpu.pipeline_mode<synchronous>, transform_indices = @transform_6, window_bounds = array<i64: 1, 256>}, {transform_indices = @transform_7, window_bounds = array<i64: 1, 128, 256>}, {transform_indices = @transform_8, window_bounds = array<i64: 1, 128, 256>}, {transform_indices = @transform_9, window_bounds = array<i64: 1, 128, 256>}]} {
    %c0 = arith.constant 0 : index
    %c0_0 = arith.constant 0 : index
    %c0_1 = arith.constant 0 : index
    %0 = vector.load %arg2[%c0, %c0_0, %c0_1] : memref<1x128x256xf32, #tpu.memory_space<vmem>>, vector<1x128x256xf32>
    %1 = vector.shape_cast %0 : vector<1x128x256xf32> to vector<128x256xf32>
    %cst = arith.constant dense<0.000000e+00> : vector<128xf32>
    %2 = vector.multi_reduction <add>, %1, %cst [1] : vector<128x256xf32> to vector<128xf32>
    %3 = vector.shape_cast %2 : vector<128xf32> to vector<128x1xf32>
    %4 = arith.mulf %1, %1 : vector<128x256xf32>
    %cst_2 = arith.constant dense<0.000000e+00> : vector<128xf32>
    %5 = vector.multi_reduction <add>, %4, %cst_2 [1] : vector<128x256xf32> to vector<128xf32>
    %6 = vector.shape_cast %5 : vector<128xf32> to vector<128x1xf32>
    %cst_3 = arith.constant 3.906250e-03 : f32
    %7 = vector.broadcast %cst_3 : f32 to vector<128x1xf32>
    %8 = arith.mulf %3, %7 : vector<128x1xf32>
    %cst_4 = arith.constant 2.560000e+02 : f32
    %9 = vector.broadcast %cst_4 : f32 to vector<128x1xf32>
    %10 = arith.mulf %9, %8 : vector<128x1xf32>
    %11 = arith.mulf %10, %8 : vector<128x1xf32>
    %12 = arith.subf %6, %11 : vector<128x1xf32>
    %cst_5 = arith.constant 0.00392156886 : f32
    %13 = vector.broadcast %cst_5 : f32 to vector<128x1xf32>
    %14 = arith.mulf %12, %13 : vector<128x1xf32>
    %cst_6 = arith.constant 0.000000e+00 : f32
    %15 = vector.broadcast %cst_6 : f32 to vector<128x1xf32>
    %16 = arith.maximumf %14, %15 : vector<128x1xf32>
    %17 = math.sqrt %16 : vector<128x1xf32>
    %18 = vector.broadcast %8 : vector<128x1xf32> to vector<128x256xf32>
    %19 = arith.subf %1, %18 : vector<128x256xf32>
    %cst_7 = arith.constant 9.99999997E-7 : f32
    %20 = vector.broadcast %cst_7 : f32 to vector<128x1xf32>
    %21 = arith.addf %17, %20 : vector<128x1xf32>
    %22 = vector.broadcast %21 : vector<128x1xf32> to vector<128x256xf32>
    %23 = arith.divf %19, %22 : vector<128x256xf32>
    %24 = arith.truncf %23 : vector<128x256xf32> to vector<128x256xbf16>
    %c0_8 = arith.constant 0 : index
    %c0_9 = arith.constant 0 : index
    %25 = vector.load %arg3[%c0_8, %c0_9] : memref<256x256xbf16, #tpu.memory_space<vmem>>, vector<256x256xbf16>
    %cst_10 = arith.constant dense<0.000000e+00> : vector<128x256xf32>
    %26 = tpu.matmul %24, %25, %cst_10 {dimension_numbers = #tpu.dot_dimension_numbers<[1], [0], [0], [1], [0, 0, 1, 1], [], []>} : vector<128x256xbf16>, vector<256x256xbf16>, vector<128x256xf32> -> vector<128x256xf32>
    %c0_11 = arith.constant 0 : index
    %c0_12 = arith.constant 0 : index
    %27 = vector.load %arg4[%c0_11, %c0_12] : memref<1x256xf32, #tpu.memory_space<vmem>>, vector<1x256xf32>
    %28 = vector.broadcast %27 : vector<1x256xf32> to vector<128x256xf32>
    %29 = arith.addf %26, %28 : vector<128x256xf32>
    %c0_13 = arith.constant 0 : index
    %c0_14 = arith.constant 0 : index
    %30 = vector.load %arg5[%c0_13, %c0_14] : memref<256x256xbf16, #tpu.memory_space<vmem>>, vector<256x256xbf16>
    %cst_15 = arith.constant dense<0.000000e+00> : vector<128x256xf32>
    %31 = tpu.matmul %24, %30, %cst_15 {dimension_numbers = #tpu.dot_dimension_numbers<[1], [0], [0], [1], [0, 0, 1, 1], [], []>} : vector<128x256xbf16>, vector<256x256xbf16>, vector<128x256xf32> -> vector<128x256xf32>
    %c0_16 = arith.constant 0 : index
    %c0_17 = arith.constant 0 : index
    %32 = vector.load %arg6[%c0_16, %c0_17] : memref<1x256xf32, #tpu.memory_space<vmem>>, vector<1x256xf32>
    %33 = vector.broadcast %32 : vector<1x256xf32> to vector<128x256xf32>
    %34 = arith.addf %31, %33 : vector<128x256xf32>
    %c0_18 = arith.constant 0 : index
    %c0_19 = arith.constant 0 : index
    %35 = vector.load %arg7[%c0_18, %c0_19] : memref<256x256xbf16, #tpu.memory_space<vmem>>, vector<256x256xbf16>
    %cst_20 = arith.constant dense<0.000000e+00> : vector<128x256xf32>
    %36 = tpu.matmul %24, %35, %cst_20 {dimension_numbers = #tpu.dot_dimension_numbers<[1], [0], [0], [1], [0, 0, 1, 1], [], []>} : vector<128x256xbf16>, vector<256x256xbf16>, vector<128x256xf32> -> vector<128x256xf32>
    %c0_21 = arith.constant 0 : index
    %c0_22 = arith.constant 0 : index
    %37 = vector.load %arg8[%c0_21, %c0_22] : memref<1x256xf32, #tpu.memory_space<vmem>>, vector<1x256xf32>
    %38 = vector.broadcast %37 : vector<1x256xf32> to vector<128x256xf32>
    %39 = arith.addf %36, %38 : vector<128x256xf32>
    %cst_23 = arith.constant 0.0883883461 : f32
    %40 = vector.broadcast %cst_23 : f32 to vector<128x256xf32>
    %41 = arith.mulf %29, %40 : vector<128x256xf32>
    %42 = arith.truncf %41 : vector<128x256xf32> to vector<128x256xbf16>
    %c0_24 = arith.constant 0 : index
    %c0_25 = arith.constant 0 : index
    %c0_26 = arith.constant 0 : index
    %43 = vector.load %arg9[%c0_24, %c0_25, %c0_26] : memref<1x128x256xbf16, #tpu.memory_space<vmem>>, vector<1x128x256xbf16>
    %44 = vector.shape_cast %43 : vector<1x128x256xbf16> to vector<128x256xbf16>
    %45 = vector.shape_cast %42 : vector<128x256xbf16> to vector<1x128x256xbf16>
    tpu.vector_store %arg9[%c0_24, %c0_25, %c0_26], %45 {strides = array<i32>} : memref<1x128x256xbf16, #tpu.memory_space<vmem>>, vector<1x128x256xbf16>,
    %46 = arith.truncf %34 : vector<128x256xf32> to vector<128x256xbf16>
    %c0_27 = arith.constant 0 : index
    %c0_28 = arith.constant 0 : index
    %c0_29 = arith.constant 0 : index
    %47 = vector.load %arg10[%c0_27, %c0_28, %c0_29] : memref<1x128x256xbf16, #tpu.memory_space<vmem>>, vector<1x128x256xbf16>
    %48 = vector.shape_cast %47 : vector<1x128x256xbf16> to vector<128x256xbf16>
    %49 = vector.shape_cast %46 : vector<128x256xbf16> to vector<1x128x256xbf16>
    tpu.vector_store %arg10[%c0_27, %c0_28, %c0_29], %49 {strides = array<i32>} : memref<1x128x256xbf16, #tpu.memory_space<vmem>>, vector<1x128x256xbf16>,
    %50 = arith.truncf %39 : vector<128x256xf32> to vector<128x256xbf16>
    %c0_30 = arith.constant 0 : index
    %c0_31 = arith.constant 0 : index
    %c0_32 = arith.constant 0 : index
    %51 = vector.load %arg11[%c0_30, %c0_31, %c0_32] : memref<1x128x256xbf16, #tpu.memory_space<vmem>>, vector<1x128x256xbf16>
    %52 = vector.shape_cast %51 : vector<1x128x256xbf16> to vector<128x256xbf16>
    %53 = vector.shape_cast %50 : vector<128x256xbf16> to vector<1x128x256xbf16>
    tpu.vector_store %arg11[%c0_30, %c0_31, %c0_32], %53 {strides = array<i32>} : memref<1x128x256xbf16, #tpu.memory_space<vmem>>, vector<1x128x256xbf16>,
    return
  }
  func.func @transform_0(%arg0: i32, %arg1: i32) -> (i32, i32, i32) {
    %c0_i32 = arith.constant 0 : i32
    %c0_i32_0 = arith.constant 0 : i32
    return %arg0, %arg1, %c0_i32 : i32, i32, i32
  }
  func.func @transform_1(%arg0: i32, %arg1: i32) -> (i32, i32) {
    %c0_i32 = arith.constant 0 : i32
    %c0_i32_0 = arith.constant 0 : i32
    %c0_i32_1 = arith.constant 0 : i32
    return %c0_i32, %c0_i32_0 : i32, i32
  }
  func.func @transform_2(%arg0: i32, %arg1: i32) -> (i32, i32) {
    %c0_i32 = arith.constant 0 : i32
    %c0_i32_0 = arith.constant 0 : i32
    %c0_i32_1 = arith.constant 0 : i32
    return %c0_i32, %c0_i32_0 : i32, i32
  }
  func.func @transform_3(%arg0: i32, %arg1: i32) -> (i32, i32) {
    %c0_i32 = arith.constant 0 : i32
    %c0_i32_0 = arith.constant 0 : i32
    %c0_i32_1 = arith.constant 0 : i32
    return %c0_i32, %c0_i32_0 : i32, i32
  }
  func.func @transform_4(%arg0: i32, %arg1: i32) -> (i32, i32) {
    %c0_i32 = arith.constant 0 : i32
    %c0_i32_0 = arith.constant 0 : i32
    %c0_i32_1 = arith.constant 0 : i32
    return %c0_i32, %c0_i32_0 : i32, i32
  }
  func.func @transform_5(%arg0: i32, %arg1: i32) -> (i32, i32) {
    %c0_i32 = arith.constant 0 : i32
    %c0_i32_0 = arith.constant 0 : i32
    %c0_i32_1 = arith.constant 0 : i32
    return %c0_i32, %c0_i32_0 : i32, i32
  }
  func.func @transform_6(%arg0: i32, %arg1: i32) -> (i32, i32) {
    %c0_i32 = arith.constant 0 : i32
    %c0_i32_0 = arith.constant 0 : i32
    %c0_i32_1 = arith.constant 0 : i32
    return %c0_i32, %c0_i32_0 : i32, i32
  }
  func.func @transform_7(%arg0: i32, %arg1: i32) -> (i32, i32, i32) {
    %c0_i32 = arith.constant 0 : i32
    %c0_i32_0 = arith.constant 0 : i32
    return %arg0, %arg1, %c0_i32 : i32, i32, i32
  }
  func.func @transform_8(%arg0: i32, %arg1: i32) -> (i32, i32, i32) {
    %c0_i32 = arith.constant 0 : i32
    %c0_i32_0 = arith.constant 0 : i32
    return %arg0, %arg1, %c0_i32 : i32, i32, i32
  }
  func.func @transform_9(%arg0: i32, %arg1: i32) -> (i32, i32, i32) {
    %c0_i32 = arith.constant 0 : i32
    %c0_i32_0 = arith.constant 0 : i32
    return %arg0, %arg1, %c0_i32 : i32, i32, i32
  }
}

module attributes {stable_mosaic.version = 11 : i64} {
  func.func @_qkv_kernel(%arg0: i32, %arg1: i32, %arg2: memref<1x128x256xf32, #tpu.memory_space<vmem>>, %arg3: memref<256x256xbf16, #tpu.memory_space<vmem>>, %arg4: memref<1x256xf32, #tpu.memory_space<vmem>>, %arg5: memref<256x256xbf16, #tpu.memory_space<vmem>>, %arg6: memref<1x256xf32, #tpu.memory_space<vmem>>, %arg7: memref<256x256xbf16, #tpu.memory_space<vmem>>, %arg8: memref<1x256xf32, #tpu.memory_space<vmem>>, %arg9: memref<1x128x256xbf16, #tpu.memory_space<vmem>>, %arg10: memref<1x128x256xbf16, #tpu.memory_space<vmem>>, %arg11: memref<1x128x256xbf16, #tpu.memory_space<vmem>>) attributes {dimension_semantics = [#tpu.dimension_semantics<parallel>, #tpu.dimension_semantics<parallel>], iteration_bounds = array<i64: 2, 2>, scalar_prefetch = 0 : i64, scratch_operands = 0 : i64, tpu.core_type = #tpu.core_type<tc>, window_params = [{transform_indices = @transform_0, window_bounds = array<i64: 1, 128, 256>}, {pipeline_mode = #tpu.pipeline_mode<synchronous>, transform_indices = @transform_1, window_bounds = array<i64: 256, 256>}, {pipeline_mode = #tpu.pipeline_mode<synchronous>, transform_indices = @transform_2, window_bounds = array<i64: 1, 256>}, {pipeline_mode = #tpu.pipeline_mode<synchronous>, transform_indices = @transform_3, window_bounds = array<i64: 256, 256>}, {pipeline_mode = #tpu.pipeline_mode<synchronous>, transform_indices = @transform_4, window_bounds = array<i64: 1, 256>}, {pipeline_mode = #tpu.pipeline_mode<synchronous>, transform_indices = @transform_5, window_bounds = array<i64: 256, 256>}, {pipeline_mode = #tpu.pipeline_mode<synchronous>, transform_indices = @transform_6, window_bounds = array<i64: 1, 256>}, {transform_indices = @transform_7, window_bounds = array<i64: 1, 128, 256>}, {transform_indices = @transform_8, window_bounds = array<i64: 1, 128, 256>}, {transform_indices = @transform_9, window_bounds = array<i64: 1, 128, 256>}]} {
    %c0 = arith.constant 0 : index
    %c0_0 = arith.constant 0 : index
    %c0_1 = arith.constant 0 : index
    %0 = vector.load %arg2[%c0, %c0_0, %c0_1] : memref<1x128x256xf32, #tpu.memory_space<vmem>>, vector<1x128x256xf32>
    %1 = vector.shape_cast %0 : vector<1x128x256xf32> to vector<128x256xf32>
    %cst = arith.constant dense<0.000000e+00> : vector<128xf32>
    %2 = vector.multi_reduction <add>, %1, %cst [1] : vector<128x256xf32> to vector<128xf32>
    %3 = vector.shape_cast %2 : vector<128xf32> to vector<128x1xf32>
    %4 = arith.mulf %1, %1 : vector<128x256xf32>
    %cst_2 = arith.constant dense<0.000000e+00> : vector<128xf32>
    %5 = vector.multi_reduction <add>, %4, %cst_2 [1] : vector<128x256xf32> to vector<128xf32>
    %6 = vector.shape_cast %5 : vector<128xf32> to vector<128x1xf32>
    %cst_3 = arith.constant 3.906250e-03 : f32
    %7 = vector.broadcast %cst_3 : f32 to vector<128x1xf32>
    %8 = arith.mulf %3, %7 : vector<128x1xf32>
    %cst_4 = arith.constant 2.560000e+02 : f32
    %9 = vector.broadcast %cst_4 : f32 to vector<128x1xf32>
    %10 = arith.mulf %9, %8 : vector<128x1xf32>
    %11 = arith.mulf %10, %8 : vector<128x1xf32>
    %12 = arith.subf %6, %11 : vector<128x1xf32>
    %cst_5 = arith.constant 0.00392156886 : f32
    %13 = vector.broadcast %cst_5 : f32 to vector<128x1xf32>
    %14 = arith.mulf %12, %13 : vector<128x1xf32>
    %cst_6 = arith.constant 0.000000e+00 : f32
    %15 = vector.broadcast %cst_6 : f32 to vector<128x1xf32>
    %16 = arith.maximumf %14, %15 : vector<128x1xf32>
    %17 = math.sqrt %16 : vector<128x1xf32>
    %18 = vector.broadcast %8 : vector<128x1xf32> to vector<128x256xf32>
    %19 = arith.subf %1, %18 : vector<128x256xf32>
    %cst_7 = arith.constant 9.99999997E-7 : f32
    %20 = vector.broadcast %cst_7 : f32 to vector<128x1xf32>
    %21 = arith.addf %17, %20 : vector<128x1xf32>
    %22 = vector.broadcast %21 : vector<128x1xf32> to vector<128x256xf32>
    %23 = arith.divf %19, %22 : vector<128x256xf32>
    %24 = arith.truncf %23 : vector<128x256xf32> to vector<128x256xbf16>
    %c0_8 = arith.constant 0 : index
    %c0_9 = arith.constant 0 : index
    %25 = vector.load %arg3[%c0_8, %c0_9] : memref<256x256xbf16, #tpu.memory_space<vmem>>, vector<256x256xbf16>
    %cst_10 = arith.constant dense<0.000000e+00> : vector<128x256xf32>
    %26 = tpu.matmul %24, %25, %cst_10 {dimension_numbers = #tpu.dot_dimension_numbers<[1], [0], [0], [1], [0, 0, 1, 1], [], []>} : vector<128x256xbf16>, vector<256x256xbf16>, vector<128x256xf32> -> vector<128x256xf32>
    %c0_11 = arith.constant 0 : index
    %c0_12 = arith.constant 0 : index
    %27 = vector.load %arg4[%c0_11, %c0_12] : memref<1x256xf32, #tpu.memory_space<vmem>>, vector<1x256xf32>
    %28 = vector.broadcast %27 : vector<1x256xf32> to vector<128x256xf32>
    %29 = arith.addf %26, %28 : vector<128x256xf32>
    %c0_13 = arith.constant 0 : index
    %c0_14 = arith.constant 0 : index
    %30 = vector.load %arg5[%c0_13, %c0_14] : memref<256x256xbf16, #tpu.memory_space<vmem>>, vector<256x256xbf16>
    %cst_15 = arith.constant dense<0.000000e+00> : vector<128x256xf32>
    %31 = tpu.matmul %24, %30, %cst_15 {dimension_numbers = #tpu.dot_dimension_numbers<[1], [0], [0], [1], [0, 0, 1, 1], [], []>} : vector<128x256xbf16>, vector<256x256xbf16>, vector<128x256xf32> -> vector<128x256xf32>
    %c0_16 = arith.constant 0 : index
    %c0_17 = arith.constant 0 : index
    %32 = vector.load %arg6[%c0_16, %c0_17] : memref<1x256xf32, #tpu.memory_space<vmem>>, vector<1x256xf32>
    %33 = vector.broadcast %32 : vector<1x256xf32> to vector<128x256xf32>
    %34 = arith.addf %31, %33 : vector<128x256xf32>
    %c0_18 = arith.constant 0 : index
    %c0_19 = arith.constant 0 : index
    %35 = vector.load %arg7[%c0_18, %c0_19] : memref<256x256xbf16, #tpu.memory_space<vmem>>, vector<256x256xbf16>
    %cst_20 = arith.constant dense<0.000000e+00> : vector<128x256xf32>
    %36 = tpu.matmul %24, %35, %cst_20 {dimension_numbers = #tpu.dot_dimension_numbers<[1], [0], [0], [1], [0, 0, 1, 1], [], []>} : vector<128x256xbf16>, vector<256x256xbf16>, vector<128x256xf32> -> vector<128x256xf32>
    %c0_21 = arith.constant 0 : index
    %c0_22 = arith.constant 0 : index
    %37 = vector.load %arg8[%c0_21, %c0_22] : memref<1x256xf32, #tpu.memory_space<vmem>>, vector<1x256xf32>
    %38 = vector.broadcast %37 : vector<1x256xf32> to vector<128x256xf32>
    %39 = arith.addf %36, %38 : vector<128x256xf32>
    %cst_23 = arith.constant 0.0883883461 : f32
    %40 = vector.broadcast %cst_23 : f32 to vector<128x256xf32>
    %41 = arith.mulf %29, %40 : vector<128x256xf32>
    %42 = arith.truncf %41 : vector<128x256xf32> to vector<128x256xbf16>
    %c0_24 = arith.constant 0 : index
    %c0_25 = arith.constant 0 : index
    %c0_26 = arith.constant 0 : index
    %43 = vector.load %arg9[%c0_24, %c0_25, %c0_26] : memref<1x128x256xbf16, #tpu.memory_space<vmem>>, vector<1x128x256xbf16>
    %44 = vector.shape_cast %43 : vector<1x128x256xbf16> to vector<128x256xbf16>
    %45 = vector.shape_cast %42 : vector<128x256xbf16> to vector<1x128x256xbf16>
    tpu.vector_store %arg9[%c0_24, %c0_25, %c0_26], %45 {strides = array<i32>} : memref<1x128x256xbf16, #tpu.memory_space<vmem>>, vector<1x128x256xbf16>,
    %46 = arith.truncf %34 : vector<128x256xf32> to vector<128x256xbf16>
    %c0_27 = arith.constant 0 : index
    %c0_28 = arith.constant 0 : index
    %c0_29 = arith.constant 0 : index
    %47 = vector.load %arg10[%c0_27, %c0_28, %c0_29] : memref<1x128x256xbf16, #tpu.memory_space<vmem>>, vector<1x128x256xbf16>
    %48 = vector.shape_cast %47 : vector<1x128x256xbf16> to vector<128x256xbf16>
    %49 = vector.shape_cast %46 : vector<128x256xbf16> to vector<1x128x256xbf16>
    tpu.vector_store %arg10[%c0_27, %c0_28, %c0_29], %49 {strides = array<i32>} : memref<1x128x256xbf16, #tpu.memory_space<vmem>>, vector<1x128x256xbf16>,
    %50 = arith.truncf %39 : vector<128x256xf32> to vector<128x256xbf16>
    %c0_30 = arith.constant 0 : index
    %c0_31 = arith.constant 0 : index
    %c0_32 = arith.constant 0 : index
    %51 = vector.load %arg11[%c0_30, %c0_31, %c0_32] : memref<1x128x256xbf16, #tpu.memory_space<vmem>>, vector<1x128x256xbf16>
    %52 = vector.shape_cast %51 : vector<1x128x256xbf16> to vector<128x256xbf16>
    %53 = vector.shape_cast %50 : vector<128x256xbf16> to vector<1x128x256xbf16>
    tpu.vector_store %arg11[%c0_30, %c0_31, %c0_32], %53 {strides = array<i32>} : memref<1x128x256xbf16, #tpu.memory_space<vmem>>, vector<1x128x256xbf16>,
    return
  }
  func.func @transform_0(%arg0: i32, %arg1: i32) -> (i32, i32, i32) {
    %c0_i32 = arith.constant 0 : i32
    %c0_i32_0 = arith.constant 0 : i32
    return %arg0, %arg1, %c0_i32 : i32, i32, i32
  }
  func.func @transform_1(%arg0: i32, %arg1: i32) -> (i32, i32) {
    %c0_i32 = arith.constant 0 : i32
    %c0_i32_0 = arith.constant 0 : i32
    %c0_i32_1 = arith.constant 0 : i32
    return %c0_i32, %c0_i32_0 : i32, i32
  }
  func.func @transform_2(%arg0: i32, %arg1: i32) -> (i32, i32) {
    %c0_i32 = arith.constant 0 : i32
    %c0_i32_0 = arith.constant 0 : i32
    %c0_i32_1 = arith.constant 0 : i32
    return %c0_i32, %c0_i32_0 : i32, i32
  }
  func.func @transform_3(%arg0: i32, %arg1: i32) -> (i32, i32) {
    %c0_i32 = arith.constant 0 : i32
    %c0_i32_0 = arith.constant 0 : i32
    %c0_i32_1 = arith.constant 0 : i32
    return %c0_i32, %c0_i32_0 : i32, i32
  }
  func.func @transform_4(%arg0: i32, %arg1: i32) -> (i32, i32) {
    %c0_i32 = arith.constant 0 : i32
    %c0_i32_0 = arith.constant 0 : i32
    %c0_i32_1 = arith.constant 0 : i32
    return %c0_i32, %c0_i32_0 : i32, i32
  }
  func.func @transform_5(%arg0: i32, %arg1: i32) -> (i32, i32) {
    %c0_i32 = arith.constant 0 : i32
    %c0_i32_0 = arith.constant 0 : i32
    %c0_i32_1 = arith.constant 0 : i32
    return %c0_i32, %c0_i32_0 : i32, i32
  }
  func.func @transform_6(%arg0: i32, %arg1: i32) -> (i32, i32) {
    %c0_i32 = arith.constant 0 : i32
    %c0_i32_0 = arith.constant 0 : i32
    %c0_i32_1 = arith.constant 0 : i32
    return %c0_i32, %c0_i32_0 : i32, i32
  }
  func.func @transform_7(%arg0: i32, %arg1: i32) -> (i32, i32, i32) {
    %c0_i32 = arith.constant 0 : i32
    %c0_i32_0 = arith.constant 0 : i32
    return %arg0, %arg1, %c0_i32 : i32, i32, i32
  }
  func.func @transform_8(%arg0: i32, %arg1: i32) -> (i32, i32, i32) {
    %c0_i32 = arith.constant 0 : i32
    %c0_i32_0 = arith.constant 0 : i32
    return %arg0, %arg1, %c0_i32 : i32, i32, i32
  }
  func.func @transform_9(%arg0: i32, %arg1: i32) -> (i32, i32, i32) {
    %c0_i32 = arith.constant 0 : i32
    %c0_i32_0 = arith.constant 0 : i32
    return %arg0, %arg1, %c0_i32 : i32, i32, i32
  }
}

</mosaic_0001>

<llo_original>
// kernel: tpu_custom_call.1
$region0: #{tpu_custom_call.1}
  #allocation0 [shape = 'u32[]', space=smem, size = 0x4, offset = 0x4, fixed_abs, tag = 'smem constant byte address 0x4 - core index']
  #allocation1 [shape = 'u32[144,128]{1,0:T(1,128)}', space=vmem, size = 0x12000, scoped, tag = 'internal scratch']
  %s0 = inlined_call_operand.hbm [shape: f32[2,256,256], index: 0, kind: input, shape index: {}]
  %s1 = inlined_call_operand.hbm [shape: bf16[256,256], index: 1, kind: input, shape index: {}]
  %s2 = inlined_call_operand.vmem [shape: f32[1,256], index: 2, kind: input, shape index: {}]
  %s3 = inlined_call_operand.hbm [shape: bf16[256,256], index: 3, kind: input, shape index: {}]
  %s4 = inlined_call_operand.vmem [shape: f32[1,256], index: 4, kind: input, shape index: {}]
  %s5 = inlined_call_operand.hbm [shape: bf16[256,256], index: 5, kind: input, shape index: {}]
  %s6 = inlined_call_operand.vmem [shape: f32[1,256], index: 6, kind: input, shape index: {}]
  %s7 = inlined_call_operand.hbm [shape: bf16[2,256,256], index: 7, kind: output, shape index: {0}]
  %s8 = inlined_call_operand.hbm [shape: bf16[2,256,256], index: 8, kind: output, shape index: {1}]
  %s9 = inlined_call_operand.hbm [shape: bf16[2,256,256], index: 9, kind: output, shape index: {2}]
  %10 = xla_tuple %s7, %s8, %s9
  %s11 = sld [smem:[#allocation0]]
  $region93: #{tpu_custom_call.1} parent=0
    _
  %s13 = ssub.s32 1, %s11
  %s14 = scalar_select 0, %s13, %s11
  $region1: #{tpu_custom_call.1} parent=0
    #allocation2 [shape = 'u8[262144]{0}', space=vmem, size = 0x40000, scoped, tag = 'input window, operand 0']
    #allocation3 [shape = 's32[2]{0}', space=sflag, size = 0x8, scoped, tag = 'scoped memory for tpu_custom_call.1']
    #allocation4 [shape = 's32[2]{0}', space=sflag, size = 0x8, scoped, tag = 'scoped memory for tpu_custom_call.1']
    #allocation5 [shape = 'u8[131072]{0}', space=vmem, size = 0x20000, scoped, tag = 'input window, operand 1, single buffered']
    #allocation6 [shape = 's32[1]{0}', space=sflag, size = 0x4, scoped, tag = 'scoped memory for tpu_custom_call.1']
    #allocation7 [shape = 'u8[131072]{0}', space=vmem, size = 0x20000, scoped, tag = 'input window, operand 3, single buffered']
    #allocation8 [shape = 'u8[131072]{0}', space=vmem, size = 0x20000, scoped, tag = 'input window, operand 5, single buffered']
    #allocation9 [shape = 's32[1]{0}', space=sflag, size = 0x4, scoped, tag = 'scoped memory for tpu_custom_call.1']
    #allocation10 [shape = 'u8[131072]{0}', space=vmem, size = 0x20000, scoped, tag = 'output window, operand 0']
    #allocation11 [shape = 'u8[131072]{0}', space=vmem, size = 0x20000, scoped, tag = 'output window, operand 1']
    #allocation12 [shape = 's32[2]{0}', space=sflag, size = 0x8, scoped, tag = 'scoped memory for tpu_custom_call.1']
    #allocation13 [shape = 'u8[131072]{0}', space=vmem, size = 0x20000, scoped, tag = 'output window, operand 2']
    %15 = vsyncpa [#allocation3], 0
    %s16 = scalar_lea.sflag [#allocation3], 1
    %17 = vsyncpa %s16, 0
    %18 = vsyncpa [#allocation6], 0
    %19 = vsyncpa [#allocation9], 0
    %20 = vsyncpa [#allocation4], 0
    %s21 = scalar_lea.sflag [#allocation4], 1
    %22 = vsyncpa %s21, 0
    %23 = vsyncpa [#allocation12], 0
    %s24 = scalar_lea.sflag [#allocation12], 1
    %25 = vsyncpa %s24, 0
    loop: start=0, step=1, limit=6
    $region2: #{tpu_custom_call.1} parent=1 // loop_pre_header
      _
    $region3: #{tpu_custom_call.1} parent=1 // loop_header
      %s27 = sphi 0, %s31
      %p28 = scmp.ge.s32.totalorder %s27, 6
      %s34 = sphi 0, %s46
      %s35 = sphi 0, %s42
      %s36 = sphi 0, %s34
      %s37 = sphi 0, %s35
      %s38 = sphi 0, %s36
      %s39 = sphi 0, %s37
      %s51 = sphi 0, %s53
      %s54 = sphi 0, %s51
      %s55 = sphi 0, %s54
      %s71 = sphi 0, %s55
      %s75 = sphi 0, %s75
      %s77 = sphi 0, %s75
      %s78 = sphi 0, %s77
      %s92 = sphi 0, %s78
      %s96 = sphi 0, %s96
      %s98 = sphi 0, %s96
      %s99 = sphi 0, %s98
      %s113 = sphi 0, %s99
      %s117 = sphi 0, %s117
      %s119 = sphi 0, %s117
      %s120 = sphi 0, %s119
      %s134 = sphi 0, %s120
      %s138 = sphi 0, %s138
      %s140 = sphi 0, %s138
      %s141 = sphi 0, %s140
      %s155 = sphi 0, %s141
      %s159 = sphi 0, %s159
      %s161 = sphi 0, %s159
      %s162 = sphi 0, %s161
      %s176 = sphi 0, %s162
      %s180 = sphi 0, %s180
      %s182 = sphi 0, %s180
      %s183 = sphi 0, %s182
      %s197 = sphi 0, %s183
      %s205 = sphi 0, %s207
      %s208 = sphi 0, %s205
      %s209 = sphi 0, %s208
      %s225 = sphi 0, %s209
      %s233 = sphi 0, %s235
      %s236 = sphi 0, %s233
      %s237 = sphi 0, %s236
      %s253 = sphi 0, %s237
      %s261 = sphi 0, %s263
      %s264 = sphi 0, %s261
      %s265 = sphi 0, %s264
      %s281 = sphi 0, %s265
    $region4: #{tpu_custom_call.1} parent=1 // loop_header_branch
      %30 = sbr.rel (%p28) target = $region8
    $region5: #{tpu_custom_call.1} parent=1 // loop_body
      %s32 = ssub.s32 %s27, 1
      %s33 = ssub.s32 %s27, 2
      %s40 = sadd.s32 1, %s35
      %p41 = scmp.ge.s32.totalorder %s40, 2
      %s42 = scalar_select %p41, 0, %s40
      %s43 = sadd.s32 1, %s34
      %s44 = scalar_select %p41, %s43, %s34
      %p45 = scmp.ge.s32.totalorder %s44, 2
      %s46 = scalar_select %p45, 0, %s44
      %s47 = ssub.s32 %s34, %s46
      %s48 = ssub.s32 %s35, %s42
      %s49 = sor.u32 %s47, %s48
      %p50 = scmp.eq.s32.totalorder %s49, 0
      %s52 = sadd.s32 %s51, 1
      %s53 = scalar_select %p50, %s51, %s52
      %p56 = pneg %p50
      %p57 = scmp.eq.s32.totalorder %s27, 3
      %p58 = por %p56, %p57
      %p59 = scmp.ne.s32.totalorder %s51, %s54
      %p60 = scmp.eq.s32.totalorder %s27, 0
      %p61 = por %p59, %p60
      %p62 = scmp.ne.s32.totalorder %s51, %s54
      %p63 = scmp.eq.s32.totalorder %s32, 3
      %p64 = por %p62, %p63
      %p65 = scmp.ne.s32.totalorder %s54, %s55
      %p66 = scmp.eq.s32.totalorder %s32, 0
      %p67 = por %p65, %p66
      %p68 = scmp.ne.s32.totalorder %s54, %s55
      %p69 = scmp.eq.s32.totalorder %s33, 3
      %p70 = por %p68, %p69
      %p72 = scmp.ne.s32.totalorder %s55, %s71
      %p73 = scmp.eq.s32.totalorder %s33, 0
      %p74 = por %p72, %p73
      %s76 = sadd.s32 %s75, 1
      %p79 = scmp.eq.s32.totalorder %s27, 3
      %p80 = scmp.ne.s32.totalorder %s75, %s77
      %p81 = scmp.eq.s32.totalorder %s27, 0
      %p82 = por %p80, %p81
      %p83 = scmp.ne.s32.totalorder %s75, %s77
      %p84 = scmp.eq.s32.totalorder %s32, 3
      %p85 = por %p83, %p84
      %p86 = scmp.ne.s32.totalorder %s77, %s78
      %p87 = scmp.eq.s32.totalorder %s32, 0
      %p88 = por %p86, %p87
      %p89 = scmp.ne.s32.totalorder %s77, %s78
      %p90 = scmp.eq.s32.totalorder %s33, 3
      %p91 = por %p89, %p90
      %p93 = scmp.ne.s32.totalorder %s78, %s92
      %p94 = scmp.eq.s32.totalorder %s33, 0
      %p95 = por %p93, %p94
      %s97 = sadd.s32 %s96, 1
      %p100 = scmp.eq.s32.totalorder %s27, 3
      %p101 = scmp.ne.s32.totalorder %s96, %s98
      %p102 = scmp.eq.s32.totalorder %s27, 0
      %p103 = por %p101, %p102
      %p104 = scmp.ne.s32.totalorder %s96, %s98
      %p105 = scmp.eq.s32.totalorder %s32, 3
      %p106 = por %p104, %p105
      %p107 = scmp.ne.s32.totalorder %s98, %s99
      %p108 = scmp.eq.s32.totalorder %s32, 0
      %p109 = por %p107, %p108
      %p110 = scmp.ne.s32.totalorder %s98, %s99
      %p111 = scmp.eq.s32.totalorder %s33, 3
      %p112 = por %p110, %p111
      %p114 = scmp.ne.s32.totalorder %s99, %s113
      %p115 = scmp.eq.s32.totalorder %s33, 0
      %p116 = por %p114, %p115
      %s118 = sadd.s32 %s117, 1
      %p121 = scmp.eq.s32.totalorder %s27, 3
      %p122 = scmp.ne.s32.totalorder %s117, %s119
      %p123 = scmp.eq.s32.totalorder %s27, 0
      %p124 = por %p122, %p123
      %p125 = scmp.ne.s32.totalorder %s117, %s119
      %p126 = scmp.eq.s32.totalorder %s32, 3
      %p127 = por %p125, %p126
      %p128 = scmp.ne.s32.totalorder %s119, %s120
      %p129 = scmp.eq.s32.totalorder %s32, 0
      %p130 = por %p128, %p129
      %p131 = scmp.ne.s32.totalorder %s119, %s120
      %p132 = scmp.eq.s32.totalorder %s33, 3
      %p133 = por %p131, %p132
      %p135 = scmp.ne.s32.totalorder %s120, %s134
      %p136 = scmp.eq.s32.totalorder %s33, 0
      %p137 = por %p135, %p136
      %s139 = sadd.s32 %s138, 1
      %p142 = scmp.eq.s32.totalorder %s27, 3
      %p143 = scmp.ne.s32.totalorder %s138, %s140
      %p144 = scmp.eq.s32.totalorder %s27, 0
      %p145 = por %p143, %p144
      %p146 = scmp.ne.s32.totalorder %s138, %s140
      %p147 = scmp.eq.s32.totalorder %s32, 3
      %p148 = por %p146, %p147
      %p149 = scmp.ne.s32.totalorder %s140, %s141
      %p150 = scmp.eq.s32.totalorder %s32, 0
      %p151 = por %p149, %p150
      %p152 = scmp.ne.s32.totalorder %s140, %s141
      %p153 = scmp.eq.s32.totalorder %s33, 3
      %p154 = por %p152, %p153
      %p156 = scmp.ne.s32.totalorder %s141, %s155
      %p157 = scmp.eq.s32.totalorder %s33, 0
      %p158 = por %p156, %p157
      %s160 = sadd.s32 %s159, 1
      %p163 = scmp.eq.s32.totalorder %s27, 3
      %p164 = scmp.ne.s32.totalorder %s159, %s161
      %p165 = scmp.eq.s32.totalorder %s27, 0
      %p166 = por %p164, %p165
      %p167 = scmp.ne.s32.totalorder %s159, %s161
      %p168 = scmp.eq.s32.totalorder %s32, 3
      %p169 = por %p167, %p168
      %p170 = scmp.ne.s32.totalorder %s161, %s162
      %p171 = scmp.eq.s32.totalorder %s32, 0
      %p172 = por %p170, %p171
      %p173 = scmp.ne.s32.totalorder %s161, %s162
      %p174 = scmp.eq.s32.totalorder %s33, 3
      %p175 = por %p173, %p174
      %p177 = scmp.ne.s32.totalorder %s162, %s176
      %p178 = scmp.eq.s32.totalorder %s33, 0
      %p179 = por %p177, %p178
      %s181 = sadd.s32 %s180, 1
      %p184 = scmp.eq.s32.totalorder %s27, 3
      %p185 = scmp.ne.s32.totalorder %s180, %s182
      %p186 = scmp.eq.s32.totalorder %s27, 0
      %p187 = por %p185, %p186
      %p188 = scmp.ne.s32.totalorder %s180, %s182
      %p189 = scmp.eq.s32.totalorder %s32, 3
      %p190 = por %p188, %p189
      %p191 = scmp.ne.s32.totalorder %s182, %s183
      %p192 = scmp.eq.s32.totalorder %s32, 0
      %p193 = por %p191, %p192
      %p194 = scmp.ne.s32.totalorder %s182, %s183
      %p195 = scmp.eq.s32.totalorder %s33, 3
      %p196 = por %p194, %p195
      %p198 = scmp.ne.s32.totalorder %s183, %s197
      %p199 = scmp.eq.s32.totalorder %s33, 0
      %p200 = por %p198, %p199
      %s201 = ssub.s32 %s34, %s46
      %s202 = ssub.s32 %s35, %s42
      %s203 = sor.u32 %s201, %s202
      %p204 = scmp.eq.s32.totalorder %s203, 0
      %s206 = sadd.s32 %s205, 1
      %s207 = scalar_select %p204, %s205, %s206
      %p210 = pneg %p204
      %p211 = scmp.eq.s32.totalorder %s27, 3
      %p212 = por %p210, %p211
      %p213 = scmp.ne.s32.totalorder %s205, %s208
      %p214 = scmp.eq.s32.totalorder %s27, 0
      %p215 = por %p213, %p214
      %p216 = scmp.ne.s32.totalorder %s205, %s208
      %p217 = scmp.eq.s32.totalorder %s32, 3
      %p218 = por %p216, %p217
      %p219 = scmp.ne.s32.totalorder %s208, %s209
      %p220 = scmp.eq.s32.totalorder %s32, 0
      %p221 = por %p219, %p220
      %p222 = scmp.ne.s32.totalorder %s208, %s209
      %p223 = scmp.eq.s32.totalorder %s33, 3
      %p224 = por %p222, %p223
      %p226 = scmp.ne.s32.totalorder %s209, %s225
      %p227 = scmp.eq.s32.totalorder %s33, 0
      %p228 = por %p226, %p227
      %s229 = ssub.s32 %s34, %s46
      %s230 = ssub.s32 %s35, %s42
      %s231 = sor.u32 %s229, %s230
      %p232 = scmp.eq.s32.totalorder %s231, 0
      %s234 = sadd.s32 %s233, 1
      %s235 = scalar_select %p232, %s233, %s234
      %p238 = pneg %p232
      %p239 = scmp.eq.s32.totalorder %s27, 3
      %p240 = por %p238, %p239
      %p241 = scmp.ne.s32.totalorder %s233, %s236
      %p242 = scmp.eq.s32.totalorder %s27, 0
      %p243 = por %p241, %p242
      %p244 = scmp.ne.s32.totalorder %s233, %s236
      %p245 = scmp.eq.s32.totalorder %s32, 3
      %p246 = por %p244, %p245
      %p247 = scmp.ne.s32.totalorder %s236, %s237
      %p248 = scmp.eq.s32.totalorder %s32, 0
      %p249 = por %p247, %p248
      %p250 = scmp.ne.s32.totalorder %s236, %s237
      %p251 = scmp.eq.s32.totalorder %s33, 3
      %p252 = por %p250, %p251
      %p254 = scmp.ne.s32.totalorder %s237, %s253
      %p255 = scmp.eq.s32.totalorder %s33, 0
      %p256 = por %p254, %p255
      %s257 = ssub.s32 %s34, %s46
      %s258 = ssub.s32 %s35, %s42
      %s259 = sor.u32 %s257, %s258
      %p260 = scmp.eq.s32.totalorder %s259, 0
      %s262 = sadd.s32 %s261, 1
      %s263 = scalar_select %p260, %s261, %s262
      %p266 = pneg %p260
      %p267 = scmp.eq.s32.totalorder %s27, 3
      %p268 = por %p266, %p267
      %p269 = scmp.ne.s32.totalorder %s261, %s264
      %p270 = scmp.eq.s32.totalorder %s27, 0
      %p271 = por %p269, %p270
      %p272 = scmp.ne.s32.totalorder %s261, %s264
      %p273 = scmp.eq.s32.totalorder %s32, 3
      %p274 = por %p272, %p273
      %p275 = scmp.ne.s32.totalorder %s264, %s265
      %p276 = scmp.eq.s32.totalorder %s32, 0
      %p277 = por %p275, %p276
      %p278 = scmp.ne.s32.totalorder %s264, %s265
      %p279 = scmp.eq.s32.totalorder %s33, 3
      %p280 = por %p278, %p279
      %p282 = scmp.ne.s32.totalorder %s265, %s281
      %p283 = scmp.eq.s32.totalorder %s33, 0
      %p284 = por %p282, %p283
      %p285 = scmp.le.s32.totalorder 1, %s27
      %p286 = scmp.lt.s32.totalorder %s27, 5
      %p287 = pnand %p285, %p286
      %p288 = pneg %p287
      // Predicated region
      $region9: #{tpu_custom_call.1} parent=5 // pred_check
        _
      $region10: #{tpu_custom_call.1} parent=5 // pred_check_branch
        %290 = sbr.rel (%p287) target = $region12
      $region11: #{tpu_custom_call.1} parent=5 // pred_region
        %s291 = ssub.s32 %s27, 1
        // Predicated region
        $region13: #{tpu_custom_call.1} parent=11 // pred_check
          %p292 = pneg %p88
        $region14: #{tpu_custom_call.1} parent=11 // pred_check_branch
          %294 = sbr.rel (%p292) target = $region16
        $region15: #{tpu_custom_call.1} parent=11 // pred_region
          %s296 = ssub.s32 4096, 4096
          %297 = vsyncadd [#allocation6], %s296
          %s298 = sshll.u32 [#allocation5], 4
          %s299 = int_to_ptr.vmem [resolvable:$true] %s298
          %304 = dma.hbm_to_vmem [thread:$0]  %s1, 4096, %s299, [#allocation6], 128, 128, 8
        $region16: #{tpu_custom_call.1} parent=11 // pred_fallthru
          _
        // Predicated region
        $region17: #{tpu_custom_call.1} parent=11 // pred_check
          %p305 = pneg %p109
        $region18: #{tpu_custom_call.1} parent=11 // pred_check_branch
          %307 = sbr.rel (%p305) target = $region20
        $region19: #{tpu_custom_call.1} parent=11 // pred_region
          _
        $region20: #{tpu_custom_call.1} parent=11 // pred_fallthru
          _
        // Predicated region
        $region21: #{tpu_custom_call.1} parent=11 // pred_check
          %p308 = pneg %p130
        $region22: #{tpu_custom_call.1} parent=11 // pred_check_branch
          %310 = sbr.rel (%p308) target = $region24
        $region23: #{tpu_custom_call.1} parent=11 // pred_region
          %s312 = ssub.s32 4096, 4096
          %313 = vsyncadd [#allocation6], %s312
          %s314 = sshll.u32 [#allocation7], 4
          %s315 = int_to_ptr.vmem [resolvable:$true] %s314
          %320 = dma.hbm_to_vmem [thread:$0]  %s3, 4096, %s315, [#allocation6], 128, 128, 8
        $region24: #{tpu_custom_call.1} parent=11 // pred_fallthru
          _
        // Predicated region
        $region25: #{tpu_custom_call.1} parent=11 // pred_check
          %p321 = pneg %p151
        $region26: #{tpu_custom_call.1} parent=11 // pred_check_branch
          %323 = sbr.rel (%p321) target = $region28
        $region27: #{tpu_custom_call.1} parent=11 // pred_region
          _
        $region28: #{tpu_custom_call.1} parent=11 // pred_fallthru
          _
        // Predicated region
        $region29: #{tpu_custom_call.1} parent=11 // pred_check
          %p324 = pneg %p172
        $region30: #{tpu_custom_call.1} parent=11 // pred_check_branch
          %326 = sbr.rel (%p324) target = $region32
        $region31: #{tpu_custom_call.1} parent=11 // pred_region
          %s328 = ssub.s32 4096, 4096
          %329 = vsyncadd [#allocation9], %s328
          %s330 = sshll.u32 [#allocation8], 4
          %s331 = int_to_ptr.vmem [resolvable:$true] %s330
          %336 = dma.hbm_to_vmem [thread:$0]  %s5, 4096, %s331, [#allocation9], 128, 128, 8
        $region32: #{tpu_custom_call.1} parent=11 // pred_fallthru
          _
        // Predicated region
        $region33: #{tpu_custom_call.1} parent=11 // pred_check
          %p337 = pneg %p193
        $region34: #{tpu_custom_call.1} parent=11 // pred_check_branch
          %339 = sbr.rel (%p337) target = $region36
        $region35: #{tpu_custom_call.1} parent=11 // pred_region
          _
        $region36: #{tpu_custom_call.1} parent=11 // pred_fallthru
          _
      $region12: #{tpu_custom_call.1} parent=5 // pred_fallthru
        _
      %p340 = scmp.lt.s32.totalorder %s27, 4
      // Predicated region
      $region37: #{tpu_custom_call.1} parent=5 // pred_check
        %p341 = pneg %p340
      $region38: #{tpu_custom_call.1} parent=5 // pred_check_branch
        %343 = sbr.rel (%p341) target = $region40
      $region39: #{tpu_custom_call.1} parent=5 // pred_region
        // Predicated region
        $region41: #{tpu_custom_call.1} parent=39 // pred_check
          %p344 = pneg %p61
        $region42: #{tpu_custom_call.1} parent=39 // pred_check_branch
          %346 = sbr.rel (%p344) target = $region44
        $region43: #{tpu_custom_call.1} parent=39 // pred_region
          %s347 = sand.u32 %s51, 1
          %s348 = scalar_lea.sflag [#allocation3], %s347
          %s349 = sand.u32 %s51, 1
          %s350 = smul.addr %s349, 256
          %s351 = scalar_lea.vmem [#allocation2], %s350
          %s352 = smul.u32 16, %s35
          %s354 = ssub.s32 4096, 4096
          %355 = vsyncadd %s348, %s354
          %s356 = smul.addr %s352, 2
          %s357 = smul.addr %s34, 64
          %s358 = sadd.s32 %s356, %s357
          %s359 = smul.addr %s358, 128
          %s360 = scalar_lea.hbm %s0, %s359
          %s361 = sshll.u32 %s351, 4
          %s362 = int_to_ptr.vmem [resolvable:$true] %s361
          %367 = dma.hbm_to_vmem [thread:$0]  %s360, 4096, %s362, %s348, 256, 256, 16
        $region44: #{tpu_custom_call.1} parent=39 // pred_fallthru
          _
      $region40: #{tpu_custom_call.1} parent=5 // pred_fallthru
        _
      %p368 = scmp.le.s32.totalorder 1, %s27
      %p369 = scmp.lt.s32.totalorder %s27, 5
      %p370 = pnand %p368, %p369
      %p371 = pneg %p370
      // Predicated region
      $region45: #{tpu_custom_call.1} parent=5 // pred_check
        _
      $region46: #{tpu_custom_call.1} parent=5 // pred_check_branch
        %373 = sbr.rel (%p370) target = $region48
      $region47: #{tpu_custom_call.1} parent=5 // pred_region
        %s374 = ssub.s32 %s27, 1
        %s375 = sand.u32 %s54, 1
        %s376 = scalar_lea.sflag [#allocation3], %s375
        %s377 = sand.u32 %s54, 1
        %s378 = smul.addr %s377, 256
        %s379 = scalar_lea.vmem [#allocation2], %s378
        // Predicated region
        $region49: #{tpu_custom_call.1} parent=47 // pred_check
          %p380 = pneg %p67
        $region50: #{tpu_custom_call.1} parent=47 // pred_check_branch
          %382 = sbr.rel (%p380) target = $region52
        $region51: #{tpu_custom_call.1} parent=47 // pred_region
          %383 = dma.done %s376, 4096
        $region52: #{tpu_custom_call.1} parent=47 // pred_fallthru
          _
        // Predicated region
        $region53: #{tpu_custom_call.1} parent=47 // pred_check
          %p384 = pneg %p88
        $region54: #{tpu_custom_call.1} parent=47 // pred_check_branch
          %386 = sbr.rel (%p384) target = $region56
        $region55: #{tpu_custom_call.1} parent=47 // pred_region
          %387 = dma.done [#allocation6], 4096
        $region56: #{tpu_custom_call.1} parent=47 // pred_fallthru
          _
        // Predicated region
        $region57: #{tpu_custom_call.1} parent=47 // pred_check
          %p388 = pneg %p130
        $region58: #{tpu_custom_call.1} parent=47 // pred_check_branch
          %390 = sbr.rel (%p388) target = $region60
        $region59: #{tpu_custom_call.1} parent=47 // pred_region
          %391 = dma.done [#allocation6], 4096
        $region60: #{tpu_custom_call.1} parent=47 // pred_fallthru
          _
        // Predicated region
        $region61: #{tpu_custom_call.1} parent=47 // pred_check
          %p392 = pneg %p172
        $region62: #{tpu_custom_call.1} parent=47 // pred_check_branch
          %394 = sbr.rel (%p392) target = $region64
        $region63: #{tpu_custom_call.1} parent=47 // pred_region
          %395 = dma.done [#allocation9], 4096
        $region64: #{tpu_custom_call.1} parent=47 // pred_fallthru
          _
        %s396 = sand.u32 %s54, 1
        %s397 = scalar_lea.sflag [#allocation3], %s396
        %s398 = sand.u32 %s54, 1
        %s399 = smul.addr %s398, 256
        %s400 = scalar_lea.vmem [#allocation2], %s399
        %p401 = pneg %p67
        %p402 = pneg %p64
        %p403 = pneg %p88
        %p404 = pneg %p85
        %p405 = pneg %p109
        %p406 = pneg %p106
        %p407 = pneg %p130
        %p408 = pneg %p127
        %p409 = pneg %p151
        %p410 = pneg %p148
        %p411 = pneg %p172
        %p412 = pneg %p169
        %p413 = pneg %p193
        %p414 = pneg %p190
        %p415 = pneg %p221
        %p416 = pneg %p218
        %s417 = sand.u32 %s208, 1
        %s418 = scalar_lea.sflag [#allocation4], %s417
        %s419 = sand.u32 %s208, 1
        %s420 = smul.addr %s419, 128
        %s421 = scalar_lea.vmem [#allocation10], %s420
        %p422 = pneg %p249
        %p423 = pneg %p246
        %s424 = sand.u32 %s32, 1
        %s425 = scalar_lea.sflag [#allocation12], %s424
        %s426 = sand.u32 %s236, 1
        %s427 = smul.addr %s426, 128
        %s428 = scalar_lea.vmem [#allocation11], %s427
        %p429 = pneg %p277
        %p430 = pneg %p274
        %s431 = sand.u32 %s32, 1
        %s432 = scalar_lea.sflag [#allocation12], %s431
        %s433 = sand.u32 %s264, 1
        %s434 = smul.addr %s433, 128
        %s435 = scalar_lea.vmem [#allocation13], %s434
        %s436 = smul.u32 16, %s37
        %s437 = smul.u32 16, %s37
        %s438 = smul.u32 16, %s37
        %s439 = smul.u32 16, %s37
        %v440 = vld [vmem:[%s379] sm:$0xff]
        %v441 = vld [vmem:[%s379 + $0x8] sm:$0xff]
        %v442 = vld [vmem:[%s379 + $0x10] sm:$0xff]
        %v443 = vld [vmem:[%s379 + $0x18] sm:$0xff]
        %v444 = vld [vmem:[%s379 + $0x20] sm:$0xff]
        %v445 = vld [vmem:[%s379 + $0x28] sm:$0xff]
        %v446 = vld [vmem:[%s379 + $0x30] sm:$0xff]
        %v447 = vld [vmem:[%s379 + $0x38] sm:$0xff]
        %v448 = vld [vmem:[%s379 + $0x40] sm:$0xff]
        %v449 = vld [vmem:[%s379 + $0x48] sm:$0xff]
        %v450 = vld [vmem:[%s379 + $0x50] sm:$0xff]
        %v451 = vld [vmem:[%s379 + $0x58] sm:$0xff]
        %v452 = vld [vmem:[%s379 + $0x60] sm:$0xff]
        %v453 = vld [vmem:[%s379 + $0x68] sm:$0xff]
        %v454 = vld [vmem:[%s379 + $0x70] sm:$0xff]
        %v455 = vld [vmem:[%s379 + $0x78] sm:$0xff]
        %v456 = vld [vmem:[%s379 + $0x80] sm:$0xff]
        %v457 = vld [vmem:[%s379 + $0x88] sm:$0xff]
        %v458 = vld [vmem:[%s379 + $0x90] sm:$0xff]
        %v459 = vld [vmem:[%s379 + $0x98] sm:$0xff]
        %v460 = vld [vmem:[%s379 + $0xa0] sm:$0xff]
        %v461 = vld [vmem:[%s379 + $0xa8] sm:$0xff]
        %v462 = vld [vmem:[%s379 + $0xb0] sm:$0xff]
        %v463 = vld [vmem:[%s379 + $0xb8] sm:$0xff]
        %v464 = vld [vmem:[%s379 + $0xc0] sm:$0xff]
        %v465 = vld [vmem:[%s379 + $0xc8] sm:$0xff]
        %v466 = vld [vmem:[%s379 + $0xd0] sm:$0xff]
        %v467 = vld [vmem:[%s379 + $0xd8] sm:$0xff]
        %v468 = vld [vmem:[%s379 + $0xe0] sm:$0xff]
        %v469 = vld [vmem:[%s379 + $0xe8] sm:$0xff]
        %v470 = vld [vmem:[%s379 + $0xf0] sm:$0xff]
        %v471 = vld [vmem:[%s379 + $0xf8] sm:$0xff]
        %v472 = vadd.f32 %v440, %v441
        %473 = vadd.xlane.f32.xlu0 %v472
        %v474 = vpop.xlane.xlu0 %473
        %v475 = vadd.f32 %v442, %v443
        %476 = vadd.xlane.f32.xlu0 %v475
        %v477 = vpop.xlane.xlu0 %476
        %v478 = vadd.f32 %v444, %v445
        %479 = vadd.xlane.f32.xlu0 %v478
        %v480 = vpop.xlane.xlu0 %479
        %v481 = vadd.f32 %v446, %v447
        %482 = vadd.xlane.f32.xlu0 %v481
        %v483 = vpop.xlane.xlu0 %482
        %v484 = vadd.f32 %v448, %v449
        %485 = vadd.xlane.f32.xlu0 %v484
        %v486 = vpop.xlane.xlu0 %485
        %v487 = vadd.f32 %v450, %v451
        %488 = vadd.xlane.f32.xlu0 %v487
        %v489 = vpop.xlane.xlu0 %488
        %v490 = vadd.f32 %v452, %v453
        %491 = vadd.xlane.f32.xlu0 %v490
        %v492 = vpop.xlane.xlu0 %491
        %v493 = vadd.f32 %v454, %v455
        %494 = vadd.xlane.f32.xlu0 %v493
        %v495 = vpop.xlane.xlu0 %494
        %v496 = vadd.f32 %v456, %v457
        %497 = vadd.xlane.f32.xlu0 %v496
        %v498 = vpop.xlane.xlu0 %497
        %v499 = vadd.f32 %v458, %v459
        %500 = vadd.xlane.f32.xlu0 %v499
        %v501 = vpop.xlane.xlu0 %500
        %v502 = vadd.f32 %v460, %v461
        %503 = vadd.xlane.f32.xlu0 %v502
        %v504 = vpop.xlane.xlu0 %503
        %v505 = vadd.f32 %v462, %v463
        %506 = vadd.xlane.f32.xlu0 %v505
        %v507 = vpop.xlane.xlu0 %506
        %v508 = vadd.f32 %v464, %v465
        %509 = vadd.xlane.f32.xlu0 %v508
        %v510 = vpop.xlane.xlu0 %509
        %v511 = vadd.f32 %v466, %v467
        %512 = vadd.xlane.f32.xlu0 %v511
        %v513 = vpop.xlane.xlu0 %512
        %v514 = vadd.f32 %v468, %v469
        %515 = vadd.xlane.f32.xlu0 %v514
        %v516 = vpop.xlane.xlu0 %515
        %v517 = vadd.f32 %v470, %v471
        %518 = vadd.xlane.f32.xlu0 %v517
        %v519 = vpop.xlane.xlu0 %518
        %v520 = vmul.f32 %v440, %v440
        %v521 = vmul.f32 %v441, %v441
        %v522 = vmul.f32 %v442, %v442
        %v523 = vmul.f32 %v443, %v443
        %v524 = vmul.f32 %v444, %v444
        %v525 = vmul.f32 %v445, %v445
        %v526 = vmul.f32 %v446, %v446
        %v527 = vmul.f32 %v447, %v447
        %v528 = vmul.f32 %v448, %v448
        %v529 = vmul.f32 %v449, %v449
        %v530 = vmul.f32 %v450, %v450
        %v531 = vmul.f32 %v451, %v451
        %v532 = vmul.f32 %v452, %v452
        %v533 = vmul.f32 %v453, %v453
        %v534 = vmul.f32 %v454, %v454
        %v535 = vmul.f32 %v455, %v455
        %v536 = vmul.f32 %v456, %v456
        %v537 = vmul.f32 %v457, %v457
        %v538 = vmul.f32 %v458, %v458
        %v539 = vmul.f32 %v459, %v459
        %v540 = vmul.f32 %v460, %v460
        %v541 = vmul.f32 %v461, %v461
        %v542 = vmul.f32 %v462, %v462
        %v543 = vmul.f32 %v463, %v463
        %v544 = vmul.f32 %v464, %v464
        %v545 = vmul.f32 %v465, %v465
        %v546 = vmul.f32 %v466, %v466
        %v547 = vmul.f32 %v467, %v467
        %v548 = vmul.f32 %v468, %v468
        %v549 = vmul.f32 %v469, %v469
        %v550 = vmul.f32 %v470, %v470
        %v551 = vmul.f32 %v471, %v471
        %v552 = vadd.f32 %v520, %v521
        %553 = vadd.xlane.f32.xlu0 %v552
        %v554 = vpop.xlane.xlu0 %553
        %v555 = vadd.f32 %v522, %v523
        %556 = vadd.xlane.f32.xlu0 %v555
        %v557 = vpop.xlane.xlu0 %556
        %v558 = vadd.f32 %v524, %v525
        %559 = vadd.xlane.f32.xlu0 %v558
        %v560 = vpop.xlane.xlu0 %559
        %v561 = vadd.f32 %v526, %v527
        %562 = vadd.xlane.f32.xlu0 %v561
        %v563 = vpop.xlane.xlu0 %562
        %v564 = vadd.f32 %v528, %v529
        %565 = vadd.xlane.f32.xlu0 %v564
        %v566 = vpop.xlane.xlu0 %565
        %v567 = vadd.f32 %v530, %v531
        %568 = vadd.xlane.f32.xlu0 %v567
        %v569 = vpop.xlane.xlu0 %568
        %v570 = vadd.f32 %v532, %v533
        %571 = vadd.xlane.f32.xlu0 %v570
        %v572 = vpop.xlane.xlu0 %571
        %v573 = vadd.f32 %v534, %v535
        %574 = vadd.xlane.f32.xlu0 %v573
        %v575 = vpop.xlane.xlu0 %574
        %v576 = vadd.f32 %v536, %v537
        %577 = vadd.xlane.f32.xlu0 %v576
        %v578 = vpop.xlane.xlu0 %577
        %v579 = vadd.f32 %v538, %v539
        %580 = vadd.xlane.f32.xlu0 %v579
        %v581 = vpop.xlane.xlu0 %580
        %v582 = vadd.f32 %v540, %v541
        %583 = vadd.xlane.f32.xlu0 %v582
        %v584 = vpop.xlane.xlu0 %583
        %v585 = vadd.f32 %v542, %v543
        %586 = vadd.xlane.f32.xlu0 %v585
        %v587 = vpop.xlane.xlu0 %586
        %v588 = vadd.f32 %v544, %v545
        %589 = vadd.xlane.f32.xlu0 %v588
        %v590 = vpop.xlane.xlu0 %589
        %v591 = vadd.f32 %v546, %v547
        %592 = vadd.xlane.f32.xlu0 %v591
        %v593 = vpop.xlane.xlu0 %592
        %v594 = vadd.f32 %v548, %v549
        %595 = vadd.xlane.f32.xlu0 %v594
        %v596 = vpop.xlane.xlu0 %595
        %v597 = vadd.f32 %v550, %v551
        %598 = vadd.xlane.f32.xlu0 %v597
        %v599 = vpop.xlane.xlu0 %598
        %v600 = vmul.f32 %v474, 0.00390625
        %v601 = vmul.f32 %v477, 0.00390625
        %v602 = vmul.f32 %v480, 0.00390625
        %v603 = vmul.f32 %v483, 0.00390625
        %v604 = vmul.f32 %v486, 0.00390625
        %v605 = vmul.f32 %v489, 0.00390625
        %v606 = vmul.f32 %v492, 0.00390625
        %v607 = vmul.f32 %v495, 0.00390625
        %v608 = vmul.f32 %v498, 0.00390625
        %v609 = vmul.f32 %v501, 0.00390625
        %v610 = vmul.f32 %v504, 0.00390625
        %v611 = vmul.f32 %v507, 0.00390625
        %v612 = vmul.f32 %v510, 0.00390625
        %v613 = vmul.f32 %v513, 0.00390625
        %v614 = vmul.f32 %v516, 0.00390625
        %v615 = vmul.f32 %v519, 0.00390625
        %v616 = vmul.f32 %v600, 256.0
        %v617 = vmul.f32 %v601, 256.0
        %v618 = vmul.f32 %v602, 256.0
        %v619 = vmul.f32 %v603, 256.0
        %v620 = vmul.f32 %v604, 256.0
        %v621 = vmul.f32 %v605, 256.0
        %v622 = vmul.f32 %v606, 256.0
        %v623 = vmul.f32 %v607, 256.0
        %v624 = vmul.f32 %v608, 256.0
        %v625 = vmul.f32 %v609, 256.0
        %v626 = vmul.f32 %v610, 256.0
        %v627 = vmul.f32 %v611, 256.0
        %v628 = vmul.f32 %v612, 256.0
        %v629 = vmul.f32 %v613, 256.0
        %v630 = vmul.f32 %v614, 256.0
        %v631 = vmul.f32 %v615, 256.0
        %v632 = vmul.f32 %v616, %v600
        %v633 = vmul.f32 %v617, %v601
        %v634 = vmul.f32 %v618, %v602
        %v635 = vmul.f32 %v619, %v603
        %v636 = vmul.f32 %v620, %v604
        %v637 = vmul.f32 %v621, %v605
        %v638 = vmul.f32 %v622, %v606
        %v639 = vmul.f32 %v623, %v607
        %v640 = vmul.f32 %v624, %v608
        %v641 = vmul.f32 %v625, %v609
        %v642 = vmul.f32 %v626, %v610
        %v643 = vmul.f32 %v627, %v611
        %v644 = vmul.f32 %v628, %v612
        %v645 = vmul.f32 %v629, %v613
        %v646 = vmul.f32 %v630, %v614
        %v647 = vmul.f32 %v631, %v615
        %v648 = vsub.f32 %v554, %v632
        %v649 = vsub.f32 %v557, %v633
        %v650 = vsub.f32 %v560, %v634
        %v651 = vsub.f32 %v563, %v635
        %v652 = vsub.f32 %v566, %v636
        %v653 = vsub.f32 %v569, %v637
        %v654 = vsub.f32 %v572, %v638
        %v655 = vsub.f32 %v575, %v639
        %v656 = vsub.f32 %v578, %v640
        %v657 = vsub.f32 %v581, %v641
        %v658 = vsub.f32 %v584, %v642
        %v659 = vsub.f32 %v587, %v643
        %v660 = vsub.f32 %v590, %v644
        %v661 = vsub.f32 %v593, %v645
        %v662 = vsub.f32 %v596, %v646
        %v663 = vsub.f32 %v599, %v647
        %v664 = vmul.f32 %v648, 0.003921569
        %v665 = vmul.f32 %v649, 0.003921569
        %v666 = vmul.f32 %v650, 0.003921569
        %v667 = vmul.f32 %v651, 0.003921569
        %v668 = vmul.f32 %v652, 0.003921569
        %v669 = vmul.f32 %v653, 0.003921569
        %v670 = vmul.f32 %v654, 0.003921569
        %v671 = vmul.f32 %v655, 0.003921569
        %v672 = vmul.f32 %v656, 0.003921569
        %v673 = vmul.f32 %v657, 0.003921569
        %v674 = vmul.f32 %v658, 0.003921569
        %v675 = vmul.f32 %v659, 0.003921569
        %v676 = vmul.f32 %v660, 0.003921569
        %v677 = vmul.f32 %v661, 0.003921569
        %v678 = vmul.f32 %v662, 0.003921569
        %v679 = vmul.f32 %v663, 0.003921569
        %v680 = vmax.f32 %v664, 0.0
        %v681 = vmax.f32 %v665, 0.0
        %v682 = vmax.f32 %v666, 0.0
        %v683 = vmax.f32 %v667, 0.0
        %v684 = vmax.f32 %v668, 0.0
        %v685 = vmax.f32 %v669, 0.0
        %v686 = vmax.f32 %v670, 0.0
        %v687 = vmax.f32 %v671, 0.0
        %v688 = vmax.f32 %v672, 0.0
        %v689 = vmax.f32 %v673, 0.0
        %v690 = vmax.f32 %v674, 0.0
        %v691 = vmax.f32 %v675, 0.0
        %v692 = vmax.f32 %v676, 0.0
        %v693 = vmax.f32 %v677, 0.0
        %v694 = vmax.f32 %v678, 0.0
        %v695 = vmax.f32 %v679, 0.0
        %v696 = vrsqrt.pop %v680
        %v697 = vmul.f32 %v680, %v696
        %vm698 = vcmp.eq.f32.partialorder %v680, inf
        %v699 = vsel %vm698, %v680, %v697
        %vm700 = vcmp.eq.f32.partialorder %v680, 0.0
        %v701 = vand.u32 %v680, 2147483648
        %v702 = vsel %vm700, %v701, %v699
        %v703 = vrsqrt.pop %v681
        %v704 = vmul.f32 %v681, %v703
        %vm705 = vcmp.eq.f32.partialorder %v681, inf
        %v706 = vsel %vm705, %v681, %v704
        %vm707 = vcmp.eq.f32.partialorder %v681, 0.0
        %v708 = vand.u32 %v681, 2147483648
        %v709 = vsel %vm707, %v708, %v706
        %v710 = vrsqrt.pop %v682
        %v711 = vmul.f32 %v682, %v710
        %vm712 = vcmp.eq.f32.partialorder %v682, inf
        %v713 = vsel %vm712, %v682, %v711
        %vm714 = vcmp.eq.f32.partialorder %v682, 0.0
        %v715 = vand.u32 %v682, 2147483648
        %v716 = vsel %vm714, %v715, %v713
        %v717 = vrsqrt.pop %v683
        %v718 = vmul.f32 %v683, %v717
        %vm719 = vcmp.eq.f32.partialorder %v683, inf
        %v720 = vsel %vm719, %v683, %v718
        %vm721 = vcmp.eq.f32.partialorder %v683, 0.0
        %v722 = vand.u32 %v683, 2147483648
        %v723 = vsel %vm721, %v722, %v720
        %v724 = vrsqrt.pop %v684
        %v725 = vmul.f32 %v684, %v724
        %vm726 = vcmp.eq.f32.partialorder %v684, inf
        %v727 = vsel %vm726, %v684, %v725
        %vm728 = vcmp.eq.f32.partialorder %v684, 0.0
        %v729 = vand.u32 %v684, 2147483648
        %v730 = vsel %vm728, %v729, %v727
        %v731 = vrsqrt.pop %v685
        %v732 = vmul.f32 %v685, %v731
        %vm733 = vcmp.eq.f32.partialorder %v685, inf
        %v734 = vsel %vm733, %v685, %v732
        %vm735 = vcmp.eq.f32.partialorder %v685, 0.0
        %v736 = vand.u32 %v685, 2147483648
        %v737 = vsel %vm735, %v736, %v734
        %v738 = vrsqrt.pop %v686
        %v739 = vmul.f32 %v686, %v738
        %vm740 = vcmp.eq.f32.partialorder %v686, inf
        %v741 = vsel %vm740, %v686, %v739
        %vm742 = vcmp.eq.f32.partialorder %v686, 0.0
        %v743 = vand.u32 %v686, 2147483648
        %v744 = vsel %vm742, %v743, %v741
        %v745 = vrsqrt.pop %v687
        %v746 = vmul.f32 %v687, %v745
        %vm747 = vcmp.eq.f32.partialorder %v687, inf
        %v748 = vsel %vm747, %v687, %v746
        %vm749 = vcmp.eq.f32.partialorder %v687, 0.0
        %v750 = vand.u32 %v687, 2147483648
        %v751 = vsel %vm749, %v750, %v748
        %v752 = vrsqrt.pop %v688
        %v753 = vmul.f32 %v688, %v752
        %vm754 = vcmp.eq.f32.partialorder %v688, inf
        %v755 = vsel %vm754, %v688, %v753
        %vm756 = vcmp.eq.f32.partialorder %v688, 0.0
        %v757 = vand.u32 %v688, 2147483648
        %v758 = vsel %vm756, %v757, %v755
        %v759 = vrsqrt.pop %v689
        %v760 = vmul.f32 %v689, %v759
        %vm761 = vcmp.eq.f32.partialorder %v689, inf
        %v762 = vsel %vm761, %v689, %v760
        %vm763 = vcmp.eq.f32.partialorder %v689, 0.0
        %v764 = vand.u32 %v689, 2147483648
        %v765 = vsel %vm763, %v764, %v762
        %v766 = vrsqrt.pop %v690
        %v767 = vmul.f32 %v690, %v766
        %vm768 = vcmp.eq.f32.partialorder %v690, inf
        %v769 = vsel %vm768, %v690, %v767
        %vm770 = vcmp.eq.f32.partialorder %v690, 0.0
        %v771 = vand.u32 %v690, 2147483648
        %v772 = vsel %vm770, %v771, %v769
        %v773 = vrsqrt.pop %v691
        %v774 = vmul.f32 %v691, %v773
        %vm775 = vcmp.eq.f32.partialorder %v691, inf
        %v776 = vsel %vm775, %v691, %v774
        %vm777 = vcmp.eq.f32.partialorder %v691, 0.0
        %v778 = vand.u32 %v691, 2147483648
        %v779 = vsel %vm777, %v778, %v776
        %v780 = vrsqrt.pop %v692
        %v781 = vmul.f32 %v692, %v780
        %vm782 = vcmp.eq.f32.partialorder %v692, inf
        %v783 = vsel %vm782, %v692, %v781
        %vm784 = vcmp.eq.f32.partialorder %v692, 0.0
        %v785 = vand.u32 %v692, 2147483648
        %v786 = vsel %vm784, %v785, %v783
        %v787 = vrsqrt.pop %v693
        %v788 = vmul.f32 %v693, %v787
        %vm789 = vcmp.eq.f32.partialorder %v693, inf
        %v790 = vsel %vm789, %v693, %v788
        %vm791 = vcmp.eq.f32.partialorder %v693, 0.0
        %v792 = vand.u32 %v693, 2147483648
        %v793 = vsel %vm791, %v792, %v790
        %v794 = vrsqrt.pop %v694
        %v795 = vmul.f32 %v694, %v794
        %vm796 = vcmp.eq.f32.partialorder %v694, inf
        %v797 = vsel %vm796, %v694, %v795
        %vm798 = vcmp.eq.f32.partialorder %v694, 0.0
        %v799 = vand.u32 %v694, 2147483648
        %v800 = vsel %vm798, %v799, %v797
        %v801 = vrsqrt.pop %v695
        %v802 = vmul.f32 %v695, %v801
        %vm803 = vcmp.eq.f32.partialorder %v695, inf
        %v804 = vsel %vm803, %v695, %v802
        %vm805 = vcmp.eq.f32.partialorder %v695, 0.0
        %v806 = vand.u32 %v695, 2147483648
        %v807 = vsel %vm805, %v806, %v804
        %v808 = vsub.f32 %v440, %v600
        %v809 = vsub.f32 %v441, %v600
        %v810 = vsub.f32 %v442, %v601
        %v811 = vsub.f32 %v443, %v601
        %v812 = vsub.f32 %v444, %v602
        %v813 = vsub.f32 %v445, %v602
        %v814 = vsub.f32 %v446, %v603
        %v815 = vsub.f32 %v447, %v603
        %v816 = vsub.f32 %v448, %v604
        %v817 = vsub.f32 %v449, %v604
        %v818 = vsub.f32 %v450, %v605
        %v819 = vsub.f32 %v451, %v605
        %v820 = vsub.f32 %v452, %v606
        %v821 = vsub.f32 %v453, %v606
        %v822 = vsub.f32 %v454, %v607
        %v823 = vsub.f32 %v455, %v607
        %v824 = vsub.f32 %v456, %v608
        %v825 = vsub.f32 %v457, %v608
        %v826 = vsub.f32 %v458, %v609
        %v827 = vsub.f32 %v459, %v609
        %v828 = vsub.f32 %v460, %v610
        %v829 = vsub.f32 %v461, %v610
        %v830 = vsub.f32 %v462, %v611
        %v831 = vsub.f32 %v463, %v611
        %v832 = vsub.f32 %v464, %v612
        %v833 = vsub.f32 %v465, %v612
        %v834 = vsub.f32 %v466, %v613
        %v835 = vsub.f32 %v467, %v613
        %v836 = vsub.f32 %v468, %v614
        %v837 = vsub.f32 %v469, %v614
        %v838 = vsub.f32 %v470, %v615
        %v839 = vsub.f32 %v471, %v615
        %v840 = vadd.f32 %v702, 1e-06
        %v841 = vadd.f32 %v709, 1e-06
        %v842 = vadd.f32 %v716, 1e-06
        %v843 = vadd.f32 %v723, 1e-06
        %v844 = vadd.f32 %v730, 1e-06
        %v845 = vadd.f32 %v737, 1e-06
        %v846 = vadd.f32 %v744, 1e-06
        %v847 = vadd.f32 %v751, 1e-06
        %v848 = vadd.f32 %v758, 1e-06
        %v849 = vadd.f32 %v765, 1e-06
        %v850 = vadd.f32 %v772, 1e-06
        %v851 = vadd.f32 %v779, 1e-06
        %v852 = vadd.f32 %v786, 1e-06
        %v853 = vadd.f32 %v793, 1e-06
        %v854 = vadd.f32 %v800, 1e-06
        %v855 = vadd.f32 %v807, 1e-06
        %v856 = vrcp.pop %v840
        %v857 = vmul.f32 %v808, %v856
        %v858 = vmul.f32 %v809, %v856
        %v859 = vrcp.pop %v841
        %v860 = vmul.f32 %v810, %v859
        %v861 = vmul.f32 %v811, %v859
        %v862 = vrcp.pop %v842
        %v863 = vmul.f32 %v812, %v862
        %v864 = vmul.f32 %v813, %v862
        %v865 = vrcp.pop %v843
        %v866 = vmul.f32 %v814, %v865
        %v867 = vmul.f32 %v815, %v865
        %v868 = vrcp.pop %v844
        %v869 = vmul.f32 %v816, %v868
        %v870 = vmul.f32 %v817, %v868
        %v871 = vrcp.pop %v845
        %v872 = vmul.f32 %v818, %v871
        %v873 = vmul.f32 %v819, %v871
        %v874 = vrcp.pop %v846
        %v875 = vmul.f32 %v820, %v874
        %v876 = vmul.f32 %v821, %v874
        %v877 = vrcp.pop %v847
        %v878 = vmul.f32 %v822, %v877
        %v879 = vmul.f32 %v823, %v877
        %v880 = vrcp.pop %v848
        %v881 = vmul.f32 %v824, %v880
        %v882 = vmul.f32 %v825, %v880
        %v883 = vrcp.pop %v849
        %v884 = vmul.f32 %v826, %v883
        %v885 = vmul.f32 %v827, %v883
        %v886 = vrcp.pop %v850
        %v887 = vmul.f32 %v828, %v886
        %v888 = vmul.f32 %v829, %v886
        %v889 = vrcp.pop %v851
        %v890 = vmul.f32 %v830, %v889
        %v891 = vmul.f32 %v831, %v889
        %v892 = vrcp.pop %v852
        %v893 = vmul.f32 %v832, %v892
        %v894 = vmul.f32 %v833, %v892
        %v895 = vrcp.pop %v853
        %v896 = vmul.f32 %v834, %v895
        %v897 = vmul.f32 %v835, %v895
        %v898 = vrcp.pop %v854
        %v899 = vmul.f32 %v836, %v898
        %v900 = vmul.f32 %v837, %v898
        %v901 = vrcp.pop %v855
        %v902 = vmul.f32 %v838, %v901
        %v903 = vmul.f32 %v839, %v901
        %v904 = vpack.c.bf16 %v860, %v857
        %v905 = vpack.c.bf16 %v861, %v858
        %v906 = vpack.c.bf16 %v866, %v863
        %v907 = vpack.c.bf16 %v867, %v864
        %v908 = vpack.c.bf16 %v872, %v869
        %v909 = vpack.c.bf16 %v873, %v870
        %v910 = vpack.c.bf16 %v878, %v875
        %v911 = vpack.c.bf16 %v879, %v876
        %v912 = vpack.c.bf16 %v884, %v881
        %v913 = vpack.c.bf16 %v885, %v882
        %v914 = vpack.c.bf16 %v890, %v887
        %v915 = vpack.c.bf16 %v891, %v888
        %v916 = vpack.c.bf16 %v896, %v893
        %v917 = vpack.c.bf16 %v897, %v894
        %v918 = vpack.c.bf16 %v902, %v899
        %v919 = vpack.c.bf16 %v903, %v900
        %v920 = vld [vmem:[#allocation5] sm:$0xff]
        %v921 = vld [vmem:[#allocation5 + $0x8] sm:$0xff]
        %v922 = vld [vmem:[#allocation5 + $0x10] sm:$0xff]
        %v923 = vld [vmem:[#allocation5 + $0x18] sm:$0xff]
        %v924 = vld [vmem:[#allocation5 + $0x20] sm:$0xff]
        %v925 = vld [vmem:[#allocation5 + $0x28] sm:$0xff]
        %v926 = vld [vmem:[#allocation5 + $0x30] sm:$0xff]
        %v927 = vld [vmem:[#allocation5 + $0x38] sm:$0xff]
        %v928 = vld [vmem:[#allocation5 + $0x40] sm:$0xff]
        %v929 = vld [vmem:[#allocation5 + $0x48] sm:$0xff]
        %v930 = vld [vmem:[#allocation5 + $0x50] sm:$0xff]
        %v931 = vld [vmem:[#allocation5 + $0x58] sm:$0xff]
        %v932 = vld [vmem:[#allocation5 + $0x60] sm:$0xff]
        %v933 = vld [vmem:[#allocation5 + $0x68] sm:$0xff]
        %v934 = vld [vmem:[#allocation5 + $0x70] sm:$0xff]
        %v935 = vld [vmem:[#allocation5 + $0x78] sm:$0xff]
        %v936 = vld [vmem:[#allocation5 + $0x80] sm:$0xff]
        %v937 = vld [vmem:[#allocation5 + $0x88] sm:$0xff]
        %v938 = vld [vmem:[#allocation5 + $0x90] sm:$0xff]
        %v939 = vld [vmem:[#allocation5 + $0x98] sm:$0xff]
        %v940 = vld [vmem:[#allocation5 + $0xa0] sm:$0xff]
        %v941 = vld [vmem:[#allocation5 + $0xa8] sm:$0xff]
        %v942 = vld [vmem:[#allocation5 + $0xb0] sm:$0xff]
        %v943 = vld [vmem:[#allocation5 + $0xb8] sm:$0xff]
        %v944 = vld [vmem:[#allocation5 + $0xc0] sm:$0xff]
        %v945 = vld [vmem:[#allocation5 + $0xc8] sm:$0xff]
        %v946 = vld [vmem:[#allocation5 + $0xd0] sm:$0xff]
        %v947 = vld [vmem:[#allocation5 + $0xd8] sm:$0xff]
        %v948 = vld [vmem:[#allocation5 + $0xe0] sm:$0xff]
        %v949 = vld [vmem:[#allocation5 + $0xe8] sm:$0xff]
        %v950 = vld [vmem:[#allocation5 + $0xf0] sm:$0xff]
        %v951 = vld [vmem:[#allocation5 + $0xf8] sm:$0xff]
        %v952 = vld [vmem:[%s2] sm:$0x3]
        %v954 = vlaneseq
        %v955 = vshrl.u32 %v954, 7
        %v956 = vsub.s32 0, %v955
        %v957 = vrot.slane %v952, %v956
        %v958 = vlaneseq
        %v959 = vshrl.u32 %v958, 7
        %v960 = vsub.s32 1, %v959
        %v961 = vrot.slane %v952, %v960
        %v996 = vunpack.c.l.b16 %v920
        %v997 = vunpack.c.h.b16 %v920
        %v998 = vunpack.c.l.b16 %v921
        %v999 = vunpack.c.h.b16 %v921
        %v1000 = vunpack.c.l.b16 %v922
        %v1001 = vunpack.c.h.b16 %v922
        %v1002 = vunpack.c.l.b16 %v923
        %v1003 = vunpack.c.h.b16 %v923
        %v1004 = vunpack.c.l.b16 %v924
        %v1005 = vunpack.c.h.b16 %v924
        %v1006 = vunpack.c.l.b16 %v925
        %v1007 = vunpack.c.h.b16 %v925
        %v1008 = vunpack.c.l.b16 %v926
        %v1009 = vunpack.c.h.b16 %v926
        %v1010 = vunpack.c.l.b16 %v927
        %v1011 = vunpack.c.h.b16 %v927
        %v1012 = vunpack.c.l.b16 %v928
        %v1013 = vunpack.c.h.b16 %v928
        %v1014 = vunpack.c.l.b16 %v929
        %v1015 = vunpack.c.h.b16 %v929
        %v1016 = vunpack.c.l.b16 %v930
        %v1017 = vunpack.c.h.b16 %v930
        %v1018 = vunpack.c.l.b16 %v931
        %v1019 = vunpack.c.h.b16 %v931
        %v1020 = vunpack.c.l.b16 %v932
        %v1021 = vunpack.c.h.b16 %v932
        %v1022 = vunpack.c.l.b16 %v933
        %v1023 = vunpack.c.h.b16 %v933
        %v1024 = vunpack.c.l.b16 %v934
        %v1025 = vunpack.c.h.b16 %v934
        %v1026 = vunpack.c.l.b16 %v935
        %v1027 = vunpack.c.h.b16 %v935
        %v1028 = vunpack.c.l.b16 %v936
        %v1029 = vunpack.c.h.b16 %v936
        %v1030 = vunpack.c.l.b16 %v937
        %v1031 = vunpack.c.h.b16 %v937
        %v1032 = vunpack.c.l.b16 %v938
        %v1033 = vunpack.c.h.b16 %v938
        %v1034 = vunpack.c.l.b16 %v939
        %v1035 = vunpack.c.h.b16 %v939
        %v1036 = vunpack.c.l.b16 %v940
        %v1037 = vunpack.c.h.b16 %v940
        %v1038 = vunpack.c.l.b16 %v941
        %v1039 = vunpack.c.h.b16 %v941
        %v1040 = vunpack.c.l.b16 %v942
        %v1041 = vunpack.c.h.b16 %v942
        %v1042 = vunpack.c.l.b16 %v943
        %v1043 = vunpack.c.h.b16 %v943
        %v1044 = vunpack.c.l.b16 %v944
        %v1045 = vunpack.c.h.b16 %v944
        %v1046 = vunpack.c.l.b16 %v945
        %v1047 = vunpack.c.h.b16 %v945
        %v1048 = vunpack.c.l.b16 %v946
        %v1049 = vunpack.c.h.b16 %v946
        %v1050 = vunpack.c.l.b16 %v947
        %v1051 = vunpack.c.h.b16 %v947
        %v1052 = vunpack.c.l.b16 %v948
        %v1053 = vunpack.c.h.b16 %v948
        %v1054 = vunpack.c.l.b16 %v949
        %v1055 = vunpack.c.h.b16 %v949
        %v1056 = vunpack.c.l.b16 %v950
        %v1057 = vunpack.c.h.b16 %v950
        %v1058 = vunpack.c.l.b16 %v951
        %v1059 = vunpack.c.h.b16 %v951
        %v1060 = vpack.c.b16 %v998, %v996
        %v1061 = vpack.c.b16 %v999, %v997
        %v1062 = vpack.c.b16 %v1002, %v1000
        %v1063 = vpack.c.b16 %v1003, %v1001
        %v1064 = vpack.c.b16 %v1006, %v1004
        %v1065 = vpack.c.b16 %v1007, %v1005
        %v1066 = vpack.c.b16 %v1010, %v1008
        %v1067 = vpack.c.b16 %v1011, %v1009
        %v1068 = vpack.c.b16 %v1014, %v1012
        %v1069 = vpack.c.b16 %v1015, %v1013
        %v1070 = vpack.c.b16 %v1018, %v1016
        %v1071 = vpack.c.b16 %v1019, %v1017
        %v1072 = vpack.c.b16 %v1022, %v1020
        %v1073 = vpack.c.b16 %v1023, %v1021
        %v1074 = vpack.c.b16 %v1026, %v1024
        %v1075 = vpack.c.b16 %v1027, %v1025
        %v1076 = vpack.c.b16 %v1030, %v1028
        %v1077 = vpack.c.b16 %v1031, %v1029
        %v1078 = vpack.c.b16 %v1034, %v1032
        %v1079 = vpack.c.b16 %v1035, %v1033
        %v1080 = vpack.c.b16 %v1038, %v1036
        %v1081 = vpack.c.b16 %v1039, %v1037
        %v1082 = vpack.c.b16 %v1042, %v1040
        %v1083 = vpack.c.b16 %v1043, %v1041
        %v1084 = vpack.c.b16 %v1046, %v1044
        %v1085 = vpack.c.b16 %v1047, %v1045
        %v1086 = vpack.c.b16 %v1050, %v1048
        %v1087 = vpack.c.b16 %v1051, %v1049
        %v1088 = vpack.c.b16 %v1054, %v1052
        %v1089 = vpack.c.b16 %v1055, %v1053
        %v1090 = vpack.c.b16 %v1058, %v1056
        %v1091 = vpack.c.b16 %v1059, %v1057
        %1124 = vmatprep.subr.bf16.mxu0 %v1075
        %1125 = vmatpush1.bf16.msra.mxu0 %v1074
        %1126 = vmatprep.subr.bf16.mxu0 %v1073
        %1127 = vmatpush1.bf16.msra.mxu0 %v1072
        %1128 = vmatprep.subr.bf16.mxu0 %v1071
        %1129 = vmatpush1.bf16.msra.mxu0 %v1070
        %1130 = vmatprep.subr.bf16.mxu0 %v1069
        %1131 = vmatpush1.bf16.msra.mxu0 %v1068
        %1132 = vmatprep.subr.bf16.mxu0 %v1067
        %1133 = vmatpush1.bf16.msra.mxu0 %v1066
        %1134 = vmatprep.subr.bf16.mxu0 %v1065
        %1135 = vmatpush1.bf16.msra.mxu0 %v1064
        %1136 = vmatprep.subr.bf16.mxu0 %v1063
        %1137 = vmatpush1.bf16.msra.mxu0 %v1062
        %1138 = vmatprep.subr.bf16.mxu0 %v1061
        %1139 = vmatpush1.bf16.msra.mxu0 %v1060
        %1140 = vmatprep.subr.bf16.mxu0 %v1091
        %1141 = vmatpush2.bf16.msra.mxu0 %v1090
        %1142 = vmatprep.subr.bf16.mxu0 %v1089
        %1143 = vmatpush2.bf16.msra.mxu0 %v1088
        %1144 = vmatprep.subr.bf16.mxu0 %v1087
        %1145 = vmatpush2.bf16.msra.mxu0 %v1086
        %1146 = vmatprep.subr.bf16.mxu0 %v1085
        %1147 = vmatpush2.bf16.msra.mxu0 %v1084
        %1148 = vmatprep.subr.bf16.mxu0 %v1083
        %1149 = vmatpush2.bf16.msra.mxu0 %v1082
        %1150 = vmatprep.subr.bf16.mxu0 %v1081
        %1151 = vmatpush2.bf16.msra.mxu0 %v1080
        %1152 = vmatprep.subr.bf16.mxu0 %v1079
        %1153 = vmatpush2.bf16.msra.mxu0 %v1078
        %1154 = vmatprep.subr.bf16.mxu0 %v1077
        %1155 = vmatpush2.bf16.msra.mxu0 %v1076
        %1156 = vmatprep.mubr.bf16.mxu0 %v905
        %1157 = vmatmul.mubr.bf16.gmra.mxu0 %v904
        %v1158 = vpop.f32.mrf.mxu0
        %v1159 = vadd.f32 %v957, %v1158
        %v1160 = vpop.f32.mrf.mxu0
        %v1161 = vadd.f32 %v961, %v1160
        %v1162 = vpop.f32.mrf.mxu0
        %v1163 = vadd.f32 %v957, %v1162
        %v1164 = vpop.f32.mrf.mxu0
        %v1165 = vadd.f32 %v961, %v1164
        %1166 = vmatprep.mubr.bf16.mxu0 %v907
        %1167 = vmatmul.mubr.bf16.gmra.mxu0 %v906
        %v1168 = vpop.f32.mrf.mxu0
        %v1169 = vadd.f32 %v957, %v1168
        %v1170 = vpop.f32.mrf.mxu0
        %v1171 = vadd.f32 %v961, %v1170
        %v1172 = vpop.f32.mrf.mxu0
        %v1173 = vadd.f32 %v957, %v1172
        %v1174 = vpop.f32.mrf.mxu0
        %v1175 = vadd.f32 %v961, %v1174
        %1176 = vmatprep.mubr.bf16.mxu0 %v909
        %1177 = vmatmul.mubr.bf16.gmra.mxu0 %v908
        %v1178 = vpop.f32.mrf.mxu0
        %v1179 = vadd.f32 %v957, %v1178
        %v1180 = vpop.f32.mrf.mxu0
        %v1181 = vadd.f32 %v961, %v1180
        %v1182 = vpop.f32.mrf.mxu0
        %v1183 = vadd.f32 %v957, %v1182
        %v1184 = vpop.f32.mrf.mxu0
        %v1185 = vadd.f32 %v961, %v1184
        %1186 = vmatprep.mubr.bf16.mxu0 %v911
        %1187 = vmatmul.mubr.bf16.gmra.mxu0 %v910
        %v1188 = vpop.f32.mrf.mxu0
        %v1189 = vadd.f32 %v957, %v1188
        %v1190 = vpop.f32.mrf.mxu0
        %v1191 = vadd.f32 %v961, %v1190
        %v1192 = vpop.f32.mrf.mxu0
        %v1193 = vadd.f32 %v957, %v1192
        %v1194 = vpop.f32.mrf.mxu0
        %v1195 = vadd.f32 %v961, %v1194
        %1196 = vmatprep.mubr.bf16.mxu0 %v913
        %1197 = vmatmul.mubr.bf16.gmra.mxu0 %v912
        %v1198 = vpop.f32.mrf.mxu0
        %v1199 = vadd.f32 %v957, %v1198
        %v1200 = vpop.f32.mrf.mxu0
        %v1201 = vadd.f32 %v961, %v1200
        %v1202 = vpop.f32.mrf.mxu0
        %v1203 = vadd.f32 %v957, %v1202
        %v1204 = vpop.f32.mrf.mxu0
        %v1205 = vadd.f32 %v961, %v1204
        %1206 = vmatprep.mubr.bf16.mxu0 %v915
        %1207 = vmatmul.mubr.bf16.gmra.mxu0 %v914
        %v1208 = vpop.f32.mrf.mxu0
        %v1209 = vadd.f32 %v957, %v1208
        %v1210 = vpop.f32.mrf.mxu0
        %v1211 = vadd.f32 %v961, %v1210
        %v1212 = vpop.f32.mrf.mxu0
        %v1213 = vadd.f32 %v957, %v1212
        %v1214 = vpop.f32.mrf.mxu0
        %v1215 = vadd.f32 %v961, %v1214
        %1216 = vmatprep.mubr.bf16.mxu0 %v917
        %1217 = vmatmul.mubr.bf16.gmra.mxu0 %v916
        %v1218 = vpop.f32.mrf.mxu0
        %v1219 = vadd.f32 %v957, %v1218
        %v1220 = vpop.f32.mrf.mxu0
        %v1221 = vadd.f32 %v961, %v1220
        %v1222 = vpop.f32.mrf.mxu0
        %v1223 = vadd.f32 %v957, %v1222
        %v1224 = vpop.f32.mrf.mxu0
        %v1225 = vadd.f32 %v961, %v1224
        %1226 = vmatprep.mubr.bf16.mxu0 %v919
        %1227 = vmatmul.mubr.bf16.gmra.mxu0 %v918
        %v1228 = vpop.f32.mrf.mxu0
        %v1229 = vadd.f32 %v957, %v1228
        %v1230 = vpop.f32.mrf.mxu0
        %v1231 = vadd.f32 %v961, %v1230
        %v1232 = vpop.f32.mrf.mxu0
        %v1233 = vadd.f32 %v957, %v1232
        %v1234 = vpop.f32.mrf.mxu0
        %v1235 = vadd.f32 %v961, %v1234
        %1236 = vdwg.mxu0
        %v1237 = vld [vmem:[#allocation7] sm:$0xff]
        %v1238 = vld [vmem:[#allocation7 + $0x8] sm:$0xff]
        %v1239 = vld [vmem:[#allocation7 + $0x10] sm:$0xff]
        %v1240 = vld [vmem:[#allocation7 + $0x18] sm:$0xff]
        %v1241 = vld [vmem:[#allocation7 + $0x20] sm:$0xff]
        %v1242 = vld [vmem:[#allocation7 + $0x28] sm:$0xff]
        %v1243 = vld [vmem:[#allocation7 + $0x30] sm:$0xff]
        %v1244 = vld [vmem:[#allocation7 + $0x38] sm:$0xff]
        %v1245 = vld [vmem:[#allocation7 + $0x40] sm:$0xff]
        %v1246 = vld [vmem:[#allocation7 + $0x48] sm:$0xff]
        %v1247 = vld [vmem:[#allocation7 + $0x50] sm:$0xff]
        %v1248 = vld [vmem:[#allocation7 + $0x58] sm:$0xff]
        %v1249 = vld [vmem:[#allocation7 + $0x60] sm:$0xff]
        %v1250 = vld [vmem:[#allocation7 + $0x68] sm:$0xff]
        %v1251 = vld [vmem:[#allocation7 + $0x70] sm:$0xff]
        %v1252 = vld [vmem:[#allocation7 + $0x78] sm:$0xff]
        %v1253 = vld [vmem:[#allocation7 + $0x80] sm:$0xff]
        %v1254 = vld [vmem:[#allocation7 + $0x88] sm:$0xff]
        %v1255 = vld [vmem:[#allocation7 + $0x90] sm:$0xff]
        %v1256 = vld [vmem:[#allocation7 + $0x98] sm:$0xff]
        %v1257 = vld [vmem:[#allocation7 + $0xa0] sm:$0xff]
        %v1258 = vld [vmem:[#allocation7 + $0xa8] sm:$0xff]
        %v1259 = vld [vmem:[#allocation7 + $0xb0] sm:$0xff]
        %v1260 = vld [vmem:[#allocation7 + $0xb8] sm:$0xff]
        %v1261 = vld [vmem:[#allocation7 + $0xc0] sm:$0xff]
        %v1262 = vld [vmem:[#allocation7 + $0xc8] sm:$0xff]
        %v1263 = vld [vmem:[#allocation7 + $0xd0] sm:$0xff]
        %v1264 = vld [vmem:[#allocation7 + $0xd8] sm:$0xff]
        %v1265 = vld [vmem:[#allocation7 + $0xe0] sm:$0xff]
        %v1266 = vld [vmem:[#allocation7 + $0xe8] sm:$0xff]
        %v1267 = vld [vmem:[#allocation7 + $0xf0] sm:$0xff]
        %v1268 = vld [vmem:[#allocation7 + $0xf8] sm:$0xff]
        %v1269 = vld [vmem:[%s4] sm:$0x3]
        %v1271 = vlaneseq
        %v1272 = vshrl.u32 %v1271, 7
        %v1273 = vsub.s32 0, %v1272
        %v1274 = vrot.slane %v1269, %v1273
        %v1275 = vlaneseq
        %v1276 = vshrl.u32 %v1275, 7
        %v1277 = vsub.s32 1, %v1276
        %v1278 = vrot.slane %v1269, %v1277
        %v1313 = vunpack.c.l.b16 %v1237
        %v1314 = vunpack.c.h.b16 %v1237
        %v1315 = vunpack.c.l.b16 %v1238
        %v1316 = vunpack.c.h.b16 %v1238
        %v1317 = vunpack.c.l.b16 %v1239
        %v1318 = vunpack.c.h.b16 %v1239
        %v1319 = vunpack.c.l.b16 %v1240
        %v1320 = vunpack.c.h.b16 %v1240
        %v1321 = vunpack.c.l.b16 %v1241
        %v1322 = vunpack.c.h.b16 %v1241
        %v1323 = vunpack.c.l.b16 %v1242
        %v1324 = vunpack.c.h.b16 %v1242
        %v1325 = vunpack.c.l.b16 %v1243
        %v1326 = vunpack.c.h.b16 %v1243
        %v1327 = vunpack.c.l.b16 %v1244
        %v1328 = vunpack.c.h.b16 %v1244
        %v1329 = vunpack.c.l.b16 %v1245
        %v1330 = vunpack.c.h.b16 %v1245
        %v1331 = vunpack.c.l.b16 %v1246
        %v1332 = vunpack.c.h.b16 %v1246
        %v1333 = vunpack.c.l.b16 %v1247
        %v1334 = vunpack.c.h.b16 %v1247
        %v1335 = vunpack.c.l.b16 %v1248
        %v1336 = vunpack.c.h.b16 %v1248
        %v1337 = vunpack.c.l.b16 %v1249
        %v1338 = vunpack.c.h.b16 %v1249
        %v1339 = vunpack.c.l.b16 %v1250
        %v1340 = vunpack.c.h.b16 %v1250
        %v1341 = vunpack.c.l.b16 %v1251
        %v1342 = vunpack.c.h.b16 %v1251
        %v1343 = vunpack.c.l.b16 %v1252
        %v1344 = vunpack.c.h.b16 %v1252
        %v1345 = vunpack.c.l.b16 %v1253
        %v1346 = vunpack.c.h.b16 %v1253
        %v1347 = vunpack.c.l.b16 %v1254
        %v1348 = vunpack.c.h.b16 %v1254
        %v1349 = vunpack.c.l.b16 %v1255
        %v1350 = vunpack.c.h.b16 %v1255
        %v1351 = vunpack.c.l.b16 %v1256
        %v1352 = vunpack.c.h.b16 %v1256
        %v1353 = vunpack.c.l.b16 %v1257
        %v1354 = vunpack.c.h.b16 %v1257
        %v1355 = vunpack.c.l.b16 %v1258
        %v1356 = vunpack.c.h.b16 %v1258
        %v1357 = vunpack.c.l.b16 %v1259
        %v1358 = vunpack.c.h.b16 %v1259
        %v1359 = vunpack.c.l.b16 %v1260
        %v1360 = vunpack.c.h.b16 %v1260
        %v1361 = vunpack.c.l.b16 %v1261
        %v1362 = vunpack.c.h.b16 %v1261
        %v1363 = vunpack.c.l.b16 %v1262
        %v1364 = vunpack.c.h.b16 %v1262
        %v1365 = vunpack.c.l.b16 %v1263
        %v1366 = vunpack.c.h.b16 %v1263
        %v1367 = vunpack.c.l.b16 %v1264
        %v1368 = vunpack.c.h.b16 %v1264
        %v1369 = vunpack.c.l.b16 %v1265
        %v1370 = vunpack.c.h.b16 %v1265
        %v1371 = vunpack.c.l.b16 %v1266
        %v1372 = vunpack.c.h.b16 %v1266
        %v1373 = vunpack.c.l.b16 %v1267
        %v1374 = vunpack.c.h.b16 %v1267
        %v1375 = vunpack.c.l.b16 %v1268
        %v1376 = vunpack.c.h.b16 %v1268
        %v1377 = vpack.c.b16 %v1315, %v1313
        %v1378 = vpack.c.b16 %v1316, %v1314
        %v1379 = vpack.c.b16 %v1319, %v1317
        %v1380 = vpack.c.b16 %v1320, %v1318
        %v1381 = vpack.c.b16 %v1323, %v1321
        %v1382 = vpack.c.b16 %v1324, %v1322
        %v1383 = vpack.c.b16 %v1327, %v1325
        %v1384 = vpack.c.b16 %v1328, %v1326
        %v1385 = vpack.c.b16 %v1331, %v1329
        %v1386 = vpack.c.b16 %v1332, %v1330
        %v1387 = vpack.c.b16 %v1335, %v1333
        %v1388 = vpack.c.b16 %v1336, %v1334
        %v1389 = vpack.c.b16 %v1339, %v1337
        %v1390 = vpack.c.b16 %v1340, %v1338
        %v1391 = vpack.c.b16 %v1343, %v1341
        %v1392 = vpack.c.b16 %v1344, %v1342
        %v1393 = vpack.c.b16 %v1347, %v1345
        %v1394 = vpack.c.b16 %v1348, %v1346
        %v1395 = vpack.c.b16 %v1351, %v1349
        %v1396 = vpack.c.b16 %v1352, %v1350
        %v1397 = vpack.c.b16 %v1355, %v1353
        %v1398 = vpack.c.b16 %v1356, %v1354
        %v1399 = vpack.c.b16 %v1359, %v1357
        %v1400 = vpack.c.b16 %v1360, %v1358
        %v1401 = vpack.c.b16 %v1363, %v1361
        %v1402 = vpack.c.b16 %v1364, %v1362
        %v1403 = vpack.c.b16 %v1367, %v1365
        %v1404 = vpack.c.b16 %v1368, %v1366
        %v1405 = vpack.c.b16 %v1371, %v1369
        %v1406 = vpack.c.b16 %v1372, %v1370
        %v1407 = vpack.c.b16 %v1375, %v1373
        %v1408 = vpack.c.b16 %v1376, %v1374
        %1441 = vmatprep.subr.bf16.mxu0 %v1392
        %1442 = vmatpush1.bf16.msra.mxu0 %v1391
        %1443 = vmatprep.subr.bf16.mxu0 %v1390
        %1444 = vmatpush1.bf16.msra.mxu0 %v1389
        %1445 = vmatprep.subr.bf16.mxu0 %v1388
        %1446 = vmatpush1.bf16.msra.mxu0 %v1387
        %1447 = vmatprep.subr.bf16.mxu0 %v1386
        %1448 = vmatpush1.bf16.msra.mxu0 %v1385
        %1449 = vmatprep.subr.bf16.mxu0 %v1384
        %1450 = vmatpush1.bf16.msra.mxu0 %v1383
        %1451 = vmatprep.subr.bf16.mxu0 %v1382
        %1452 = vmatpush1.bf16.msra.mxu0 %v1381
        %1453 = vmatprep.subr.bf16.mxu0 %v1380
        %1454 = vmatpush1.bf16.msra.mxu0 %v1379
        %1455 = vmatprep.subr.bf16.mxu0 %v1378
        %1456 = vmatpush1.bf16.msra.mxu0 %v1377
        %1457 = vmatprep.subr.bf16.mxu0 %v1408
        %1458 = vmatpush2.bf16.msra.mxu0 %v1407
        %1459 = vmatprep.subr.bf16.mxu0 %v1406
        %1460 = vmatpush2.bf16.msra.mxu0 %v1405
        %1461 = vmatprep.subr.bf16.mxu0 %v1404
        %1462 = vmatpush2.bf16.msra.mxu0 %v1403
        %1463 = vmatprep.subr.bf16.mxu0 %v1402
        %1464 = vmatpush2.bf16.msra.mxu0 %v1401
        %1465 = vmatprep.subr.bf16.mxu0 %v1400
        %1466 = vmatpush2.bf16.msra.mxu0 %v1399
        %1467 = vmatprep.subr.bf16.mxu0 %v1398
        %1468 = vmatpush2.bf16.msra.mxu0 %v1397
        %1469 = vmatprep.subr.bf16.mxu0 %v1396
        %1470 = vmatpush2.bf16.msra.mxu0 %v1395
        %1471 = vmatprep.subr.bf16.mxu0 %v1394
        %1472 = vmatpush2.bf16.msra.mxu0 %v1393
        %1473 = vmatprep.mubr.bf16.mxu0 %v905
        %1474 = vmatmul.mubr.bf16.gmra.mxu0 %v904
        %v1475 = vpop.f32.mrf.mxu0
        %v1476 = vadd.f32 %v1274, %v1475
        %v1477 = vpop.f32.mrf.mxu0
        %v1478 = vadd.f32 %v1278, %v1477
        %v1479 = vpop.f32.mrf.mxu0
        %v1480 = vadd.f32 %v1274, %v1479
        %v1481 = vpop.f32.mrf.mxu0
        %v1482 = vadd.f32 %v1278, %v1481
        %1483 = vmatprep.mubr.bf16.mxu0 %v907
        %1484 = vmatmul.mubr.bf16.gmra.mxu0 %v906
        %v1485 = vpop.f32.mrf.mxu0
        %v1486 = vadd.f32 %v1274, %v1485
        %v1487 = vpop.f32.mrf.mxu0
        %v1488 = vadd.f32 %v1278, %v1487
        %v1489 = vpop.f32.mrf.mxu0
        %v1490 = vadd.f32 %v1274, %v1489
        %v1491 = vpop.f32.mrf.mxu0
        %v1492 = vadd.f32 %v1278, %v1491
        %1493 = vmatprep.mubr.bf16.mxu0 %v909
        %1494 = vmatmul.mubr.bf16.gmra.mxu0 %v908
        %v1495 = vpop.f32.mrf.mxu0
        %v1496 = vadd.f32 %v1274, %v1495
        %v1497 = vpop.f32.mrf.mxu0
        %v1498 = vadd.f32 %v1278, %v1497
        %v1499 = vpop.f32.mrf.mxu0
        %v1500 = vadd.f32 %v1274, %v1499
        %v1501 = vpop.f32.mrf.mxu0
        %v1502 = vadd.f32 %v1278, %v1501
        %1503 = vmatprep.mubr.bf16.mxu0 %v911
        %1504 = vmatmul.mubr.bf16.gmra.mxu0 %v910
        %v1505 = vpop.f32.mrf.mxu0
        %v1506 = vadd.f32 %v1274, %v1505
        %v1507 = vpop.f32.mrf.mxu0
        %v1508 = vadd.f32 %v1278, %v1507
        %v1509 = vpop.f32.mrf.mxu0
        %v1510 = vadd.f32 %v1274, %v1509
        %v1511 = vpop.f32.mrf.mxu0
        %v1512 = vadd.f32 %v1278, %v1511
        %1513 = vmatprep.mubr.bf16.mxu0 %v913
        %1514 = vmatmul.mubr.bf16.gmra.mxu0 %v912
        %v1515 = vpop.f32.mrf.mxu0
        %v1516 = vadd.f32 %v1274, %v1515
        %v1517 = vpop.f32.mrf.mxu0
        %v1518 = vadd.f32 %v1278, %v1517
        %v1519 = vpop.f32.mrf.mxu0
        %v1520 = vadd.f32 %v1274, %v1519
        %v1521 = vpop.f32.mrf.mxu0
        %v1522 = vadd.f32 %v1278, %v1521
        %1523 = vmatprep.mubr.bf16.mxu0 %v915
        %1524 = vmatmul.mubr.bf16.gmra.mxu0 %v914
        %v1525 = vpop.f32.mrf.mxu0
        %v1526 = vadd.f32 %v1274, %v1525
        %v1527 = vpop.f32.mrf.mxu0
        %v1528 = vadd.f32 %v1278, %v1527
        %v1529 = vpop.f32.mrf.mxu0
        %v1530 = vadd.f32 %v1274, %v1529
        %v1531 = vpop.f32.mrf.mxu0
        %v1532 = vadd.f32 %v1278, %v1531
        %1533 = vmatprep.mubr.bf16.mxu0 %v917
        %1534 = vmatmul.mubr.bf16.gmra.mxu0 %v916
        %v1535 = vpop.f32.mrf.mxu0
        %v1536 = vadd.f32 %v1274, %v1535
        %v1537 = vpop.f32.mrf.mxu0
        %v1538 = vadd.f32 %v1278, %v1537
        %v1539 = vpop.f32.mrf.mxu0
        %v1540 = vadd.f32 %v1274, %v1539
        %v1541 = vpop.f32.mrf.mxu0
        %v1542 = vadd.f32 %v1278, %v1541
        %1543 = vmatprep.mubr.bf16.mxu0 %v919
        %1544 = vmatmul.mubr.bf16.gmra.mxu0 %v918
        %v1545 = vpop.f32.mrf.mxu0
        %v1546 = vadd.f32 %v1274, %v1545
        %v1547 = vpop.f32.mrf.mxu0
        %v1548 = vadd.f32 %v1278, %v1547
        %v1549 = vpop.f32.mrf.mxu0
        %v1550 = vadd.f32 %v1274, %v1549
        %v1551 = vpop.f32.mrf.mxu0
        %v1552 = vadd.f32 %v1278, %v1551
        %1553 = vdwg.mxu0
        %v1554 = vld [vmem:[#allocation8] sm:$0xff]
        %v1555 = vld [vmem:[#allocation8 + $0x8] sm:$0xff]
        %v1556 = vld [vmem:[#allocation8 + $0x10] sm:$0xff]
        %v1557 = vld [vmem:[#allocation8 + $0x18] sm:$0xff]
        %v1558 = vld [vmem:[#allocation8 + $0x20] sm:$0xff]
        %v1559 = vld [vmem:[#allocation8 + $0x28] sm:$0xff]
        %v1560 = vld [vmem:[#allocation8 + $0x30] sm:$0xff]
        %v1561 = vld [vmem:[#allocation8 + $0x38] sm:$0xff]
        %v1562 = vld [vmem:[#allocation8 + $0x40] sm:$0xff]
        %v1563 = vld [vmem:[#allocation8 + $0x48] sm:$0xff]
        %v1564 = vld [vmem:[#allocation8 + $0x50] sm:$0xff]
        %v1565 = vld [vmem:[#allocation8 + $0x58] sm:$0xff]
        %v1566 = vld [vmem:[#allocation8 + $0x60] sm:$0xff]
        %v1567 = vld [vmem:[#allocation8 + $0x68] sm:$0xff]
        %v1568 = vld [vmem:[#allocation8 + $0x70] sm:$0xff]
        %v1569 = vld [vmem:[#allocation8 + $0x78] sm:$0xff]
        %v1570 = vld [vmem:[#allocation8 + $0x80] sm:$0xff]
        %v1571 = vld [vmem:[#allocation8 + $0x88] sm:$0xff]
        %v1572 = vld [vmem:[#allocation8 + $0x90] sm:$0xff]
        %v1573 = vld [vmem:[#allocation8 + $0x98] sm:$0xff]
        %v1574 = vld [vmem:[#allocation8 + $0xa0] sm:$0xff]
        %v1575 = vld [vmem:[#allocation8 + $0xa8] sm:$0xff]
        %v1576 = vld [vmem:[#allocation8 + $0xb0] sm:$0xff]
        %v1577 = vld [vmem:[#allocation8 + $0xb8] sm:$0xff]
        %v1578 = vld [vmem:[#allocation8 + $0xc0] sm:$0xff]
        %v1579 = vld [vmem:[#allocation8 + $0xc8] sm:$0xff]
        %v1580 = vld [vmem:[#allocation8 + $0xd0] sm:$0xff]
        %v1581 = vld [vmem:[#allocation8 + $0xd8] sm:$0xff]
        %v1582 = vld [vmem:[#allocation8 + $0xe0] sm:$0xff]
        %v1583 = vld [vmem:[#allocation8 + $0xe8] sm:$0xff]
        %v1584 = vld [vmem:[#allocation8 + $0xf0] sm:$0xff]
        %v1585 = vld [vmem:[#allocation8 + $0xf8] sm:$0xff]
        %v1586 = vld [vmem:[%s6] sm:$0x3]
        %v1588 = vlaneseq
        %v1589 = vshrl.u32 %v1588, 7
        %v1590 = vsub.s32 0, %v1589
        %v1591 = vrot.slane %v1586, %v1590
        %v1592 = vlaneseq
        %v1593 = vshrl.u32 %v1592, 7
        %v1594 = vsub.s32 1, %v1593
        %v1595 = vrot.slane %v1586, %v1594
        %v1630 = vunpack.c.l.b16 %v1554
        %v1631 = vunpack.c.h.b16 %v1554
        %v1632 = vunpack.c.l.b16 %v1555
        %v1633 = vunpack.c.h.b16 %v1555
        %v1634 = vunpack.c.l.b16 %v1556
        %v1635 = vunpack.c.h.b16 %v1556
        %v1636 = vunpack.c.l.b16 %v1557
        %v1637 = vunpack.c.h.b16 %v1557
        %v1638 = vunpack.c.l.b16 %v1558
        %v1639 = vunpack.c.h.b16 %v1558
        %v1640 = vunpack.c.l.b16 %v1559
        %v1641 = vunpack.c.h.b16 %v1559
        %v1642 = vunpack.c.l.b16 %v1560
        %v1643 = vunpack.c.h.b16 %v1560
        %v1644 = vunpack.c.l.b16 %v1561
        %v1645 = vunpack.c.h.b16 %v1561
        %v1646 = vunpack.c.l.b16 %v1562
        %v1647 = vunpack.c.h.b16 %v1562
        %v1648 = vunpack.c.l.b16 %v1563
        %v1649 = vunpack.c.h.b16 %v1563
        %v1650 = vunpack.c.l.b16 %v1564
        %v1651 = vunpack.c.h.b16 %v1564
        %v1652 = vunpack.c.l.b16 %v1565
        %v1653 = vunpack.c.h.b16 %v1565
        %v1654 = vunpack.c.l.b16 %v1566
        %v1655 = vunpack.c.h.b16 %v1566
        %v1656 = vunpack.c.l.b16 %v1567
        %v1657 = vunpack.c.h.b16 %v1567
        %v1658 = vunpack.c.l.b16 %v1568
        %v1659 = vunpack.c.h.b16 %v1568
        %v1660 = vunpack.c.l.b16 %v1569
        %v1661 = vunpack.c.h.b16 %v1569
        %v1662 = vunpack.c.l.b16 %v1570
        %v1663 = vunpack.c.h.b16 %v1570
        %v1664 = vunpack.c.l.b16 %v1571
        %v1665 = vunpack.c.h.b16 %v1571
        %v1666 = vunpack.c.l.b16 %v1572
        %v1667 = vunpack.c.h.b16 %v1572
        %v1668 = vunpack.c.l.b16 %v1573
        %v1669 = vunpack.c.h.b16 %v1573
        %v1670 = vunpack.c.l.b16 %v1574
        %v1671 = vunpack.c.h.b16 %v1574
        %v1672 = vunpack.c.l.b16 %v1575
        %v1673 = vunpack.c.h.b16 %v1575
        %v1674 = vunpack.c.l.b16 %v1576
        %v1675 = vunpack.c.h.b16 %v1576
        %v1676 = vunpack.c.l.b16 %v1577
        %v1677 = vunpack.c.h.b16 %v1577
        %v1678 = vunpack.c.l.b16 %v1578
        %v1679 = vunpack.c.h.b16 %v1578
        %v1680 = vunpack.c.l.b16 %v1579
        %v1681 = vunpack.c.h.b16 %v1579
        %v1682 = vunpack.c.l.b16 %v1580
        %v1683 = vunpack.c.h.b16 %v1580
        %v1684 = vunpack.c.l.b16 %v1581
        %v1685 = vunpack.c.h.b16 %v1581
        %v1686 = vunpack.c.l.b16 %v1582
        %v1687 = vunpack.c.h.b16 %v1582
        %v1688 = vunpack.c.l.b16 %v1583
        %v1689 = vunpack.c.h.b16 %v1583
        %v1690 = vunpack.c.l.b16 %v1584
        %v1691 = vunpack.c.h.b16 %v1584
        %v1692 = vunpack.c.l.b16 %v1585
        %v1693 = vunpack.c.h.b16 %v1585
        %v1694 = vpack.c.b16 %v1632, %v1630
        %v1695 = vpack.c.b16 %v1633, %v1631
        %v1696 = vpack.c.b16 %v1636, %v1634
        %v1697 = vpack.c.b16 %v1637, %v1635
        %v1698 = vpack.c.b16 %v1640, %v1638
        %v1699 = vpack.c.b16 %v1641, %v1639
        %v1700 = vpack.c.b16 %v1644, %v1642
        %v1701 = vpack.c.b16 %v1645, %v1643
        %v1702 = vpack.c.b16 %v1648, %v1646
        %v1703 = vpack.c.b16 %v1649, %v1647
        %v1704 = vpack.c.b16 %v1652, %v1650
        %v1705 = vpack.c.b16 %v1653, %v1651
        %v1706 = vpack.c.b16 %v1656, %v1654
        %v1707 = vpack.c.b16 %v1657, %v1655
        %v1708 = vpack.c.b16 %v1660, %v1658
        %v1709 = vpack.c.b16 %v1661, %v1659
        %v1710 = vpack.c.b16 %v1664, %v1662
        %v1711 = vpack.c.b16 %v1665, %v1663
        %v1712 = vpack.c.b16 %v1668, %v1666
        %v1713 = vpack.c.b16 %v1669, %v1667
        %v1714 = vpack.c.b16 %v1672, %v1670
        %v1715 = vpack.c.b16 %v1673, %v1671
        %v1716 = vpack.c.b16 %v1676, %v1674
        %v1717 = vpack.c.b16 %v1677, %v1675
        %v1718 = vpack.c.b16 %v1680, %v1678
        %v1719 = vpack.c.b16 %v1681, %v1679
        %v1720 = vpack.c.b16 %v1684, %v1682
        %v1721 = vpack.c.b16 %v1685, %v1683
        %v1722 = vpack.c.b16 %v1688, %v1686
        %v1723 = vpack.c.b16 %v1689, %v1687
        %v1724 = vpack.c.b16 %v1692, %v1690
        %v1725 = vpack.c.b16 %v1693, %v1691
        %1758 = vmatprep.subr.bf16.mxu0 %v1709
        %1759 = vmatpush1.bf16.msra.mxu0 %v1708
        %1760 = vmatprep.subr.bf16.mxu0 %v1707
        %1761 = vmatpush1.bf16.msra.mxu0 %v1706
        %1762 = vmatprep.subr.bf16.mxu0 %v1705
        %1763 = vmatpush1.bf16.msra.mxu0 %v1704
        %1764 = vmatprep.subr.bf16.mxu0 %v1703
        %1765 = vmatpush1.bf16.msra.mxu0 %v1702
        %1766 = vmatprep.subr.bf16.mxu0 %v1701
        %1767 = vmatpush1.bf16.msra.mxu0 %v1700
        %1768 = vmatprep.subr.bf16.mxu0 %v1699
        %1769 = vmatpush1.bf16.msra.mxu0 %v1698
        %1770 = vmatprep.subr.bf16.mxu0 %v1697
        %1771 = vmatpush1.bf16.msra.mxu0 %v1696
        %1772 = vmatprep.subr.bf16.mxu0 %v1695
        %1773 = vmatpush1.bf16.msra.mxu0 %v1694
        %1774 = vmatprep.subr.bf16.mxu0 %v1725
        %1775 = vmatpush2.bf16.msra.mxu0 %v1724
        %1776 = vmatprep.subr.bf16.mxu0 %v1723
        %1777 = vmatpush2.bf16.msra.mxu0 %v1722
        %1778 = vmatprep.subr.bf16.mxu0 %v1721
        %1779 = vmatpush2.bf16.msra.mxu0 %v1720
        %1780 = vmatprep.subr.bf16.mxu0 %v1719
        %1781 = vmatpush2.bf16.msra.mxu0 %v1718
        %1782 = vmatprep.subr.bf16.mxu0 %v1717
        %1783 = vmatpush2.bf16.msra.mxu0 %v1716
        %1784 = vmatprep.subr.bf16.mxu0 %v1715
        %1785 = vmatpush2.bf16.msra.mxu0 %v1714
        %1786 = vmatprep.subr.bf16.mxu0 %v1713
        %1787 = vmatpush2.bf16.msra.mxu0 %v1712
        %1788 = vmatprep.subr.bf16.mxu0 %v1711
        %1789 = vmatpush2.bf16.msra.mxu0 %v1710
        %1790 = vmatprep.mubr.bf16.mxu0 %v905
        %1791 = vmatmul.mubr.bf16.gmra.mxu0 %v904
        %v1792 = vpop.f32.mrf.mxu0
        %v1793 = vadd.f32 %v1591, %v1792
        %v1794 = vpop.f32.mrf.mxu0
        %v1795 = vadd.f32 %v1595, %v1794
        %v1796 = vpop.f32.mrf.mxu0
        %v1797 = vadd.f32 %v1591, %v1796
        %v1798 = vpop.f32.mrf.mxu0
        %v1799 = vadd.f32 %v1595, %v1798
        %1800 = vmatprep.mubr.bf16.mxu0 %v907
        %1801 = vmatmul.mubr.bf16.gmra.mxu0 %v906
        %v1802 = vpop.f32.mrf.mxu0
        %v1803 = vadd.f32 %v1591, %v1802
        %v1804 = vpop.f32.mrf.mxu0
        %v1805 = vadd.f32 %v1595, %v1804
        %v1806 = vpop.f32.mrf.mxu0
        %v1807 = vadd.f32 %v1591, %v1806
        %v1808 = vpop.f32.mrf.mxu0
        %v1809 = vadd.f32 %v1595, %v1808
        %1810 = vmatprep.mubr.bf16.mxu0 %v909
        %1811 = vmatmul.mubr.bf16.gmra.mxu0 %v908
        %v1812 = vpop.f32.mrf.mxu0
        %v1813 = vadd.f32 %v1591, %v1812
        %v1814 = vpop.f32.mrf.mxu0
        %v1815 = vadd.f32 %v1595, %v1814
        %v1816 = vpop.f32.mrf.mxu0
        %v1817 = vadd.f32 %v1591, %v1816
        %v1818 = vpop.f32.mrf.mxu0
        %v1819 = vadd.f32 %v1595, %v1818
        %1820 = vmatprep.mubr.bf16.mxu0 %v911
        %1821 = vmatmul.mubr.bf16.gmra.mxu0 %v910
        %v1822 = vpop.f32.mrf.mxu0
        %v1823 = vadd.f32 %v1591, %v1822
        %v1824 = vpop.f32.mrf.mxu0
        %v1825 = vadd.f32 %v1595, %v1824
        %v1826 = vpop.f32.mrf.mxu0
        %v1827 = vadd.f32 %v1591, %v1826
        %v1828 = vpop.f32.mrf.mxu0
        %v1829 = vadd.f32 %v1595, %v1828
        %1830 = vmatprep.mubr.bf16.mxu0 %v913
        %1831 = vmatmul.mubr.bf16.gmra.mxu0 %v912
        %v1832 = vpop.f32.mrf.mxu0
        %v1833 = vadd.f32 %v1591, %v1832
        %v1834 = vpop.f32.mrf.mxu0
        %v1835 = vadd.f32 %v1595, %v1834
        %v1836 = vpop.f32.mrf.mxu0
        %v1837 = vadd.f32 %v1591, %v1836
        %v1838 = vpop.f32.mrf.mxu0
        %v1839 = vadd.f32 %v1595, %v1838
        %1840 = vmatprep.mubr.bf16.mxu0 %v915
        %1841 = vmatmul.mubr.bf16.gmra.mxu0 %v914
        %v1842 = vpop.f32.mrf.mxu0
        %v1843 = vadd.f32 %v1591, %v1842
        %v1844 = vpop.f32.mrf.mxu0
        %v1845 = vadd.f32 %v1595, %v1844
        %v1846 = vpop.f32.mrf.mxu0
        %v1847 = vadd.f32 %v1591, %v1846
        %v1848 = vpop.f32.mrf.mxu0
        %v1849 = vadd.f32 %v1595, %v1848
        %1850 = vmatprep.mubr.bf16.mxu0 %v917
        %1851 = vmatmul.mubr.bf16.gmra.mxu0 %v916
        %v1852 = vpop.f32.mrf.mxu0
        %v1853 = vadd.f32 %v1591, %v1852
        %v1854 = vpop.f32.mrf.mxu0
        %v1855 = vadd.f32 %v1595, %v1854
        %v1856 = vpop.f32.mrf.mxu0
        %v1857 = vadd.f32 %v1591, %v1856
        %v1858 = vpop.f32.mrf.mxu0
        %v1859 = vadd.f32 %v1595, %v1858
        %1860 = vmatprep.mubr.bf16.mxu0 %v919
        %1861 = vmatmul.mubr.bf16.gmra.mxu0 %v918
        %v1862 = vpop.f32.mrf.mxu0
        %v1863 = vadd.f32 %v1591, %v1862
        %v1864 = vpop.f32.mrf.mxu0
        %v1865 = vadd.f32 %v1595, %v1864
        %v1866 = vpop.f32.mrf.mxu0
        %v1867 = vadd.f32 %v1591, %v1866
        %v1868 = vpop.f32.mrf.mxu0
        %v1869 = vadd.f32 %v1595, %v1868
        %1870 = vdwg.mxu0
        %v1871 = vmul.f32 %v1159, 0.088388346
        %v1872 = vmul.f32 %v1161, 0.088388346
        %v1873 = vmul.f32 %v1163, 0.088388346
        %v1874 = vmul.f32 %v1165, 0.088388346
        %v1875 = vmul.f32 %v1169, 0.088388346
        %v1876 = vmul.f32 %v1171, 0.088388346
        %v1877 = vmul.f32 %v1173, 0.088388346
        %v1878 = vmul.f32 %v1175, 0.088388346
        %v1879 = vmul.f32 %v1179, 0.088388346
        %v1880 = vmul.f32 %v1181, 0.088388346
        %v1881 = vmul.f32 %v1183, 0.088388346
        %v1882 = vmul.f32 %v1185, 0.088388346
        %v1883 = vmul.f32 %v1189, 0.088388346
        %v1884 = vmul.f32 %v1191, 0.088388346
        %v1885 = vmul.f32 %v1193, 0.088388346
        %v1886 = vmul.f32 %v1195, 0.088388346
        %v1887 = vmul.f32 %v1199, 0.088388346
        %v1888 = vmul.f32 %v1201, 0.088388346
        %v1889 = vmul.f32 %v1203, 0.088388346
        %v1890 = vmul.f32 %v1205, 0.088388346
        %v1891 = vmul.f32 %v1209, 0.088388346
        %v1892 = vmul.f32 %v1211, 0.088388346
        %v1893 = vmul.f32 %v1213, 0.088388346
        %v1894 = vmul.f32 %v1215, 0.088388346
        %v1895 = vmul.f32 %v1219, 0.088388346
        %v1896 = vmul.f32 %v1221, 0.088388346
        %v1897 = vmul.f32 %v1223, 0.088388346
        %v1898 = vmul.f32 %v1225, 0.088388346
        %v1899 = vmul.f32 %v1229, 0.088388346
        %v1900 = vmul.f32 %v1231, 0.088388346
        %v1901 = vmul.f32 %v1233, 0.088388346
        %v1902 = vmul.f32 %v1235, 0.088388346
        %v1903 = vpack.c.bf16 %v1873, %v1871
        %v1904 = vpack.c.bf16 %v1874, %v1872
        %v1905 = vpack.c.bf16 %v1877, %v1875
        %v1906 = vpack.c.bf16 %v1878, %v1876
        %v1907 = vpack.c.bf16 %v1881, %v1879
        %v1908 = vpack.c.bf16 %v1882, %v1880
        %v1909 = vpack.c.bf16 %v1885, %v1883
        %v1910 = vpack.c.bf16 %v1886, %v1884
        %v1911 = vpack.c.bf16 %v1889, %v1887
        %v1912 = vpack.c.bf16 %v1890, %v1888
        %v1913 = vpack.c.bf16 %v1893, %v1891
        %v1914 = vpack.c.bf16 %v1894, %v1892
        %v1915 = vpack.c.bf16 %v1897, %v1895
        %v1916 = vpack.c.bf16 %v1898, %v1896
        %v1917 = vpack.c.bf16 %v1901, %v1899
        %v1918 = vpack.c.bf16 %v1902, %v1900
        %v1935 = vunpack.c.l.b16 %v1903
        %v1936 = vunpack.c.l.b16 %v1904
        %v1937 = vunpack.c.h.b16 %v1903
        %v1938 = vunpack.c.h.b16 %v1904
        %v1939 = vunpack.c.l.b16 %v1905
        %v1940 = vunpack.c.l.b16 %v1906
        %v1941 = vunpack.c.h.b16 %v1905
        %v1942 = vunpack.c.h.b16 %v1906
        %v1943 = vunpack.c.l.b16 %v1907
        %v1944 = vunpack.c.l.b16 %v1908
        %v1945 = vunpack.c.h.b16 %v1907
        %v1946 = vunpack.c.h.b16 %v1908
        %v1947 = vunpack.c.l.b16 %v1909
        %v1948 = vunpack.c.l.b16 %v1910
        %v1949 = vunpack.c.h.b16 %v1909
        %v1950 = vunpack.c.h.b16 %v1910
        %v1951 = vunpack.c.l.b16 %v1911
        %v1952 = vunpack.c.l.b16 %v1912
        %v1953 = vunpack.c.h.b16 %v1911
        %v1954 = vunpack.c.h.b16 %v1912
        %v1955 = vunpack.c.l.b16 %v1913
        %v1956 = vunpack.c.l.b16 %v1914
        %v1957 = vunpack.c.h.b16 %v1913
        %v1958 = vunpack.c.h.b16 %v1914
        %v1959 = vunpack.c.l.b16 %v1915
        %v1960 = vunpack.c.l.b16 %v1916
        %v1961 = vunpack.c.h.b16 %v1915
        %v1962 = vunpack.c.h.b16 %v1916
        %v1963 = vunpack.c.l.b16 %v1917
        %v1964 = vunpack.c.l.b16 %v1918
        %v1965 = vunpack.c.h.b16 %v1917
        %v1966 = vunpack.c.h.b16 %v1918
        %v1967 = vpack.c.b16 %v1936, %v1935
        %v1968 = vpack.c.b16 %v1938, %v1937
        %v1969 = vpack.c.b16 %v1940, %v1939
        %v1970 = vpack.c.b16 %v1942, %v1941
        %v1971 = vpack.c.b16 %v1944, %v1943
        %v1972 = vpack.c.b16 %v1946, %v1945
        %v1973 = vpack.c.b16 %v1948, %v1947
        %v1974 = vpack.c.b16 %v1950, %v1949
        %v1975 = vpack.c.b16 %v1952, %v1951
        %v1976 = vpack.c.b16 %v1954, %v1953
        %v1977 = vpack.c.b16 %v1956, %v1955
        %v1978 = vpack.c.b16 %v1958, %v1957
        %v1979 = vpack.c.b16 %v1960, %v1959
        %v1980 = vpack.c.b16 %v1962, %v1961
        %v1981 = vpack.c.b16 %v1964, %v1963
        %v1982 = vpack.c.b16 %v1966, %v1965
        %1999 = vst [vmem:[%s421] sm:$0xff] %v1967
        %2000 = vst [vmem:[%s421 + $0x8] sm:$0xff] %v1968
        %2001 = vst [vmem:[%s421 + $0x10] sm:$0xff] %v1969
        %2002 = vst [vmem:[%s421 + $0x18] sm:$0xff] %v1970
        %2003 = vst [vmem:[%s421 + $0x20] sm:$0xff] %v1971
        %2004 = vst [vmem:[%s421 + $0x28] sm:$0xff] %v1972
        %2005 = vst [vmem:[%s421 + $0x30] sm:$0xff] %v1973
        %2006 = vst [vmem:[%s421 + $0x38] sm:$0xff] %v1974
        %2007 = vst [vmem:[%s421 + $0x40] sm:$0xff] %v1975
        %2008 = vst [vmem:[%s421 + $0x48] sm:$0xff] %v1976
        %2009 = vst [vmem:[%s421 + $0x50] sm:$0xff] %v1977
        %2010 = vst [vmem:[%s421 + $0x58] sm:$0xff] %v1978
        %2011 = vst [vmem:[%s421 + $0x60] sm:$0xff] %v1979
        %2012 = vst [vmem:[%s421 + $0x68] sm:$0xff] %v1980
        %2013 = vst [vmem:[%s421 + $0x70] sm:$0xff] %v1981
        %2014 = vst [vmem:[%s421 + $0x78] sm:$0xff] %v1982
        %v2015 = vpack.c.bf16 %v1480, %v1476
        %v2016 = vpack.c.bf16 %v1482, %v1478
        %v2017 = vpack.c.bf16 %v1490, %v1486
        %v2018 = vpack.c.bf16 %v1492, %v1488
        %v2019 = vpack.c.bf16 %v1500, %v1496
        %v2020 = vpack.c.bf16 %v1502, %v1498
        %v2021 = vpack.c.bf16 %v1510, %v1506
        %v2022 = vpack.c.bf16 %v1512, %v1508
        %v2023 = vpack.c.bf16 %v1520, %v1516
        %v2024 = vpack.c.bf16 %v1522, %v1518
        %v2025 = vpack.c.bf16 %v1530, %v1526
        %v2026 = vpack.c.bf16 %v1532, %v1528
        %v2027 = vpack.c.bf16 %v1540, %v1536
        %v2028 = vpack.c.bf16 %v1542, %v1538
        %v2029 = vpack.c.bf16 %v1550, %v1546
        %v2030 = vpack.c.bf16 %v1552, %v1548
        %v2047 = vunpack.c.l.b16 %v2015
        %v2048 = vunpack.c.l.b16 %v2016
        %v2049 = vunpack.c.h.b16 %v2015
        %v2050 = vunpack.c.h.b16 %v2016
        %v2051 = vunpack.c.l.b16 %v2017
        %v2052 = vunpack.c.l.b16 %v2018
        %v2053 = vunpack.c.h.b16 %v2017
        %v2054 = vunpack.c.h.b16 %v2018
        %v2055 = vunpack.c.l.b16 %v2019
        %v2056 = vunpack.c.l.b16 %v2020
        %v2057 = vunpack.c.h.b16 %v2019
        %v2058 = vunpack.c.h.b16 %v2020
        %v2059 = vunpack.c.l.b16 %v2021
        %v2060 = vunpack.c.l.b16 %v2022
        %v2061 = vunpack.c.h.b16 %v2021
        %v2062 = vunpack.c.h.b16 %v2022
        %v2063 = vunpack.c.l.b16 %v2023
        %v2064 = vunpack.c.l.b16 %v2024
        %v2065 = vunpack.c.h.b16 %v2023
        %v2066 = vunpack.c.h.b16 %v2024
        %v2067 = vunpack.c.l.b16 %v2025
        %v2068 = vunpack.c.l.b16 %v2026
        %v2069 = vunpack.c.h.b16 %v2025
        %v2070 = vunpack.c.h.b16 %v2026
        %v2071 = vunpack.c.l.b16 %v2027
        %v2072 = vunpack.c.l.b16 %v2028
        %v2073 = vunpack.c.h.b16 %v2027
        %v2074 = vunpack.c.h.b16 %v2028
        %v2075 = vunpack.c.l.b16 %v2029
        %v2076 = vunpack.c.l.b16 %v2030
        %v2077 = vunpack.c.h.b16 %v2029
        %v2078 = vunpack.c.h.b16 %v2030
        %v2079 = vpack.c.b16 %v2048, %v2047
        %v2080 = vpack.c.b16 %v2050, %v2049
        %v2081 = vpack.c.b16 %v2052, %v2051
        %v2082 = vpack.c.b16 %v2054, %v2053
        %v2083 = vpack.c.b16 %v2056, %v2055
        %v2084 = vpack.c.b16 %v2058, %v2057
        %v2085 = vpack.c.b16 %v2060, %v2059
        %v2086 = vpack.c.b16 %v2062, %v2061
        %v2087 = vpack.c.b16 %v2064, %v2063
        %v2088 = vpack.c.b16 %v2066, %v2065
        %v2089 = vpack.c.b16 %v2068, %v2067
        %v2090 = vpack.c.b16 %v2070, %v2069
        %v2091 = vpack.c.b16 %v2072, %v2071
        %v2092 = vpack.c.b16 %v2074, %v2073
        %v2093 = vpack.c.b16 %v2076, %v2075
        %v2094 = vpack.c.b16 %v2078, %v2077
        %2111 = vst [vmem:[%s428] sm:$0xff] %v2079
        %2112 = vst [vmem:[%s428 + $0x8] sm:$0xff] %v2080
        %2113 = vst [vmem:[%s428 + $0x10] sm:$0xff] %v2081
        %2114 = vst [vmem:[%s428 + $0x18] sm:$0xff] %v2082
        %2115 = vst [vmem:[%s428 + $0x20] sm:$0xff] %v2083
        %2116 = vst [vmem:[%s428 + $0x28] sm:$0xff] %v2084
        %2117 = vst [vmem:[%s428 + $0x30] sm:$0xff] %v2085
        %2118 = vst [vmem:[%s428 + $0x38] sm:$0xff] %v2086
        %2119 = vst [vmem:[%s428 + $0x40] sm:$0xff] %v2087
        %2120 = vst [vmem:[%s428 + $0x48] sm:$0xff] %v2088
        %2121 = vst [vmem:[%s428 + $0x50] sm:$0xff] %v2089
        %2122 = vst [vmem:[%s428 + $0x58] sm:$0xff] %v2090
        %2123 = vst [vmem:[%s428 + $0x60] sm:$0xff] %v2091
        %2124 = vst [vmem:[%s428 + $0x68] sm:$0xff] %v2092
        %2125 = vst [vmem:[%s428 + $0x70] sm:$0xff] %v2093
        %2126 = vst [vmem:[%s428 + $0x78] sm:$0xff] %v2094
        %v2127 = vpack.c.bf16 %v1797, %v1793
        %v2128 = vpack.c.bf16 %v1799, %v1795
        %v2129 = vpack.c.bf16 %v1807, %v1803
        %v2130 = vpack.c.bf16 %v1809, %v1805
        %v2131 = vpack.c.bf16 %v1817, %v1813
        %v2132 = vpack.c.bf16 %v1819, %v1815
        %v2133 = vpack.c.bf16 %v1827, %v1823
        %v2134 = vpack.c.bf16 %v1829, %v1825
        %v2135 = vpack.c.bf16 %v1837, %v1833
        %v2136 = vpack.c.bf16 %v1839, %v1835
        %v2137 = vpack.c.bf16 %v1847, %v1843
        %v2138 = vpack.c.bf16 %v1849, %v1845
        %v2139 = vpack.c.bf16 %v1857, %v1853
        %v2140 = vpack.c.bf16 %v1859, %v1855
        %v2141 = vpack.c.bf16 %v1867, %v1863
        %v2142 = vpack.c.bf16 %v1869, %v1865
        %v2159 = vunpack.c.l.b16 %v2127
        %v2160 = vunpack.c.l.b16 %v2128
        %v2161 = vunpack.c.h.b16 %v2127
        %v2162 = vunpack.c.h.b16 %v2128
        %v2163 = vunpack.c.l.b16 %v2129
        %v2164 = vunpack.c.l.b16 %v2130
        %v2165 = vunpack.c.h.b16 %v2129
        %v2166 = vunpack.c.h.b16 %v2130
        %v2167 = vunpack.c.l.b16 %v2131
        %v2168 = vunpack.c.l.b16 %v2132
        %v2169 = vunpack.c.h.b16 %v2131
        %v2170 = vunpack.c.h.b16 %v2132
        %v2171 = vunpack.c.l.b16 %v2133
        %v2172 = vunpack.c.l.b16 %v2134
        %v2173 = vunpack.c.h.b16 %v2133
        %v2174 = vunpack.c.h.b16 %v2134
        %v2175 = vunpack.c.l.b16 %v2135
        %v2176 = vunpack.c.l.b16 %v2136
        %v2177 = vunpack.c.h.b16 %v2135
        %v2178 = vunpack.c.h.b16 %v2136
        %v2179 = vunpack.c.l.b16 %v2137
        %v2180 = vunpack.c.l.b16 %v2138
        %v2181 = vunpack.c.h.b16 %v2137
        %v2182 = vunpack.c.h.b16 %v2138
        %v2183 = vunpack.c.l.b16 %v2139
        %v2184 = vunpack.c.l.b16 %v2140
        %v2185 = vunpack.c.h.b16 %v2139
        %v2186 = vunpack.c.h.b16 %v2140
        %v2187 = vunpack.c.l.b16 %v2141
        %v2188 = vunpack.c.l.b16 %v2142
        %v2189 = vunpack.c.h.b16 %v2141
        %v2190 = vunpack.c.h.b16 %v2142
        %v2191 = vpack.c.b16 %v2160, %v2159
        %v2192 = vpack.c.b16 %v2162, %v2161
        %v2193 = vpack.c.b16 %v2164, %v2163
        %v2194 = vpack.c.b16 %v2166, %v2165
        %v2195 = vpack.c.b16 %v2168, %v2167
        %v2196 = vpack.c.b16 %v2170, %v2169
        %v2197 = vpack.c.b16 %v2172, %v2171
        %v2198 = vpack.c.b16 %v2174, %v2173
        %v2199 = vpack.c.b16 %v2176, %v2175
        %v2200 = vpack.c.b16 %v2178, %v2177
        %v2201 = vpack.c.b16 %v2180, %v2179
        %v2202 = vpack.c.b16 %v2182, %v2181
        %v2203 = vpack.c.b16 %v2184, %v2183
        %v2204 = vpack.c.b16 %v2186, %v2185
        %v2205 = vpack.c.b16 %v2188, %v2187
        %v2206 = vpack.c.b16 %v2190, %v2189
        %2223 = vst [vmem:[%s435] sm:$0xff] %v2191
        %2224 = vst [vmem:[%s435 + $0x8] sm:$0xff] %v2192
        %2225 = vst [vmem:[%s435 + $0x10] sm:$0xff] %v2193
        %2226 = vst [vmem:[%s435 + $0x18] sm:$0xff] %v2194
        %2227 = vst [vmem:[%s435 + $0x20] sm:$0xff] %v2195
        %2228 = vst [vmem:[%s435 + $0x28] sm:$0xff] %v2196
        %2229 = vst [vmem:[%s435 + $0x30] sm:$0xff] %v2197
        %2230 = vst [vmem:[%s435 + $0x38] sm:$0xff] %v2198
        %2231 = vst [vmem:[%s435 + $0x40] sm:$0xff] %v2199
        %2232 = vst [vmem:[%s435 + $0x48] sm:$0xff] %v2200
        %2233 = vst [vmem:[%s435 + $0x50] sm:$0xff] %v2201
        %2234 = vst [vmem:[%s435 + $0x58] sm:$0xff] %v2202
        %2235 = vst [vmem:[%s435 + $0x60] sm:$0xff] %v2203
        %2236 = vst [vmem:[%s435 + $0x68] sm:$0xff] %v2204
        %2237 = vst [vmem:[%s435 + $0x70] sm:$0xff] %v2205
        %2238 = vst [vmem:[%s435 + $0x78] sm:$0xff] %v2206
        %s2239 = sand.u32 %s208, 1
        %s2240 = scalar_lea.sflag [#allocation4], %s2239
        %s2241 = sand.u32 %s208, 1
        %s2242 = smul.addr %s2241, 128
        %s2243 = scalar_lea.vmem [#allocation10], %s2242
        %s2244 = sand.u32 %s32, 1
        %s2245 = scalar_lea.sflag [#allocation12], %s2244
        %s2246 = sand.u32 %s236, 1
        %s2247 = smul.addr %s2246, 128
        %s2248 = scalar_lea.vmem [#allocation11], %s2247
        %s2249 = sand.u32 %s32, 1
        %s2250 = scalar_lea.sflag [#allocation12], %s2249
        %s2251 = sand.u32 %s264, 1
        %s2252 = smul.addr %s2251, 128
        %s2253 = scalar_lea.vmem [#allocation13], %s2252
        // Predicated region
        $region65: #{tpu_custom_call.1} parent=47 // pred_check
          %p2254 = pneg %p218
        $region66: #{tpu_custom_call.1} parent=47 // pred_check_branch
          %2256 = sbr.rel (%p2254) target = $region68
        $region67: #{tpu_custom_call.1} parent=47 // pred_region
          %s2257 = smul.u32 16, %s37
          %s2259 = ssub.s32 2048, 2048
          %2260 = vsyncadd %s2240, %s2259
          %s2261 = smul.addr %s2257, 2
          %s2262 = smul.addr %s36, 64
          %s2263 = sadd.s32 %s2261, %s2262
          %s2264 = smul.addr %s2263, 64
          %s2265 = scalar_lea.hbm %s7, %s2264
          %s2266 = sshll.u32 %s2243, 4
          %s2267 = int_to_ptr.vmem [resolvable:$true] %s2266
          %2272 = dma.vmem_to_hbm [thread:$0]  %s2267, 2048, %s2265, %s2240, 128, 128, 8
        $region68: #{tpu_custom_call.1} parent=47 // pred_fallthru
          _
        // Predicated region
        $region69: #{tpu_custom_call.1} parent=47 // pred_check
          %p2273 = pneg %p246
        $region70: #{tpu_custom_call.1} parent=47 // pred_check_branch
          %2275 = sbr.rel (%p2273) target = $region72
        $region71: #{tpu_custom_call.1} parent=47 // pred_region
          %s2276 = smul.u32 16, %s37
          %s2278 = ssub.s32 2048, 2048
          %2279 = vsyncadd %s2245, %s2278
          %s2280 = smul.addr %s2276, 2
          %s2281 = smul.addr %s36, 64
          %s2282 = sadd.s32 %s2280, %s2281
          %s2283 = smul.addr %s2282, 64
          %s2284 = scalar_lea.hbm %s8, %s2283
          %s2285 = sshll.u32 %s2248, 4
          %s2286 = int_to_ptr.vmem [resolvable:$true] %s2285
          %2291 = dma.vmem_to_hbm [thread:$0]  %s2286, 2048, %s2284, %s2245, 128, 128, 8
        $region72: #{tpu_custom_call.1} parent=47 // pred_fallthru
          _
        // Predicated region
        $region73: #{tpu_custom_call.1} parent=47 // pred_check
          %p2292 = pneg %p274
        $region74: #{tpu_custom_call.1} parent=47 // pred_check_branch
          %2294 = sbr.rel (%p2292) target = $region76
        $region75: #{tpu_custom_call.1} parent=47 // pred_region
          %s2295 = smul.u32 16, %s37
          %s2297 = ssub.s32 2048, 2048
          %2298 = vsyncadd %s2250, %s2297
          %s2299 = smul.addr %s2295, 2
          %s2300 = smul.addr %s36, 64
          %s2301 = sadd.s32 %s2299, %s2300
          %s2302 = smul.addr %s2301, 64
          %s2303 = scalar_lea.hbm %s9, %s2302
          %s2304 = sshll.u32 %s2253, 4
          %s2305 = int_to_ptr.vmem [resolvable:$true] %s2304
          %2310 = dma.vmem_to_hbm [thread:$0]  %s2305, 2048, %s2303, %s2250, 128, 128, 8
        $region76: #{tpu_custom_call.1} parent=47 // pred_fallthru
          _
      $region48: #{tpu_custom_call.1} parent=5 // pred_fallthru
        _
      %p2311 = scmp.le.s32.totalorder 2, %s27
      // Predicated region
      $region77: #{tpu_custom_call.1} parent=5 // pred_check
        %p2312 = pneg %p2311
      $region78: #{tpu_custom_call.1} parent=5 // pred_check_branch
        %2314 = sbr.rel (%p2312) target = $region80
      $region79: #{tpu_custom_call.1} parent=5 // pred_region
        %s2315 = ssub.s32 %s27, 2
        // Predicated region
        $region81: #{tpu_custom_call.1} parent=79 // pred_check
          %p2316 = pneg %p224
        $region82: #{tpu_custom_call.1} parent=79 // pred_check_branch
          %2318 = sbr.rel (%p2316) target = $region84
        $region83: #{tpu_custom_call.1} parent=79 // pred_region
          %s2319 = sand.u32 %s209, 1
          %s2320 = scalar_lea.sflag [#allocation4], %s2319
          %s2321 = sand.u32 %s209, 1
          %s2322 = smul.addr %s2321, 128
          %s2323 = scalar_lea.vmem [#allocation10], %s2322
          %2324 = dma.done %s2320, 2048
        $region84: #{tpu_custom_call.1} parent=79 // pred_fallthru
          _
        // Predicated region
        $region85: #{tpu_custom_call.1} parent=79 // pred_check
          %p2325 = pneg %p252
        $region86: #{tpu_custom_call.1} parent=79 // pred_check_branch
          %2327 = sbr.rel (%p2325) target = $region88
        $region87: #{tpu_custom_call.1} parent=79 // pred_region
          %s2328 = sand.u32 %s33, 1
          %s2329 = scalar_lea.sflag [#allocation12], %s2328
          %s2330 = sand.u32 %s237, 1
          %s2331 = smul.addr %s2330, 128
          %s2332 = scalar_lea.vmem [#allocation11], %s2331
          %2333 = dma.done %s2329, 2048
        $region88: #{tpu_custom_call.1} parent=79 // pred_fallthru
          _
        // Predicated region
        $region89: #{tpu_custom_call.1} parent=79 // pred_check
          %p2334 = pneg %p280
        $region90: #{tpu_custom_call.1} parent=79 // pred_check_branch
          %2336 = sbr.rel (%p2334) target = $region92
        $region91: #{tpu_custom_call.1} parent=79 // pred_region
          %s2337 = sand.u32 %s33, 1
          %s2338 = scalar_lea.sflag [#allocation12], %s2337
          %s2339 = sand.u32 %s265, 1
          %s2340 = smul.addr %s2339, 128
          %s2341 = scalar_lea.vmem [#allocation13], %s2340
          %2342 = dma.done %s2338, 2048
        $region92: #{tpu_custom_call.1} parent=79 // pred_fallthru
          _
      $region80: #{tpu_custom_call.1} parent=5 // pred_fallthru
        _
    $region6: #{tpu_custom_call.1} parent=1 // loop_footer
      %s31 = sadd.s32 1, %s27
    $region7: #{tpu_custom_call.1} parent=1 // loop_footer_branch
      %26 = sbr.rel target = $region3
    $region8: #{tpu_custom_call.1} parent=1 // loop_exit
      _
    %2343 = vsyncpa [#allocation3], 1
    %s2344 = scalar_lea.sflag [#allocation3], 1
    %2345 = vsyncpa %s2344, 1
    %2346 = vsyncpa [#allocation6], 1
    %2347 = vsyncpa [#allocation9], 1
    %2348 = vsyncpa [#allocation4], 1
    %s2349 = scalar_lea.sflag [#allocation4], 1
    %2350 = vsyncpa %s2349, 1
    %2351 = vsyncpa [#allocation12], 1
    %s2352 = scalar_lea.sflag [#allocation12], 1
    %2353 = vsyncpa %s2352, 1

// kernel: tpu_custom_call.1
$region0: #{tpu_custom_call.1}
  #allocation0 [shape = 'u32[]', space=smem, size = 0x4, offset = 0x4, fixed_abs, tag = 'smem constant byte address 0x4 - core index']
  #allocation1 [shape = 'u32[144,128]{1,0:T(1,128)}', space=vmem, size = 0x12000, scoped, tag = 'internal scratch']
  %s0 = inlined_call_operand.hbm [shape: f32[2,256,256], index: 0, kind: input, shape index: {}]
  %s1 = inlined_call_operand.hbm [shape: bf16[256,256], index: 1, kind: input, shape index: {}]
  %s2 = inlined_call_operand.vmem [shape: f32[1,256], index: 2, kind: input, shape index: {}]
  %s3 = inlined_call_operand.hbm [shape: bf16[256,256], index: 3, kind: input, shape index: {}]
  %s4 = inlined_call_operand.vmem [shape: f32[1,256], index: 4, kind: input, shape index: {}]
  %s5 = inlined_call_operand.hbm [shape: bf16[256,256], index: 5, kind: input, shape index: {}]
  %s6 = inlined_call_operand.vmem [shape: f32[1,256], index: 6, kind: input, shape index: {}]
  %s7 = inlined_call_operand.hbm [shape: bf16[2,256,256], index: 7, kind: output, shape index: {0}]
  %s8 = inlined_call_operand.hbm [shape: bf16[2,256,256], index: 8, kind: output, shape index: {1}]
  %s9 = inlined_call_operand.hbm [shape: bf16[2,256,256], index: 9, kind: output, shape index: {2}]
  %10 = xla_tuple %s7, %s8, %s9
  %s11 = sld [smem:[#allocation0]]
  $region93: #{tpu_custom_call.1} parent=0
    _
  %s13 = ssub.s32 1, %s11
  %s14 = scalar_select 0, %s13, %s11
  $region1: #{tpu_custom_call.1} parent=0
    #allocation2 [shape = 'u8[262144]{0}', space=vmem, size = 0x40000, scoped, tag = 'input window, operand 0']
    #allocation3 [shape = 's32[2]{0}', space=sflag, size = 0x8, scoped, tag = 'scoped memory for tpu_custom_call.1']
    #allocation4 [shape = 's32[2]{0}', space=sflag, size = 0x8, scoped, tag = 'scoped memory for tpu_custom_call.1']
    #allocation5 [shape = 'u8[131072]{0}', space=vmem, size = 0x20000, scoped, tag = 'input window, operand 1, single buffered']
    #allocation6 [shape = 's32[1]{0}', space=sflag, size = 0x4, scoped, tag = 'scoped memory for tpu_custom_call.1']
    #allocation7 [shape = 'u8[131072]{0}', space=vmem, size = 0x20000, scoped, tag = 'input window, operand 3, single buffered']
    #allocation8 [shape = 'u8[131072]{0}', space=vmem, size = 0x20000, scoped, tag = 'input window, operand 5, single buffered']
    #allocation9 [shape = 's32[1]{0}', space=sflag, size = 0x4, scoped, tag = 'scoped memory for tpu_custom_call.1']
    #allocation10 [shape = 'u8[131072]{0}', space=vmem, size = 0x20000, scoped, tag = 'output window, operand 0']
    #allocation11 [shape = 'u8[131072]{0}', space=vmem, size = 0x20000, scoped, tag = 'output window, operand 1']
    #allocation12 [shape = 's32[2]{0}', space=sflag, size = 0x8, scoped, tag = 'scoped memory for tpu_custom_call.1']
    #allocation13 [shape = 'u8[131072]{0}', space=vmem, size = 0x20000, scoped, tag = 'output window, operand 2']
    %15 = vsyncpa [#allocation3], 0
    %s16 = scalar_lea.sflag [#allocation3], 1
    %17 = vsyncpa %s16, 0
    %18 = vsyncpa [#allocation6], 0
    %19 = vsyncpa [#allocation9], 0
    %20 = vsyncpa [#allocation4], 0
    %s21 = scalar_lea.sflag [#allocation4], 1
    %22 = vsyncpa %s21, 0
    %23 = vsyncpa [#allocation12], 0
    %s24 = scalar_lea.sflag [#allocation12], 1
    %25 = vsyncpa %s24, 0
    loop: start=0, step=1, limit=6
    $region2: #{tpu_custom_call.1} parent=1 // loop_pre_header
      _
    $region3: #{tpu_custom_call.1} parent=1 // loop_header
      %s27 = sphi 0, %s31
      %p28 = scmp.ge.s32.totalorder %s27, 6
      %s34 = sphi 0, %s46
      %s35 = sphi 0, %s42
      %s36 = sphi 0, %s34
      %s37 = sphi 0, %s35
      %s38 = sphi 0, %s36
      %s39 = sphi 0, %s37
      %s51 = sphi 0, %s53
      %s54 = sphi 0, %s51
      %s55 = sphi 0, %s54
      %s71 = sphi 0, %s55
      %s75 = sphi 0, %s75
      %s77 = sphi 0, %s75
      %s78 = sphi 0, %s77
      %s92 = sphi 0, %s78
      %s96 = sphi 0, %s96
      %s98 = sphi 0, %s96
      %s99 = sphi 0, %s98
      %s113 = sphi 0, %s99
      %s117 = sphi 0, %s117
      %s119 = sphi 0, %s117
      %s120 = sphi 0, %s119
      %s134 = sphi 0, %s120
      %s138 = sphi 0, %s138
      %s140 = sphi 0, %s138
      %s141 = sphi 0, %s140
      %s155 = sphi 0, %s141
      %s159 = sphi 0, %s159
      %s161 = sphi 0, %s159
      %s162 = sphi 0, %s161
      %s176 = sphi 0, %s162
      %s180 = sphi 0, %s180
      %s182 = sphi 0, %s180
      %s183 = sphi 0, %s182
      %s197 = sphi 0, %s183
      %s205 = sphi 0, %s207
      %s208 = sphi 0, %s205
      %s209 = sphi 0, %s208
      %s225 = sphi 0, %s209
      %s233 = sphi 0, %s235
      %s236 = sphi 0, %s233
      %s237 = sphi 0, %s236
      %s253 = sphi 0, %s237
      %s261 = sphi 0, %s263
      %s264 = sphi 0, %s261
      %s265 = sphi 0, %s264
      %s281 = sphi 0, %s265
    $region4: #{tpu_custom_call.1} parent=1 // loop_header_branch
      %30 = sbr.rel (%p28) target = $region8
    $region5: #{tpu_custom_call.1} parent=1 // loop_body
      %s32 = ssub.s32 %s27, 1
      %s33 = ssub.s32 %s27, 2
      %s40 = sadd.s32 1, %s35
      %p41 = scmp.ge.s32.totalorder %s40, 2
      %s42 = scalar_select %p41, 0, %s40
      %s43 = sadd.s32 1, %s34
      %s44 = scalar_select %p41, %s43, %s34
      %p45 = scmp.ge.s32.totalorder %s44, 2
      %s46 = scalar_select %p45, 0, %s44
      %s47 = ssub.s32 %s34, %s46
      %s48 = ssub.s32 %s35, %s42
      %s49 = sor.u32 %s47, %s48
      %p50 = scmp.eq.s32.totalorder %s49, 0
      %s52 = sadd.s32 %s51, 1
      %s53 = scalar_select %p50, %s51, %s52
      %p56 = pneg %p50
      %p57 = scmp.eq.s32.totalorder %s27, 3
      %p58 = por %p56, %p57
      %p59 = scmp.ne.s32.totalorder %s51, %s54
      %p60 = scmp.eq.s32.totalorder %s27, 0
      %p61 = por %p59, %p60
      %p62 = scmp.ne.s32.totalorder %s51, %s54
      %p63 = scmp.eq.s32.totalorder %s32, 3
      %p64 = por %p62, %p63
      %p65 = scmp.ne.s32.totalorder %s54, %s55
      %p66 = scmp.eq.s32.totalorder %s32, 0
      %p67 = por %p65, %p66
      %p68 = scmp.ne.s32.totalorder %s54, %s55
      %p69 = scmp.eq.s32.totalorder %s33, 3
      %p70 = por %p68, %p69
      %p72 = scmp.ne.s32.totalorder %s55, %s71
      %p73 = scmp.eq.s32.totalorder %s33, 0
      %p74 = por %p72, %p73
      %s76 = sadd.s32 %s75, 1
      %p79 = scmp.eq.s32.totalorder %s27, 3
      %p80 = scmp.ne.s32.totalorder %s75, %s77
      %p81 = scmp.eq.s32.totalorder %s27, 0
      %p82 = por %p80, %p81
      %p83 = scmp.ne.s32.totalorder %s75, %s77
      %p84 = scmp.eq.s32.totalorder %s32, 3
      %p85 = por %p83, %p84
      %p86 = scmp.ne.s32.totalorder %s77, %s78
      %p87 = scmp.eq.s32.totalorder %s32, 0
      %p88 = por %p86, %p87
      %p89 = scmp.ne.s32.totalorder %s77, %s78
      %p90 = scmp.eq.s32.totalorder %s33, 3
      %p91 = por %p89, %p90
      %p93 = scmp.ne.s32.totalorder %s78, %s92
      %p94 = scmp.eq.s32.totalorder %s33, 0
      %p95 = por %p93, %p94
      %s97 = sadd.s32 %s96, 1
      %p100 = scmp.eq.s32.totalorder %s27, 3
      %p101 = scmp.ne.s32.totalorder %s96, %s98
      %p102 = scmp.eq.s32.totalorder %s27, 0
      %p103 = por %p101, %p102
      %p104 = scmp.ne.s32.totalorder %s96, %s98
      %p105 = scmp.eq.s32.totalorder %s32, 3
      %p106 = por %p104, %p105
      %p107 = scmp.ne.s32.totalorder %s98, %s99
      %p108 = scmp.eq.s32.totalorder %s32, 0
      %p109 = por %p107, %p108
      %p110 = scmp.ne.s32.totalorder %s98, %s99
      %p111 = scmp.eq.s32.totalorder %s33, 3
      %p112 = por %p110, %p111
      %p114 = scmp.ne.s32.totalorder %s99, %s113
      %p115 = scmp.eq.s32.totalorder %s33, 0
      %p116 = por %p114, %p115
      %s118 = sadd.s32 %s117, 1
      %p121 = scmp.eq.s32.totalorder %s27, 3
      %p122 = scmp.ne.s32.totalorder %s117, %s119
      %p123 = scmp.eq.s32.totalorder %s27, 0
      %p124 = por %p122, %p123
      %p125 = scmp.ne.s32.totalorder %s117, %s119
      %p126 = scmp.eq.s32.totalorder %s32, 3
      %p127 = por %p125, %p126
      %p128 = scmp.ne.s32.totalorder %s119, %s120
      %p129 = scmp.eq.s32.totalorder %s32, 0
      %p130 = por %p128, %p129
      %p131 = scmp.ne.s32.totalorder %s119, %s120
      %p132 = scmp.eq.s32.totalorder %s33, 3
      %p133 = por %p131, %p132
      %p135 = scmp.ne.s32.totalorder %s120, %s134
      %p136 = scmp.eq.s32.totalorder %s33, 0
      %p137 = por %p135, %p136
      %s139 = sadd.s32 %s138, 1
      %p142 = scmp.eq.s32.totalorder %s27, 3
      %p143 = scmp.ne.s32.totalorder %s138, %s140
      %p144 = scmp.eq.s32.totalorder %s27, 0
      %p145 = por %p143, %p144
      %p146 = scmp.ne.s32.totalorder %s138, %s140
      %p147 = scmp.eq.s32.totalorder %s32, 3
      %p148 = por %p146, %p147
      %p149 = scmp.ne.s32.totalorder %s140, %s141
      %p150 = scmp.eq.s32.totalorder %s32, 0
      %p151 = por %p149, %p150
      %p152 = scmp.ne.s32.totalorder %s140, %s141
      %p153 = scmp.eq.s32.totalorder %s33, 3
      %p154 = por %p152, %p153
      %p156 = scmp.ne.s32.totalorder %s141, %s155
      %p157 = scmp.eq.s32.totalorder %s33, 0
      %p158 = por %p156, %p157
      %s160 = sadd.s32 %s159, 1
      %p163 = scmp.eq.s32.totalorder %s27, 3
      %p164 = scmp.ne.s32.totalorder %s159, %s161
      %p165 = scmp.eq.s32.totalorder %s27, 0
      %p166 = por %p164, %p165
      %p167 = scmp.ne.s32.totalorder %s159, %s161
      %p168 = scmp.eq.s32.totalorder %s32, 3
      %p169 = por %p167, %p168
      %p170 = scmp.ne.s32.totalorder %s161, %s162
      %p171 = scmp.eq.s32.totalorder %s32, 0
      %p172 = por %p170, %p171
      %p173 = scmp.ne.s32.totalorder %s161, %s162
      %p174 = scmp.eq.s32.totalorder %s33, 3
      %p175 = por %p173, %p174
      %p177 = scmp.ne.s32.totalorder %s162, %s176
      %p178 = scmp.eq.s32.totalorder %s33, 0
      %p179 = por %p177, %p178
      %s181 = sadd.s32 %s180, 1
      %p184 = scmp.eq.s32.totalorder %s27, 3
      %p185 = scmp.ne.s32.totalorder %s180, %s182
      %p186 = scmp.eq.s32.totalorder %s27, 0
      %p187 = por %p185, %p186
      %p188 = scmp.ne.s32.totalorder %s180, %s182
      %p189 = scmp.eq.s32.totalorder %s32, 3
      %p190 = por %p188, %p189
      %p191 = scmp.ne.s32.totalorder %s182, %s183
      %p192 = scmp.eq.s32.totalorder %s32, 0
      %p193 = por %p191, %p192
      %p194 = scmp.ne.s32.totalorder %s182, %s183
      %p195 = scmp.eq.s32.totalorder %s33, 3
      %p196 = por %p194, %p195
      %p198 = scmp.ne.s32.totalorder %s183, %s197
      %p199 = scmp.eq.s32.totalorder %s33, 0
      %p200 = por %p198, %p199
      %s201 = ssub.s32 %s34, %s46
      %s202 = ssub.s32 %s35, %s42
      %s203 = sor.u32 %s201, %s202
      %p204 = scmp.eq.s32.totalorder %s203, 0
      %s206 = sadd.s32 %s205, 1
      %s207 = scalar_select %p204, %s205, %s206
      %p210 = pneg %p204
      %p211 = scmp.eq.s32.totalorder %s27, 3
      %p212 = por %p210, %p211
      %p213 = scmp.ne.s32.totalorder %s205, %s208
      %p214 = scmp.eq.s32.totalorder %s27, 0
      %p215 = por %p213, %p214
      %p216 = scmp.ne.s32.totalorder %s205, %s208
      %p217 = scmp.eq.s32.totalorder %s32, 3
      %p218 = por %p216, %p217
      %p219 = scmp.ne.s32.totalorder %s208, %s209
      %p220 = scmp.eq.s32.totalorder %s32, 0
      %p221 = por %p219, %p220
      %p222 = scmp.ne.s32.totalorder %s208, %s209
      %p223 = scmp.eq.s32.totalorder %s33, 3
      %p224 = por %p222, %p223
      %p226 = scmp.ne.s32.totalorder %s209, %s225
      %p227 = scmp.eq.s32.totalorder %s33, 0
      %p228 = por %p226, %p227
      %s229 = ssub.s32 %s34, %s46
      %s230 = ssub.s32 %s35, %s42
      %s231 = sor.u32 %s229, %s230
      %p232 = scmp.eq.s32.totalorder %s231, 0
      %s234 = sadd.s32 %s233, 1
      %s235 = scalar_select %p232, %s233, %s234
      %p238 = pneg %p232
      %p239 = scmp.eq.s32.totalorder %s27, 3
      %p240 = por %p238, %p239
      %p241 = scmp.ne.s32.totalorder %s233, %s236
      %p242 = scmp.eq.s32.totalorder %s27, 0
      %p243 = por %p241, %p242
      %p244 = scmp.ne.s32.totalorder %s233, %s236
      %p245 = scmp.eq.s32.totalorder %s32, 3
      %p246 = por %p244, %p245
      %p247 = scmp.ne.s32.totalorder %s236, %s237
      %p248 = scmp.eq.s32.totalorder %s32, 0
      %p249 = por %p247, %p248
      %p250 = scmp.ne.s32.totalorder %s236, %s237
      %p251 = scmp.eq.s32.totalorder %s33, 3
      %p252 = por %p250, %p251
      %p254 = scmp.ne.s32.totalorder %s237, %s253
      %p255 = scmp.eq.s32.totalorder %s33, 0
      %p256 = por %p254, %p255
      %s257 = ssub.s32 %s34, %s46
      %s258 = ssub.s32 %s35, %s42
      %s259 = sor.u32 %s257, %s258
      %p260 = scmp.eq.s32.totalorder %s259, 0
      %s262 = sadd.s32 %s261, 1
      %s263 = scalar_select %p260, %s261, %s262
      %p266 = pneg %p260
      %p267 = scmp.eq.s32.totalorder %s27, 3
      %p268 = por %p266, %p267
      %p269 = scmp.ne.s32.totalorder %s261, %s264
      %p270 = scmp.eq.s32.totalorder %s27, 0
      %p271 = por %p269, %p270
      %p272 = scmp.ne.s32.totalorder %s261, %s264
      %p273 = scmp.eq.s32.totalorder %s32, 3
      %p274 = por %p272, %p273
      %p275 = scmp.ne.s32.totalorder %s264, %s265
      %p276 = scmp.eq.s32.totalorder %s32, 0
      %p277 = por %p275, %p276
      %p278 = scmp.ne.s32.totalorder %s264, %s265
      %p279 = scmp.eq.s32.totalorder %s33, 3
      %p280 = por %p278, %p279
      %p282 = scmp.ne.s32.totalorder %s265, %s281
      %p283 = scmp.eq.s32.totalorder %s33, 0
      %p284 = por %p282, %p283
      %p285 = scmp.le.s32.totalorder 1, %s27
      %p286 = scmp.lt.s32.totalorder %s27, 5
      %p287 = pnand %p285, %p286
      %p288 = pneg %p287
      // Predicated region
      $region9: #{tpu_custom_call.1} parent=5 // pred_check
        _
      $region10: #{tpu_custom_call.1} parent=5 // pred_check_branch
        %290 = sbr.rel (%p287) target = $region12
      $region11: #{tpu_custom_call.1} parent=5 // pred_region
        %s291 = ssub.s32 %s27, 1
        // Predicated region
        $region13: #{tpu_custom_call.1} parent=11 // pred_check
          %p292 = pneg %p88
        $region14: #{tpu_custom_call.1} parent=11 // pred_check_branch
          %294 = sbr.rel (%p292) target = $region16
        $region15: #{tpu_custom_call.1} parent=11 // pred_region
          %s296 = ssub.s32 4096, 4096
          %297 = vsyncadd [#allocation6], %s296
          %s298 = sshll.u32 [#allocation5], 4
          %s299 = int_to_ptr.vmem [resolvable:$true] %s298
          %304 = dma.hbm_to_vmem [thread:$0]  %s1, 4096, %s299, [#allocation6], 128, 128, 8
        $region16: #{tpu_custom_call.1} parent=11 // pred_fallthru
          _
        // Predicated region
        $region17: #{tpu_custom_call.1} parent=11 // pred_check
          %p305 = pneg %p109
        $region18: #{tpu_custom_call.1} parent=11 // pred_check_branch
          %307 = sbr.rel (%p305) target = $region20
        $region19: #{tpu_custom_call.1} parent=11 // pred_region
          _
        $region20: #{tpu_custom_call.1} parent=11 // pred_fallthru
          _
        // Predicated region
        $region21: #{tpu_custom_call.1} parent=11 // pred_check
          %p308 = pneg %p130
        $region22: #{tpu_custom_call.1} parent=11 // pred_check_branch
          %310 = sbr.rel (%p308) target = $region24
        $region23: #{tpu_custom_call.1} parent=11 // pred_region
          %s312 = ssub.s32 4096, 4096
          %313 = vsyncadd [#allocation6], %s312
          %s314 = sshll.u32 [#allocation7], 4
          %s315 = int_to_ptr.vmem [resolvable:$true] %s314
          %320 = dma.hbm_to_vmem [thread:$0]  %s3, 4096, %s315, [#allocation6], 128, 128, 8
        $region24: #{tpu_custom_call.1} parent=11 // pred_fallthru
          _
        // Predicated region
        $region25: #{tpu_custom_call.1} parent=11 // pred_check
          %p321 = pneg %p151
        $region26: #{tpu_custom_call.1} parent=11 // pred_check_branch
          %323 = sbr.rel (%p321) target = $region28
        $region27: #{tpu_custom_call.1} parent=11 // pred_region
          _
        $region28: #{tpu_custom_call.1} parent=11 // pred_fallthru
          _
        // Predicated region
        $region29: #{tpu_custom_call.1} parent=11 // pred_check
          %p324 = pneg %p172
        $region30: #{tpu_custom_call.1} parent=11 // pred_check_branch
          %326 = sbr.rel (%p324) target = $region32
        $region31: #{tpu_custom_call.1} parent=11 // pred_region
          %s328 = ssub.s32 4096, 4096
          %329 = vsyncadd [#allocation9], %s328
          %s330 = sshll.u32 [#allocation8], 4
          %s331 = int_to_ptr.vmem [resolvable:$true] %s330
          %336 = dma.hbm_to_vmem [thread:$0]  %s5, 4096, %s331, [#allocation9], 128, 128, 8
        $region32: #{tpu_custom_call.1} parent=11 // pred_fallthru
          _
        // Predicated region
        $region33: #{tpu_custom_call.1} parent=11 // pred_check
          %p337 = pneg %p193
        $region34: #{tpu_custom_call.1} parent=11 // pred_check_branch
          %339 = sbr.rel (%p337) target = $region36
        $region35: #{tpu_custom_call.1} parent=11 // pred_region
          _
        $region36: #{tpu_custom_call.1} parent=11 // pred_fallthru
          _
      $region12: #{tpu_custom_call.1} parent=5 // pred_fallthru
        _
      %p340 = scmp.lt.s32.totalorder %s27, 4
      // Predicated region
      $region37: #{tpu_custom_call.1} parent=5 // pred_check
        %p341 = pneg %p340
      $region38: #{tpu_custom_call.1} parent=5 // pred_check_branch
        %343 = sbr.rel (%p341) target = $region40
      $region39: #{tpu_custom_call.1} parent=5 // pred_region
        // Predicated region
        $region41: #{tpu_custom_call.1} parent=39 // pred_check
          %p344 = pneg %p61
        $region42: #{tpu_custom_call.1} parent=39 // pred_check_branch
          %346 = sbr.rel (%p344) target = $region44
        $region43: #{tpu_custom_call.1} parent=39 // pred_region
          %s347 = sand.u32 %s51, 1
          %s348 = scalar_lea.sflag [#allocation3], %s347
          %s349 = sand.u32 %s51, 1
          %s350 = smul.addr %s349, 256
          %s351 = scalar_lea.vmem [#allocation2], %s350
          %s352 = smul.u32 16, %s35
          %s354 = ssub.s32 4096, 4096
          %355 = vsyncadd %s348, %s354
          %s356 = smul.addr %s352, 2
          %s357 = smul.addr %s34, 64
          %s358 = sadd.s32 %s356, %s357
          %s359 = smul.addr %s358, 128
          %s360 = scalar_lea.hbm %s0, %s359
          %s361 = sshll.u32 %s351, 4
          %s362 = int_to_ptr.vmem [resolvable:$true] %s361
          %367 = dma.hbm_to_vmem [thread:$0]  %s360, 4096, %s362, %s348, 256, 256, 16
        $region44: #{tpu_custom_call.1} parent=39 // pred_fallthru
          _
      $region40: #{tpu_custom_call.1} parent=5 // pred_fallthru
        _
      %p368 = scmp.le.s32.totalorder 1, %s27
      %p369 = scmp.lt.s32.totalorder %s27, 5
      %p370 = pnand %p368, %p369
      %p371 = pneg %p370
      // Predicated region
      $region45: #{tpu_custom_call.1} parent=5 // pred_check
        _
      $region46: #{tpu_custom_call.1} parent=5 // pred_check_branch
        %373 = sbr.rel (%p370) target = $region48
      $region47: #{tpu_custom_call.1} parent=5 // pred_region
        %s374 = ssub.s32 %s27, 1
        %s375 = sand.u32 %s54, 1
        %s376 = scalar_lea.sflag [#allocation3], %s375
        %s377 = sand.u32 %s54, 1
        %s378 = smul.addr %s377, 256
        %s379 = scalar_lea.vmem [#allocation2], %s378
        // Predicated region
        $region49: #{tpu_custom_call.1} parent=47 // pred_check
          %p380 = pneg %p67
        $region50: #{tpu_custom_call.1} parent=47 // pred_check_branch
          %382 = sbr.rel (%p380) target = $region52
        $region51: #{tpu_custom_call.1} parent=47 // pred_region
          %383 = dma.done %s376, 4096
        $region52: #{tpu_custom_call.1} parent=47 // pred_fallthru
          _
        // Predicated region
        $region53: #{tpu_custom_call.1} parent=47 // pred_check
          %p384 = pneg %p88
        $region54: #{tpu_custom_call.1} parent=47 // pred_check_branch
          %386 = sbr.rel (%p384) target = $region56
        $region55: #{tpu_custom_call.1} parent=47 // pred_region
          %387 = dma.done [#allocation6], 4096
        $region56: #{tpu_custom_call.1} parent=47 // pred_fallthru
          _
        // Predicated region
        $region57: #{tpu_custom_call.1} parent=47 // pred_check
          %p388 = pneg %p130
        $region58: #{tpu_custom_call.1} parent=47 // pred_check_branch
          %390 = sbr.rel (%p388) target = $region60
        $region59: #{tpu_custom_call.1} parent=47 // pred_region
          %391 = dma.done [#allocation6], 4096
        $region60: #{tpu_custom_call.1} parent=47 // pred_fallthru
          _
        // Predicated region
        $region61: #{tpu_custom_call.1} parent=47 // pred_check
          %p392 = pneg %p172
        $region62: #{tpu_custom_call.1} parent=47 // pred_check_branch
          %394 = sbr.rel (%p392) target = $region64
        $region63: #{tpu_custom_call.1} parent=47 // pred_region
          %395 = dma.done [#allocation9], 4096
        $region64: #{tpu_custom_call.1} parent=47 // pred_fallthru
          _
        %s396 = sand.u32 %s54, 1
        %s397 = scalar_lea.sflag [#allocation3], %s396
        %s398 = sand.u32 %s54, 1
        %s399 = smul.addr %s398, 256
        %s400 = scalar_lea.vmem [#allocation2], %s399
        %p401 = pneg %p67
        %p402 = pneg %p64
        %p403 = pneg %p88
        %p404 = pneg %p85
        %p405 = pneg %p109
        %p406 = pneg %p106
        %p407 = pneg %p130
        %p408 = pneg %p127
        %p409 = pneg %p151
        %p410 = pneg %p148
        %p411 = pneg %p172
        %p412 = pneg %p169
        %p413 = pneg %p193
        %p414 = pneg %p190
        %p415 = pneg %p221
        %p416 = pneg %p218
        %s417 = sand.u32 %s208, 1
        %s418 = scalar_lea.sflag [#allocation4], %s417
        %s419 = sand.u32 %s208, 1
        %s420 = smul.addr %s419, 128
        %s421 = scalar_lea.vmem [#allocation10], %s420
        %p422 = pneg %p249
        %p423 = pneg %p246
        %s424 = sand.u32 %s32, 1
        %s425 = scalar_lea.sflag [#allocation12], %s424
        %s426 = sand.u32 %s236, 1
        %s427 = smul.addr %s426, 128
        %s428 = scalar_lea.vmem [#allocation11], %s427
        %p429 = pneg %p277
        %p430 = pneg %p274
        %s431 = sand.u32 %s32, 1
        %s432 = scalar_lea.sflag [#allocation12], %s431
        %s433 = sand.u32 %s264, 1
        %s434 = smul.addr %s433, 128
        %s435 = scalar_lea.vmem [#allocation13], %s434
        %s436 = smul.u32 16, %s37
        %s437 = smul.u32 16, %s37
        %s438 = smul.u32 16, %s37
        %s439 = smul.u32 16, %s37
        %v440 = vld [vmem:[%s379] sm:$0xff]
        %v441 = vld [vmem:[%s379 + $0x8] sm:$0xff]
        %v442 = vld [vmem:[%s379 + $0x10] sm:$0xff]
        %v443 = vld [vmem:[%s379 + $0x18] sm:$0xff]
        %v444 = vld [vmem:[%s379 + $0x20] sm:$0xff]
        %v445 = vld [vmem:[%s379 + $0x28] sm:$0xff]
        %v446 = vld [vmem:[%s379 + $0x30] sm:$0xff]
        %v447 = vld [vmem:[%s379 + $0x38] sm:$0xff]
        %v448 = vld [vmem:[%s379 + $0x40] sm:$0xff]
        %v449 = vld [vmem:[%s379 + $0x48] sm:$0xff]
        %v450 = vld [vmem:[%s379 + $0x50] sm:$0xff]
        %v451 = vld [vmem:[%s379 + $0x58] sm:$0xff]
        %v452 = vld [vmem:[%s379 + $0x60] sm:$0xff]
        %v453 = vld [vmem:[%s379 + $0x68] sm:$0xff]
        %v454 = vld [vmem:[%s379 + $0x70] sm:$0xff]
        %v455 = vld [vmem:[%s379 + $0x78] sm:$0xff]
        %v456 = vld [vmem:[%s379 + $0x80] sm:$0xff]
        %v457 = vld [vmem:[%s379 + $0x88] sm:$0xff]
        %v458 = vld [vmem:[%s379 + $0x90] sm:$0xff]
        %v459 = vld [vmem:[%s379 + $0x98] sm:$0xff]
        %v460 = vld [vmem:[%s379 + $0xa0] sm:$0xff]
        %v461 = vld [vmem:[%s379 + $0xa8] sm:$0xff]
        %v462 = vld [vmem:[%s379 + $0xb0] sm:$0xff]
        %v463 = vld [vmem:[%s379 + $0xb8] sm:$0xff]
        %v464 = vld [vmem:[%s379 + $0xc0] sm:$0xff]
        %v465 = vld [vmem:[%s379 + $0xc8] sm:$0xff]
        %v466 = vld [vmem:[%s379 + $0xd0] sm:$0xff]
        %v467 = vld [vmem:[%s379 + $0xd8] sm:$0xff]
        %v468 = vld [vmem:[%s379 + $0xe0] sm:$0xff]
        %v469 = vld [vmem:[%s379 + $0xe8] sm:$0xff]
        %v470 = vld [vmem:[%s379 + $0xf0] sm:$0xff]
        %v471 = vld [vmem:[%s379 + $0xf8] sm:$0xff]
        %v472 = vadd.f32 %v440, %v441
        %473 = vadd.xlane.f32.xlu0 %v472
        %v474 = vpop.xlane.xlu0 %473
        %v475 = vadd.f32 %v442, %v443
        %476 = vadd.xlane.f32.xlu0 %v475
        %v477 = vpop.xlane.xlu0 %476
        %v478 = vadd.f32 %v444, %v445
        %479 = vadd.xlane.f32.xlu0 %v478
        %v480 = vpop.xlane.xlu0 %479
        %v481 = vadd.f32 %v446, %v447
        %482 = vadd.xlane.f32.xlu0 %v481
        %v483 = vpop.xlane.xlu0 %482
        %v484 = vadd.f32 %v448, %v449
        %485 = vadd.xlane.f32.xlu0 %v484
        %v486 = vpop.xlane.xlu0 %485
        %v487 = vadd.f32 %v450, %v451
        %488 = vadd.xlane.f32.xlu0 %v487
        %v489 = vpop.xlane.xlu0 %488
        %v490 = vadd.f32 %v452, %v453
        %491 = vadd.xlane.f32.xlu0 %v490
        %v492 = vpop.xlane.xlu0 %491
        %v493 = vadd.f32 %v454, %v455
        %494 = vadd.xlane.f32.xlu0 %v493
        %v495 = vpop.xlane.xlu0 %494
        %v496 = vadd.f32 %v456, %v457
        %497 = vadd.xlane.f32.xlu0 %v496
        %v498 = vpop.xlane.xlu0 %497
        %v499 = vadd.f32 %v458, %v459
        %500 = vadd.xlane.f32.xlu0 %v499
        %v501 = vpop.xlane.xlu0 %500
        %v502 = vadd.f32 %v460, %v461
        %503 = vadd.xlane.f32.xlu0 %v502
        %v504 = vpop.xlane.xlu0 %503
        %v505 = vadd.f32 %v462, %v463
        %506 = vadd.xlane.f32.xlu0 %v505
        %v507 = vpop.xlane.xlu0 %506
        %v508 = vadd.f32 %v464, %v465
        %509 = vadd.xlane.f32.xlu0 %v508
        %v510 = vpop.xlane.xlu0 %509
        %v511 = vadd.f32 %v466, %v467
        %512 = vadd.xlane.f32.xlu0 %v511
        %v513 = vpop.xlane.xlu0 %512
        %v514 = vadd.f32 %v468, %v469
        %515 = vadd.xlane.f32.xlu0 %v514
        %v516 = vpop.xlane.xlu0 %515
        %v517 = vadd.f32 %v470, %v471
        %518 = vadd.xlane.f32.xlu0 %v517
        %v519 = vpop.xlane.xlu0 %518
        %v520 = vmul.f32 %v440, %v440
        %v521 = vmul.f32 %v441, %v441
        %v522 = vmul.f32 %v442, %v442
        %v523 = vmul.f32 %v443, %v443
        %v524 = vmul.f32 %v444, %v444
        %v525 = vmul.f32 %v445, %v445
        %v526 = vmul.f32 %v446, %v446
        %v527 = vmul.f32 %v447, %v447
        %v528 = vmul.f32 %v448, %v448
        %v529 = vmul.f32 %v449, %v449
        %v530 = vmul.f32 %v450, %v450
        %v531 = vmul.f32 %v451, %v451
        %v532 = vmul.f32 %v452, %v452
        %v533 = vmul.f32 %v453, %v453
        %v534 = vmul.f32 %v454, %v454
        %v535 = vmul.f32 %v455, %v455
        %v536 = vmul.f32 %v456, %v456
        %v537 = vmul.f32 %v457, %v457
        %v538 = vmul.f32 %v458, %v458
        %v539 = vmul.f32 %v459, %v459
        %v540 = vmul.f32 %v460, %v460
        %v541 = vmul.f32 %v461, %v461
        %v542 = vmul.f32 %v462, %v462
        %v543 = vmul.f32 %v463, %v463
        %v544 = vmul.f32 %v464, %v464
        %v545 = vmul.f32 %v465, %v465
        %v546 = vmul.f32 %v466, %v466
        %v547 = vmul.f32 %v467, %v467
        %v548 = vmul.f32 %v468, %v468
        %v549 = vmul.f32 %v469, %v469
        %v550 = vmul.f32 %v470, %v470
        %v551 = vmul.f32 %v471, %v471
        %v552 = vadd.f32 %v520, %v521
        %553 = vadd.xlane.f32.xlu0 %v552
        %v554 = vpop.xlane.xlu0 %553
        %v555 = vadd.f32 %v522, %v523
        %556 = vadd.xlane.f32.xlu0 %v555
        %v557 = vpop.xlane.xlu0 %556
        %v558 = vadd.f32 %v524, %v525
        %559 = vadd.xlane.f32.xlu0 %v558
        %v560 = vpop.xlane.xlu0 %559
        %v561 = vadd.f32 %v526, %v527
        %562 = vadd.xlane.f32.xlu0 %v561
        %v563 = vpop.xlane.xlu0 %562
        %v564 = vadd.f32 %v528, %v529
        %565 = vadd.xlane.f32.xlu0 %v564
        %v566 = vpop.xlane.xlu0 %565
        %v567 = vadd.f32 %v530, %v531
        %568 = vadd.xlane.f32.xlu0 %v567
        %v569 = vpop.xlane.xlu0 %568
        %v570 = vadd.f32 %v532, %v533
        %571 = vadd.xlane.f32.xlu0 %v570
        %v572 = vpop.xlane.xlu0 %571
        %v573 = vadd.f32 %v534, %v535
        %574 = vadd.xlane.f32.xlu0 %v573
        %v575 = vpop.xlane.xlu0 %574
        %v576 = vadd.f32 %v536, %v537
        %577 = vadd.xlane.f32.xlu0 %v576
        %v578 = vpop.xlane.xlu0 %577
        %v579 = vadd.f32 %v538, %v539
        %580 = vadd.xlane.f32.xlu0 %v579
        %v581 = vpop.xlane.xlu0 %580
        %v582 = vadd.f32 %v540, %v541
        %583 = vadd.xlane.f32.xlu0 %v582
        %v584 = vpop.xlane.xlu0 %583
        %v585 = vadd.f32 %v542, %v543
        %586 = vadd.xlane.f32.xlu0 %v585
        %v587 = vpop.xlane.xlu0 %586
        %v588 = vadd.f32 %v544, %v545
        %589 = vadd.xlane.f32.xlu0 %v588
        %v590 = vpop.xlane.xlu0 %589
        %v591 = vadd.f32 %v546, %v547
        %592 = vadd.xlane.f32.xlu0 %v591
        %v593 = vpop.xlane.xlu0 %592
        %v594 = vadd.f32 %v548, %v549
        %595 = vadd.xlane.f32.xlu0 %v594
        %v596 = vpop.xlane.xlu0 %595
        %v597 = vadd.f32 %v550, %v551
        %598 = vadd.xlane.f32.xlu0 %v597
        %v599 = vpop.xlane.xlu0 %598
        %v600 = vmul.f32 %v474, 0.00390625
        %v601 = vmul.f32 %v477, 0.00390625
        %v602 = vmul.f32 %v480, 0.00390625
        %v603 = vmul.f32 %v483, 0.00390625
        %v604 = vmul.f32 %v486, 0.00390625
        %v605 = vmul.f32 %v489, 0.00390625
        %v606 = vmul.f32 %v492, 0.00390625
        %v607 = vmul.f32 %v495, 0.00390625
        %v608 = vmul.f32 %v498, 0.00390625
        %v609 = vmul.f32 %v501, 0.00390625
        %v610 = vmul.f32 %v504, 0.00390625
        %v611 = vmul.f32 %v507, 0.00390625
        %v612 = vmul.f32 %v510, 0.00390625
        %v613 = vmul.f32 %v513, 0.00390625
        %v614 = vmul.f32 %v516, 0.00390625
        %v615 = vmul.f32 %v519, 0.00390625
        %v616 = vmul.f32 %v600, 256.0
        %v617 = vmul.f32 %v601, 256.0
        %v618 = vmul.f32 %v602, 256.0
        %v619 = vmul.f32 %v603, 256.0
        %v620 = vmul.f32 %v604, 256.0
        %v621 = vmul.f32 %v605, 256.0
        %v622 = vmul.f32 %v606, 256.0
        %v623 = vmul.f32 %v607, 256.0
        %v624 = vmul.f32 %v608, 256.0
        %v625 = vmul.f32 %v609, 256.0
        %v626 = vmul.f32 %v610, 256.0
        %v627 = vmul.f32 %v611, 256.0
        %v628 = vmul.f32 %v612, 256.0
        %v629 = vmul.f32 %v613, 256.0
        %v630 = vmul.f32 %v614, 256.0
        %v631 = vmul.f32 %v615, 256.0
        %v632 = vmul.f32 %v616, %v600
        %v633 = vmul.f32 %v617, %v601
        %v634 = vmul.f32 %v618, %v602
        %v635 = vmul.f32 %v619, %v603
        %v636 = vmul.f32 %v620, %v604
        %v637 = vmul.f32 %v621, %v605
        %v638 = vmul.f32 %v622, %v606
        %v639 = vmul.f32 %v623, %v607
        %v640 = vmul.f32 %v624, %v608
        %v641 = vmul.f32 %v625, %v609
        %v642 = vmul.f32 %v626, %v610
        %v643 = vmul.f32 %v627, %v611
        %v644 = vmul.f32 %v628, %v612
        %v645 = vmul.f32 %v629, %v613
        %v646 = vmul.f32 %v630, %v614
        %v647 = vmul.f32 %v631, %v615
        %v648 = vsub.f32 %v554, %v632
        %v649 = vsub.f32 %v557, %v633
        %v650 = vsub.f32 %v560, %v634
        %v651 = vsub.f32 %v563, %v635
        %v652 = vsub.f32 %v566, %v636
        %v653 = vsub.f32 %v569, %v637
        %v654 = vsub.f32 %v572, %v638
        %v655 = vsub.f32 %v575, %v639
        %v656 = vsub.f32 %v578, %v640
        %v657 = vsub.f32 %v581, %v641
        %v658 = vsub.f32 %v584, %v642
        %v659 = vsub.f32 %v587, %v643
        %v660 = vsub.f32 %v590, %v644
        %v661 = vsub.f32 %v593, %v645
        %v662 = vsub.f32 %v596, %v646
        %v663 = vsub.f32 %v599, %v647
        %v664 = vmul.f32 %v648, 0.003921569
        %v665 = vmul.f32 %v649, 0.003921569
        %v666 = vmul.f32 %v650, 0.003921569
        %v667 = vmul.f32 %v651, 0.003921569
        %v668 = vmul.f32 %v652, 0.003921569
        %v669 = vmul.f32 %v653, 0.003921569
        %v670 = vmul.f32 %v654, 0.003921569
        %v671 = vmul.f32 %v655, 0.003921569
        %v672 = vmul.f32 %v656, 0.003921569
        %v673 = vmul.f32 %v657, 0.003921569
        %v674 = vmul.f32 %v658, 0.003921569
        %v675 = vmul.f32 %v659, 0.003921569
        %v676 = vmul.f32 %v660, 0.003921569
        %v677 = vmul.f32 %v661, 0.003921569
        %v678 = vmul.f32 %v662, 0.003921569
        %v679 = vmul.f32 %v663, 0.003921569
        %v680 = vmax.f32 %v664, 0.0
        %v681 = vmax.f32 %v665, 0.0
        %v682 = vmax.f32 %v666, 0.0
        %v683 = vmax.f32 %v667, 0.0
        %v684 = vmax.f32 %v668, 0.0
        %v685 = vmax.f32 %v669, 0.0
        %v686 = vmax.f32 %v670, 0.0
        %v687 = vmax.f32 %v671, 0.0
        %v688 = vmax.f32 %v672, 0.0
        %v689 = vmax.f32 %v673, 0.0
        %v690 = vmax.f32 %v674, 0.0
        %v691 = vmax.f32 %v675, 0.0
        %v692 = vmax.f32 %v676, 0.0
        %v693 = vmax.f32 %v677, 0.0
        %v694 = vmax.f32 %v678, 0.0
        %v695 = vmax.f32 %v679, 0.0
        %v696 = vrsqrt.pop %v680
        %v697 = vmul.f32 %v680, %v696
        %vm698 = vcmp.eq.f32.partialorder %v680, inf
        %v699 = vsel %vm698, %v680, %v697
        %vm700 = vcmp.eq.f32.partialorder %v680, 0.0
        %v701 = vand.u32 %v680, 2147483648
        %v702 = vsel %vm700, %v701, %v699
        %v703 = vrsqrt.pop %v681
        %v704 = vmul.f32 %v681, %v703
        %vm705 = vcmp.eq.f32.partialorder %v681, inf
        %v706 = vsel %vm705, %v681, %v704
        %vm707 = vcmp.eq.f32.partialorder %v681, 0.0
        %v708 = vand.u32 %v681, 2147483648
        %v709 = vsel %vm707, %v708, %v706
        %v710 = vrsqrt.pop %v682
        %v711 = vmul.f32 %v682, %v710
        %vm712 = vcmp.eq.f32.partialorder %v682, inf
        %v713 = vsel %vm712, %v682, %v711
        %vm714 = vcmp.eq.f32.partialorder %v682, 0.0
        %v715 = vand.u32 %v682, 2147483648
        %v716 = vsel %vm714, %v715, %v713
        %v717 = vrsqrt.pop %v683
        %v718 = vmul.f32 %v683, %v717
        %vm719 = vcmp.eq.f32.partialorder %v683, inf
        %v720 = vsel %vm719, %v683, %v718
        %vm721 = vcmp.eq.f32.partialorder %v683, 0.0
        %v722 = vand.u32 %v683, 2147483648
        %v723 = vsel %vm721, %v722, %v720
        %v724 = vrsqrt.pop %v684
        %v725 = vmul.f32 %v684, %v724
        %vm726 = vcmp.eq.f32.partialorder %v684, inf
        %v727 = vsel %vm726, %v684, %v725
        %vm728 = vcmp.eq.f32.partialorder %v684, 0.0
        %v729 = vand.u32 %v684, 2147483648
        %v730 = vsel %vm728, %v729, %v727
        %v731 = vrsqrt.pop %v685
        %v732 = vmul.f32 %v685, %v731
        %vm733 = vcmp.eq.f32.partialorder %v685, inf
        %v734 = vsel %vm733, %v685, %v732
        %vm735 = vcmp.eq.f32.partialorder %v685, 0.0
        %v736 = vand.u32 %v685, 2147483648
        %v737 = vsel %vm735, %v736, %v734
        %v738 = vrsqrt.pop %v686
        %v739 = vmul.f32 %v686, %v738
        %vm740 = vcmp.eq.f32.partialorder %v686, inf
        %v741 = vsel %vm740, %v686, %v739
        %vm742 = vcmp.eq.f32.partialorder %v686, 0.0
        %v743 = vand.u32 %v686, 2147483648
        %v744 = vsel %vm742, %v743, %v741
        %v745 = vrsqrt.pop %v687
        %v746 = vmul.f32 %v687, %v745
        %vm747 = vcmp.eq.f32.partialorder %v687, inf
        %v748 = vsel %vm747, %v687, %v746
        %vm749 = vcmp.eq.f32.partialorder %v687, 0.0
        %v750 = vand.u32 %v687, 2147483648
        %v751 = vsel %vm749, %v750, %v748
        %v752 = vrsqrt.pop %v688
        %v753 = vmul.f32 %v688, %v752
        %vm754 = vcmp.eq.f32.partialorder %v688, inf
        %v755 = vsel %vm754, %v688, %v753
        %vm756 = vcmp.eq.f32.partialorder %v688, 0.0
        %v757 = vand.u32 %v688, 2147483648
        %v758 = vsel %vm756, %v757, %v755
        %v759 = vrsqrt.pop %v689
        %v760 = vmul.f32 %v689, %v759
        %vm761 = vcmp.eq.f32.partialorder %v689, inf
        %v762 = vsel %vm761, %v689, %v760
        %vm763 = vcmp.eq.f32.partialorder %v689, 0.0
        %v764 = vand.u32 %v689, 2147483648
        %v765 = vsel %vm763, %v764, %v762
        %v766 = vrsqrt.pop %v690
        %v767 = vmul.f32 %v690, %v766
        %vm768 = vcmp.eq.f32.partialorder %v690, inf
        %v769 = vsel %vm768, %v690, %v767
        %vm770 = vcmp.eq.f32.partialorder %v690, 0.0
        %v771 = vand.u32 %v690, 2147483648
        %v772 = vsel %vm770, %v771, %v769
        %v773 = vrsqrt.pop %v691
        %v774 = vmul.f32 %v691, %v773
        %vm775 = vcmp.eq.f32.partialorder %v691, inf
        %v776 = vsel %vm775, %v691, %v774
        %vm777 = vcmp.eq.f32.partialorder %v691, 0.0
        %v778 = vand.u32 %v691, 2147483648
        %v779 = vsel %vm777, %v778, %v776
        %v780 = vrsqrt.pop %v692
        %v781 = vmul.f32 %v692, %v780
        %vm782 = vcmp.eq.f32.partialorder %v692, inf
        %v783 = vsel %vm782, %v692, %v781
        %vm784 = vcmp.eq.f32.partialorder %v692, 0.0
        %v785 = vand.u32 %v692, 2147483648
        %v786 = vsel %vm784, %v785, %v783
        %v787 = vrsqrt.pop %v693
        %v788 = vmul.f32 %v693, %v787
        %vm789 = vcmp.eq.f32.partialorder %v693, inf
        %v790 = vsel %vm789, %v693, %v788
        %vm791 = vcmp.eq.f32.partialorder %v693, 0.0
        %v792 = vand.u32 %v693, 2147483648
        %v793 = vsel %vm791, %v792, %v790
        %v794 = vrsqrt.pop %v694
        %v795 = vmul.f32 %v694, %v794
        %vm796 = vcmp.eq.f32.partialorder %v694, inf
        %v797 = vsel %vm796, %v694, %v795
        %vm798 = vcmp.eq.f32.partialorder %v694, 0.0
        %v799 = vand.u32 %v694, 2147483648
        %v800 = vsel %vm798, %v799, %v797
        %v801 = vrsqrt.pop %v695
        %v802 = vmul.f32 %v695, %v801
        %vm803 = vcmp.eq.f32.partialorder %v695, inf
        %v804 = vsel %vm803, %v695, %v802
        %vm805 = vcmp.eq.f32.partialorder %v695, 0.0
        %v806 = vand.u32 %v695, 2147483648
        %v807 = vsel %vm805, %v806, %v804
        %v808 = vsub.f32 %v440, %v600
        %v809 = vsub.f32 %v441, %v600
        %v810 = vsub.f32 %v442, %v601
        %v811 = vsub.f32 %v443, %v601
        %v812 = vsub.f32 %v444, %v602
        %v813 = vsub.f32 %v445, %v602
        %v814 = vsub.f32 %v446, %v603
        %v815 = vsub.f32 %v447, %v603
        %v816 = vsub.f32 %v448, %v604
        %v817 = vsub.f32 %v449, %v604
        %v818 = vsub.f32 %v450, %v605
        %v819 = vsub.f32 %v451, %v605
        %v820 = vsub.f32 %v452, %v606
        %v821 = vsub.f32 %v453, %v606
        %v822 = vsub.f32 %v454, %v607
        %v823 = vsub.f32 %v455, %v607
        %v824 = vsub.f32 %v456, %v608
        %v825 = vsub.f32 %v457, %v608
        %v826 = vsub.f32 %v458, %v609
        %v827 = vsub.f32 %v459, %v609
        %v828 = vsub.f32 %v460, %v610
        %v829 = vsub.f32 %v461, %v610
        %v830 = vsub.f32 %v462, %v611
        %v831 = vsub.f32 %v463, %v611
        %v832 = vsub.f32 %v464, %v612
        %v833 = vsub.f32 %v465, %v612
        %v834 = vsub.f32 %v466, %v613
        %v835 = vsub.f32 %v467, %v613
        %v836 = vsub.f32 %v468, %v614
        %v837 = vsub.f32 %v469, %v614
        %v838 = vsub.f32 %v470, %v615
        %v839 = vsub.f32 %v471, %v615
        %v840 = vadd.f32 %v702, 1e-06
        %v841 = vadd.f32 %v709, 1e-06
        %v842 = vadd.f32 %v716, 1e-06
        %v843 = vadd.f32 %v723, 1e-06
        %v844 = vadd.f32 %v730, 1e-06
        %v845 = vadd.f32 %v737, 1e-06
        %v846 = vadd.f32 %v744, 1e-06
        %v847 = vadd.f32 %v751, 1e-06
        %v848 = vadd.f32 %v758, 1e-06
        %v849 = vadd.f32 %v765, 1e-06
        %v850 = vadd.f32 %v772, 1e-06
        %v851 = vadd.f32 %v779, 1e-06
        %v852 = vadd.f32 %v786, 1e-06
        %v853 = vadd.f32 %v793, 1e-06
        %v854 = vadd.f32 %v800, 1e-06
        %v855 = vadd.f32 %v807, 1e-06
        %v856 = vrcp.pop %v840
        %v857 = vmul.f32 %v808, %v856
        %v858 = vmul.f32 %v809, %v856
        %v859 = vrcp.pop %v841
        %v860 = vmul.f32 %v810, %v859
        %v861 = vmul.f32 %v811, %v859
        %v862 = vrcp.pop %v842
        %v863 = vmul.f32 %v812, %v862
        %v864 = vmul.f32 %v813, %v862
        %v865 = vrcp.pop %v843
        %v866 = vmul.f32 %v814, %v865
        %v867 = vmul.f32 %v815, %v865
        %v868 = vrcp.pop %v844
        %v869 = vmul.f32 %v816, %v868
        %v870 = vmul.f32 %v817, %v868
        %v871 = vrcp.pop %v845
        %v872 = vmul.f32 %v818, %v871
        %v873 = vmul.f32 %v819, %v871
        %v874 = vrcp.pop %v846
        %v875 = vmul.f32 %v820, %v874
        %v876 = vmul.f32 %v821, %v874
        %v877 = vrcp.pop %v847
        %v878 = vmul.f32 %v822, %v877
        %v879 = vmul.f32 %v823, %v877
        %v880 = vrcp.pop %v848
        %v881 = vmul.f32 %v824, %v880
        %v882 = vmul.f32 %v825, %v880
        %v883 = vrcp.pop %v849
        %v884 = vmul.f32 %v826, %v883
        %v885 = vmul.f32 %v827, %v883
        %v886 = vrcp.pop %v850
        %v887 = vmul.f32 %v828, %v886
        %v888 = vmul.f32 %v829, %v886
        %v889 = vrcp.pop %v851
        %v890 = vmul.f32 %v830, %v889
        %v891 = vmul.f32 %v831, %v889
        %v892 = vrcp.pop %v852
        %v893 = vmul.f32 %v832, %v892
        %v894 = vmul.f32 %v833, %v892
        %v895 = vrcp.pop %v853
        %v896 = vmul.f32 %v834, %v895
        %v897 = vmul.f32 %v835, %v895
        %v898 = vrcp.pop %v854
        %v899 = vmul.f32 %v836, %v898
        %v900 = vmul.f32 %v837, %v898
        %v901 = vrcp.pop %v855
        %v902 = vmul.f32 %v838, %v901
        %v903 = vmul.f32 %v839, %v901
        %v904 = vpack.c.bf16 %v860, %v857
        %v905 = vpack.c.bf16 %v861, %v858
        %v906 = vpack.c.bf16 %v866, %v863
        %v907 = vpack.c.bf16 %v867, %v864
        %v908 = vpack.c.bf16 %v872, %v869
        %v909 = vpack.c.bf16 %v873, %v870
        %v910 = vpack.c.bf16 %v878, %v875
        %v911 = vpack.c.bf16 %v879, %v876
        %v912 = vpack.c.bf16 %v884, %v881
        %v913 = vpack.c.bf16 %v885, %v882
        %v914 = vpack.c.bf16 %v890, %v887
        %v915 = vpack.c.bf16 %v891, %v888
        %v916 = vpack.c.bf16 %v896, %v893
        %v917 = vpack.c.bf16 %v897, %v894
        %v918 = vpack.c.bf16 %v902, %v899
        %v919 = vpack.c.bf16 %v903, %v900
        %v920 = vld [vmem:[#allocation5] sm:$0xff]
        %v921 = vld [vmem:[#allocation5 + $0x8] sm:$0xff]
        %v922 = vld [vmem:[#allocation5 + $0x10] sm:$0xff]
        %v923 = vld [vmem:[#allocation5 + $0x18] sm:$0xff]
        %v924 = vld [vmem:[#allocation5 + $0x20] sm:$0xff]
        %v925 = vld [vmem:[#allocation5 + $0x28] sm:$0xff]
        %v926 = vld [vmem:[#allocation5 + $0x30] sm:$0xff]
        %v927 = vld [vmem:[#allocation5 + $0x38] sm:$0xff]
        %v928 = vld [vmem:[#allocation5 + $0x40] sm:$0xff]
        %v929 = vld [vmem:[#allocation5 + $0x48] sm:$0xff]
        %v930 = vld [vmem:[#allocation5 + $0x50] sm:$0xff]
        %v931 = vld [vmem:[#allocation5 + $0x58] sm:$0xff]
        %v932 = vld [vmem:[#allocation5 + $0x60] sm:$0xff]
        %v933 = vld [vmem:[#allocation5 + $0x68] sm:$0xff]
        %v934 = vld [vmem:[#allocation5 + $0x70] sm:$0xff]
        %v935 = vld [vmem:[#allocation5 + $0x78] sm:$0xff]
        %v936 = vld [vmem:[#allocation5 + $0x80] sm:$0xff]
        %v937 = vld [vmem:[#allocation5 + $0x88] sm:$0xff]
        %v938 = vld [vmem:[#allocation5 + $0x90] sm:$0xff]
        %v939 = vld [vmem:[#allocation5 + $0x98] sm:$0xff]
        %v940 = vld [vmem:[#allocation5 + $0xa0] sm:$0xff]
        %v941 = vld [vmem:[#allocation5 + $0xa8] sm:$0xff]
        %v942 = vld [vmem:[#allocation5 + $0xb0] sm:$0xff]
        %v943 = vld [vmem:[#allocation5 + $0xb8] sm:$0xff]
        %v944 = vld [vmem:[#allocation5 + $0xc0] sm:$0xff]
        %v945 = vld [vmem:[#allocation5 + $0xc8] sm:$0xff]
        %v946 = vld [vmem:[#allocation5 + $0xd0] sm:$0xff]
        %v947 = vld [vmem:[#allocation5 + $0xd8] sm:$0xff]
        %v948 = vld [vmem:[#allocation5 + $0xe0] sm:$0xff]
        %v949 = vld [vmem:[#allocation5 + $0xe8] sm:$0xff]
        %v950 = vld [vmem:[#allocation5 + $0xf0] sm:$0xff]
        %v951 = vld [vmem:[#allocation5 + $0xf8] sm:$0xff]
        %v952 = vld [vmem:[%s2] sm:$0x3]
        %v954 = vlaneseq
        %v955 = vshrl.u32 %v954, 7
        %v956 = vsub.s32 0, %v955
        %v957 = vrot.slane %v952, %v956
        %v958 = vlaneseq
        %v959 = vshrl.u32 %v958, 7
        %v960 = vsub.s32 1, %v959
        %v961 = vrot.slane %v952, %v960
        %v996 = vunpack.c.l.b16 %v920
        %v997 = vunpack.c.h.b16 %v920
        %v998 = vunpack.c.l.b16 %v921
        %v999 = vunpack.c.h.b16 %v921
        %v1000 = vunpack.c.l.b16 %v922
        %v1001 = vunpack.c.h.b16 %v922
        %v1002 = vunpack.c.l.b16 %v923
        %v1003 = vunpack.c.h.b16 %v923
        %v1004 = vunpack.c.l.b16 %v924
        %v1005 = vunpack.c.h.b16 %v924
        %v1006 = vunpack.c.l.b16 %v925
        %v1007 = vunpack.c.h.b16 %v925
        %v1008 = vunpack.c.l.b16 %v926
        %v1009 = vunpack.c.h.b16 %v926
        %v1010 = vunpack.c.l.b16 %v927
        %v1011 = vunpack.c.h.b16 %v927
        %v1012 = vunpack.c.l.b16 %v928
        %v1013 = vunpack.c.h.b16 %v928
        %v1014 = vunpack.c.l.b16 %v929
        %v1015 = vunpack.c.h.b16 %v929
        %v1016 = vunpack.c.l.b16 %v930
        %v1017 = vunpack.c.h.b16 %v930
        %v1018 = vunpack.c.l.b16 %v931
        %v1019 = vunpack.c.h.b16 %v931
        %v1020 = vunpack.c.l.b16 %v932
        %v1021 = vunpack.c.h.b16 %v932
        %v1022 = vunpack.c.l.b16 %v933
        %v1023 = vunpack.c.h.b16 %v933
        %v1024 = vunpack.c.l.b16 %v934
        %v1025 = vunpack.c.h.b16 %v934
        %v1026 = vunpack.c.l.b16 %v935
        %v1027 = vunpack.c.h.b16 %v935
        %v1028 = vunpack.c.l.b16 %v936
        %v1029 = vunpack.c.h.b16 %v936
        %v1030 = vunpack.c.l.b16 %v937
        %v1031 = vunpack.c.h.b16 %v937
        %v1032 = vunpack.c.l.b16 %v938
        %v1033 = vunpack.c.h.b16 %v938
        %v1034 = vunpack.c.l.b16 %v939
        %v1035 = vunpack.c.h.b16 %v939
        %v1036 = vunpack.c.l.b16 %v940
        %v1037 = vunpack.c.h.b16 %v940
        %v1038 = vunpack.c.l.b16 %v941
        %v1039 = vunpack.c.h.b16 %v941
        %v1040 = vunpack.c.l.b16 %v942
        %v1041 = vunpack.c.h.b16 %v942
        %v1042 = vunpack.c.l.b16 %v943
        %v1043 = vunpack.c.h.b16 %v943
        %v1044 = vunpack.c.l.b16 %v944
        %v1045 = vunpack.c.h.b16 %v944
        %v1046 = vunpack.c.l.b16 %v945
        %v1047 = vunpack.c.h.b16 %v945
        %v1048 = vunpack.c.l.b16 %v946
        %v1049 = vunpack.c.h.b16 %v946
        %v1050 = vunpack.c.l.b16 %v947
        %v1051 = vunpack.c.h.b16 %v947
        %v1052 = vunpack.c.l.b16 %v948
        %v1053 = vunpack.c.h.b16 %v948
        %v1054 = vunpack.c.l.b16 %v949
        %v1055 = vunpack.c.h.b16 %v949
        %v1056 = vunpack.c.l.b16 %v950
        %v1057 = vunpack.c.h.b16 %v950
        %v1058 = vunpack.c.l.b16 %v951
        %v1059 = vunpack.c.h.b16 %v951
        %v1060 = vpack.c.b16 %v998, %v996
        %v1061 = vpack.c.b16 %v999, %v997
        %v1062 = vpack.c.b16 %v1002, %v1000
        %v1063 = vpack.c.b16 %v1003, %v1001
        %v1064 = vpack.c.b16 %v1006, %v1004
        %v1065 = vpack.c.b16 %v1007, %v1005
        %v1066 = vpack.c.b16 %v1010, %v1008
        %v1067 = vpack.c.b16 %v1011, %v1009
        %v1068 = vpack.c.b16 %v1014, %v1012
        %v1069 = vpack.c.b16 %v1015, %v1013
        %v1070 = vpack.c.b16 %v1018, %v1016
        %v1071 = vpack.c.b16 %v1019, %v1017
        %v1072 = vpack.c.b16 %v1022, %v1020
        %v1073 = vpack.c.b16 %v1023, %v1021
        %v1074 = vpack.c.b16 %v1026, %v1024
        %v1075 = vpack.c.b16 %v1027, %v1025
        %v1076 = vpack.c.b16 %v1030, %v1028
        %v1077 = vpack.c.b16 %v1031, %v1029
        %v1078 = vpack.c.b16 %v1034, %v1032
        %v1079 = vpack.c.b16 %v1035, %v1033
        %v1080 = vpack.c.b16 %v1038, %v1036
        %v1081 = vpack.c.b16 %v1039, %v1037
        %v1082 = vpack.c.b16 %v1042, %v1040
        %v1083 = vpack.c.b16 %v1043, %v1041
        %v1084 = vpack.c.b16 %v1046, %v1044
        %v1085 = vpack.c.b16 %v1047, %v1045
        %v1086 = vpack.c.b16 %v1050, %v1048
        %v1087 = vpack.c.b16 %v1051, %v1049
        %v1088 = vpack.c.b16 %v1054, %v1052
        %v1089 = vpack.c.b16 %v1055, %v1053
        %v1090 = vpack.c.b16 %v1058, %v1056
        %v1091 = vpack.c.b16 %v1059, %v1057
        %1124 = vmatprep.subr.bf16.mxu0 %v1075
        %1125 = vmatpush1.bf16.msra.mxu0 %v1074
        %1126 = vmatprep.subr.bf16.mxu0 %v1073
        %1127 = vmatpush1.bf16.msra.mxu0 %v1072
        %1128 = vmatprep.subr.bf16.mxu0 %v1071
        %1129 = vmatpush1.bf16.msra.mxu0 %v1070
        %1130 = vmatprep.subr.bf16.mxu0 %v1069
        %1131 = vmatpush1.bf16.msra.mxu0 %v1068
        %1132 = vmatprep.subr.bf16.mxu0 %v1067
        %1133 = vmatpush1.bf16.msra.mxu0 %v1066
        %1134 = vmatprep.subr.bf16.mxu0 %v1065
        %1135 = vmatpush1.bf16.msra.mxu0 %v1064
        %1136 = vmatprep.subr.bf16.mxu0 %v1063
        %1137 = vmatpush1.bf16.msra.mxu0 %v1062
        %1138 = vmatprep.subr.bf16.mxu0 %v1061
        %1139 = vmatpush1.bf16.msra.mxu0 %v1060
        %1140 = vmatprep.subr.bf16.mxu0 %v1091
        %1141 = vmatpush2.bf16.msra.mxu0 %v1090
        %1142 = vmatprep.subr.bf16.mxu0 %v1089
        %1143 = vmatpush2.bf16.msra.mxu0 %v1088
        %1144 = vmatprep.subr.bf16.mxu0 %v1087
        %1145 = vmatpush2.bf16.msra.mxu0 %v1086
        %1146 = vmatprep.subr.bf16.mxu0 %v1085
        %1147 = vmatpush2.bf16.msra.mxu0 %v1084
        %1148 = vmatprep.subr.bf16.mxu0 %v1083
        %1149 = vmatpush2.bf16.msra.mxu0 %v1082
        %1150 = vmatprep.subr.bf16.mxu0 %v1081
        %1151 = vmatpush2.bf16.msra.mxu0 %v1080
        %1152 = vmatprep.subr.bf16.mxu0 %v1079
        %1153 = vmatpush2.bf16.msra.mxu0 %v1078
        %1154 = vmatprep.subr.bf16.mxu0 %v1077
        %1155 = vmatpush2.bf16.msra.mxu0 %v1076
        %1156 = vmatprep.mubr.bf16.mxu0 %v905
        %1157 = vmatmul.mubr.bf16.gmra.mxu0 %v904
        %v1158 = vpop.f32.mrf.mxu0
        %v1159 = vadd.f32 %v957, %v1158
        %v1160 = vpop.f32.mrf.mxu0
        %v1161 = vadd.f32 %v961, %v1160
        %v1162 = vpop.f32.mrf.mxu0
        %v1163 = vadd.f32 %v957, %v1162
        %v1164 = vpop.f32.mrf.mxu0
        %v1165 = vadd.f32 %v961, %v1164
        %1166 = vmatprep.mubr.bf16.mxu0 %v907
        %1167 = vmatmul.mubr.bf16.gmra.mxu0 %v906
        %v1168 = vpop.f32.mrf.mxu0
        %v1169 = vadd.f32 %v957, %v1168
        %v1170 = vpop.f32.mrf.mxu0
        %v1171 = vadd.f32 %v961, %v1170
        %v1172 = vpop.f32.mrf.mxu0
        %v1173 = vadd.f32 %v957, %v1172
        %v1174 = vpop.f32.mrf.mxu0
        %v1175 = vadd.f32 %v961, %v1174
        %1176 = vmatprep.mubr.bf16.mxu0 %v909
        %1177 = vmatmul.mubr.bf16.gmra.mxu0 %v908
        %v1178 = vpop.f32.mrf.mxu0
        %v1179 = vadd.f32 %v957, %v1178
        %v1180 = vpop.f32.mrf.mxu0
        %v1181 = vadd.f32 %v961, %v1180
        %v1182 = vpop.f32.mrf.mxu0
        %v1183 = vadd.f32 %v957, %v1182
        %v1184 = vpop.f32.mrf.mxu0
        %v1185 = vadd.f32 %v961, %v1184
        %1186 = vmatprep.mubr.bf16.mxu0 %v911
        %1187 = vmatmul.mubr.bf16.gmra.mxu0 %v910
        %v1188 = vpop.f32.mrf.mxu0
        %v1189 = vadd.f32 %v957, %v1188
        %v1190 = vpop.f32.mrf.mxu0
        %v1191 = vadd.f32 %v961, %v1190
        %v1192 = vpop.f32.mrf.mxu0
        %v1193 = vadd.f32 %v957, %v1192
        %v1194 = vpop.f32.mrf.mxu0
        %v1195 = vadd.f32 %v961, %v1194
        %1196 = vmatprep.mubr.bf16.mxu0 %v913
        %1197 = vmatmul.mubr.bf16.gmra.mxu0 %v912
        %v1198 = vpop.f32.mrf.mxu0
        %v1199 = vadd.f32 %v957, %v1198
        %v1200 = vpop.f32.mrf.mxu0
        %v1201 = vadd.f32 %v961, %v1200
        %v1202 = vpop.f32.mrf.mxu0
        %v1203 = vadd.f32 %v957, %v1202
        %v1204 = vpop.f32.mrf.mxu0
        %v1205 = vadd.f32 %v961, %v1204
        %1206 = vmatprep.mubr.bf16.mxu0 %v915
        %1207 = vmatmul.mubr.bf16.gmra.mxu0 %v914
        %v1208 = vpop.f32.mrf.mxu0
        %v1209 = vadd.f32 %v957, %v1208
        %v1210 = vpop.f32.mrf.mxu0
        %v1211 = vadd.f32 %v961, %v1210
        %v1212 = vpop.f32.mrf.mxu0
        %v1213 = vadd.f32 %v957, %v1212
        %v1214 = vpop.f32.mrf.mxu0
        %v1215 = vadd.f32 %v961, %v1214
        %1216 = vmatprep.mubr.bf16.mxu0 %v917
        %1217 = vmatmul.mubr.bf16.gmra.mxu0 %v916
        %v1218 = vpop.f32.mrf.mxu0
        %v1219 = vadd.f32 %v957, %v1218
        %v1220 = vpop.f32.mrf.mxu0
        %v1221 = vadd.f32 %v961, %v1220
        %v1222 = vpop.f32.mrf.mxu0
        %v1223 = vadd.f32 %v957, %v1222
        %v1224 = vpop.f32.mrf.mxu0
        %v1225 = vadd.f32 %v961, %v1224
        %1226 = vmatprep.mubr.bf16.mxu0 %v919
        %1227 = vmatmul.mubr.bf16.gmra.mxu0 %v918
        %v1228 = vpop.f32.mrf.mxu0
        %v1229 = vadd.f32 %v957, %v1228
        %v1230 = vpop.f32.mrf.mxu0
        %v1231 = vadd.f32 %v961, %v1230
        %v1232 = vpop.f32.mrf.mxu0
        %v1233 = vadd.f32 %v957, %v1232
        %v1234 = vpop.f32.mrf.mxu0
        %v1235 = vadd.f32 %v961, %v1234
        %1236 = vdwg.mxu0
        %v1237 = vld [vmem:[#allocation7] sm:$0xff]
        %v1238 = vld [vmem:[#allocation7 + $0x8] sm:$0xff]
        %v1239 = vld [vmem:[#allocation7 + $0x10] sm:$0xff]
        %v1240 = vld [vmem:[#allocation7 + $0x18] sm:$0xff]
        %v1241 = vld [vmem:[#allocation7 + $0x20] sm:$0xff]
        %v1242 = vld [vmem:[#allocation7 + $0x28] sm:$0xff]
        %v1243 = vld [vmem:[#allocation7 + $0x30] sm:$0xff]
        %v1244 = vld [vmem:[#allocation7 + $0x38] sm:$0xff]
        %v1245 = vld [vmem:[#allocation7 + $0x40] sm:$0xff]
        %v1246 = vld [vmem:[#allocation7 + $0x48] sm:$0xff]
        %v1247 = vld [vmem:[#allocation7 + $0x50] sm:$0xff]
        %v1248 = vld [vmem:[#allocation7 + $0x58] sm:$0xff]
        %v1249 = vld [vmem:[#allocation7 + $0x60] sm:$0xff]
        %v1250 = vld [vmem:[#allocation7 + $0x68] sm:$0xff]
        %v1251 = vld [vmem:[#allocation7 + $0x70] sm:$0xff]
        %v1252 = vld [vmem:[#allocation7 + $0x78] sm:$0xff]
        %v1253 = vld [vmem:[#allocation7 + $0x80] sm:$0xff]
        %v1254 = vld [vmem:[#allocation7 + $0x88] sm:$0xff]
        %v1255 = vld [vmem:[#allocation7 + $0x90] sm:$0xff]
        %v1256 = vld [vmem:[#allocation7 + $0x98] sm:$0xff]
        %v1257 = vld [vmem:[#allocation7 + $0xa0] sm:$0xff]
        %v1258 = vld [vmem:[#allocation7 + $0xa8] sm:$0xff]
        %v1259 = vld [vmem:[#allocation7 + $0xb0] sm:$0xff]
        %v1260 = vld [vmem:[#allocation7 + $0xb8] sm:$0xff]
        %v1261 = vld [vmem:[#allocation7 + $0xc0] sm:$0xff]
        %v1262 = vld [vmem:[#allocation7 + $0xc8] sm:$0xff]
        %v1263 = vld [vmem:[#allocation7 + $0xd0] sm:$0xff]
        %v1264 = vld [vmem:[#allocation7 + $0xd8] sm:$0xff]
        %v1265 = vld [vmem:[#allocation7 + $0xe0] sm:$0xff]
        %v1266 = vld [vmem:[#allocation7 + $0xe8] sm:$0xff]
        %v1267 = vld [vmem:[#allocation7 + $0xf0] sm:$0xff]
        %v1268 = vld [vmem:[#allocation7 + $0xf8] sm:$0xff]
        %v1269 = vld [vmem:[%s4] sm:$0x3]
        %v1271 = vlaneseq
        %v1272 = vshrl.u32 %v1271, 7
        %v1273 = vsub.s32 0, %v1272
        %v1274 = vrot.slane %v1269, %v1273
        %v1275 = vlaneseq
        %v1276 = vshrl.u32 %v1275, 7
        %v1277 = vsub.s32 1, %v1276
        %v1278 = vrot.slane %v1269, %v1277
        %v1313 = vunpack.c.l.b16 %v1237
        %v1314 = vunpack.c.h.b16 %v1237
        %v1315 = vunpack.c.l.b16 %v1238
        %v1316 = vunpack.c.h.b16 %v1238
        %v1317 = vunpack.c.l.b16 %v1239
        %v1318 = vunpack.c.h.b16 %v1239
        %v1319 = vunpack.c.l.b16 %v1240
        %v1320 = vunpack.c.h.b16 %v1240
        %v1321 = vunpack.c.l.b16 %v1241
        %v1322 = vunpack.c.h.b16 %v1241
        %v1323 = vunpack.c.l.b16 %v1242
        %v1324 = vunpack.c.h.b16 %v1242
        %v1325 = vunpack.c.l.b16 %v1243
        %v1326 = vunpack.c.h.b16 %v1243
        %v1327 = vunpack.c.l.b16 %v1244
        %v1328 = vunpack.c.h.b16 %v1244
        %v1329 = vunpack.c.l.b16 %v1245
        %v1330 = vunpack.c.h.b16 %v1245
        %v1331 = vunpack.c.l.b16 %v1246
        %v1332 = vunpack.c.h.b16 %v1246
        %v1333 = vunpack.c.l.b16 %v1247
        %v1334 = vunpack.c.h.b16 %v1247
        %v1335 = vunpack.c.l.b16 %v1248
        %v1336 = vunpack.c.h.b16 %v1248
        %v1337 = vunpack.c.l.b16 %v1249
        %v1338 = vunpack.c.h.b16 %v1249
        %v1339 = vunpack.c.l.b16 %v1250
        %v1340 = vunpack.c.h.b16 %v1250
        %v1341 = vunpack.c.l.b16 %v1251
        %v1342 = vunpack.c.h.b16 %v1251
        %v1343 = vunpack.c.l.b16 %v1252
        %v1344 = vunpack.c.h.b16 %v1252
        %v1345 = vunpack.c.l.b16 %v1253
        %v1346 = vunpack.c.h.b16 %v1253
        %v1347 = vunpack.c.l.b16 %v1254
        %v1348 = vunpack.c.h.b16 %v1254
        %v1349 = vunpack.c.l.b16 %v1255
        %v1350 = vunpack.c.h.b16 %v1255
        %v1351 = vunpack.c.l.b16 %v1256
        %v1352 = vunpack.c.h.b16 %v1256
        %v1353 = vunpack.c.l.b16 %v1257
        %v1354 = vunpack.c.h.b16 %v1257
        %v1355 = vunpack.c.l.b16 %v1258
        %v1356 = vunpack.c.h.b16 %v1258
        %v1357 = vunpack.c.l.b16 %v1259
        %v1358 = vunpack.c.h.b16 %v1259
        %v1359 = vunpack.c.l.b16 %v1260
        %v1360 = vunpack.c.h.b16 %v1260
        %v1361 = vunpack.c.l.b16 %v1261
        %v1362 = vunpack.c.h.b16 %v1261
        %v1363 = vunpack.c.l.b16 %v1262
        %v1364 = vunpack.c.h.b16 %v1262
        %v1365 = vunpack.c.l.b16 %v1263
        %v1366 = vunpack.c.h.b16 %v1263
        %v1367 = vunpack.c.l.b16 %v1264
        %v1368 = vunpack.c.h.b16 %v1264
        %v1369 = vunpack.c.l.b16 %v1265
        %v1370 = vunpack.c.h.b16 %v1265
        %v1371 = vunpack.c.l.b16 %v1266
        %v1372 = vunpack.c.h.b16 %v1266
        %v1373 = vunpack.c.l.b16 %v1267
        %v1374 = vunpack.c.h.b16 %v1267
        %v1375 = vunpack.c.l.b16 %v1268
        %v1376 = vunpack.c.h.b16 %v1268
        %v1377 = vpack.c.b16 %v1315, %v1313
        %v1378 = vpack.c.b16 %v1316, %v1314
        %v1379 = vpack.c.b16 %v1319, %v1317
        %v1380 = vpack.c.b16 %v1320, %v1318
        %v1381 = vpack.c.b16 %v1323, %v1321
        %v1382 = vpack.c.b16 %v1324, %v1322
        %v1383 = vpack.c.b16 %v1327, %v1325
        %v1384 = vpack.c.b16 %v1328, %v1326
        %v1385 = vpack.c.b16 %v1331, %v1329
        %v1386 = vpack.c.b16 %v1332, %v1330
        %v1387 = vpack.c.b16 %v1335, %v1333
        %v1388 = vpack.c.b16 %v1336, %v1334
        %v1389 = vpack.c.b16 %v1339, %v1337
        %v1390 = vpack.c.b16 %v1340, %v1338
        %v1391 = vpack.c.b16 %v1343, %v1341
        %v1392 = vpack.c.b16 %v1344, %v1342
        %v1393 = vpack.c.b16 %v1347, %v1345
        %v1394 = vpack.c.b16 %v1348, %v1346
        %v1395 = vpack.c.b16 %v1351, %v1349
        %v1396 = vpack.c.b16 %v1352, %v1350
        %v1397 = vpack.c.b16 %v1355, %v1353
        %v1398 = vpack.c.b16 %v1356, %v1354
        %v1399 = vpack.c.b16 %v1359, %v1357
        %v1400 = vpack.c.b16 %v1360, %v1358
        %v1401 = vpack.c.b16 %v1363, %v1361
        %v1402 = vpack.c.b16 %v1364, %v1362
        %v1403 = vpack.c.b16 %v1367, %v1365
        %v1404 = vpack.c.b16 %v1368, %v1366
        %v1405 = vpack.c.b16 %v1371, %v1369
        %v1406 = vpack.c.b16 %v1372, %v1370
        %v1407 = vpack.c.b16 %v1375, %v1373
        %v1408 = vpack.c.b16 %v1376, %v1374
        %1441 = vmatprep.subr.bf16.mxu0 %v1392
        %1442 = vmatpush1.bf16.msra.mxu0 %v1391
        %1443 = vmatprep.subr.bf16.mxu0 %v1390
        %1444 = vmatpush1.bf16.msra.mxu0 %v1389
        %1445 = vmatprep.subr.bf16.mxu0 %v1388
        %1446 = vmatpush1.bf16.msra.mxu0 %v1387
        %1447 = vmatprep.subr.bf16.mxu0 %v1386
        %1448 = vmatpush1.bf16.msra.mxu0 %v1385
        %1449 = vmatprep.subr.bf16.mxu0 %v1384
        %1450 = vmatpush1.bf16.msra.mxu0 %v1383
        %1451 = vmatprep.subr.bf16.mxu0 %v1382
        %1452 = vmatpush1.bf16.msra.mxu0 %v1381
        %1453 = vmatprep.subr.bf16.mxu0 %v1380
        %1454 = vmatpush1.bf16.msra.mxu0 %v1379
        %1455 = vmatprep.subr.bf16.mxu0 %v1378
        %1456 = vmatpush1.bf16.msra.mxu0 %v1377
        %1457 = vmatprep.subr.bf16.mxu0 %v1408
        %1458 = vmatpush2.bf16.msra.mxu0 %v1407
        %1459 = vmatprep.subr.bf16.mxu0 %v1406
        %1460 = vmatpush2.bf16.msra.mxu0 %v1405
        %1461 = vmatprep.subr.bf16.mxu0 %v1404
        %1462 = vmatpush2.bf16.msra.mxu0 %v1403
        %1463 = vmatprep.subr.bf16.mxu0 %v1402
        %1464 = vmatpush2.bf16.msra.mxu0 %v1401
        %1465 = vmatprep.subr.bf16.mxu0 %v1400
        %1466 = vmatpush2.bf16.msra.mxu0 %v1399
        %1467 = vmatprep.subr.bf16.mxu0 %v1398
        %1468 = vmatpush2.bf16.msra.mxu0 %v1397
        %1469 = vmatprep.subr.bf16.mxu0 %v1396
        %1470 = vmatpush2.bf16.msra.mxu0 %v1395
        %1471 = vmatprep.subr.bf16.mxu0 %v1394
        %1472 = vmatpush2.bf16.msra.mxu0 %v1393
        %1473 = vmatprep.mubr.bf16.mxu0 %v905
        %1474 = vmatmul.mubr.bf16.gmra.mxu0 %v904
        %v1475 = vpop.f32.mrf.mxu0
        %v1476 = vadd.f32 %v1274, %v1475
        %v1477 = vpop.f32.mrf.mxu0
        %v1478 = vadd.f32 %v1278, %v1477
        %v1479 = vpop.f32.mrf.mxu0
        %v1480 = vadd.f32 %v1274, %v1479
        %v1481 = vpop.f32.mrf.mxu0
        %v1482 = vadd.f32 %v1278, %v1481
        %1483 = vmatprep.mubr.bf16.mxu0 %v907
        %1484 = vmatmul.mubr.bf16.gmra.mxu0 %v906
        %v1485 = vpop.f32.mrf.mxu0
        %v1486 = vadd.f32 %v1274, %v1485
        %v1487 = vpop.f32.mrf.mxu0
        %v1488 = vadd.f32 %v1278, %v1487
        %v1489 = vpop.f32.mrf.mxu0
        %v1490 = vadd.f32 %v1274, %v1489
        %v1491 = vpop.f32.mrf.mxu0
        %v1492 = vadd.f32 %v1278, %v1491
        %1493 = vmatprep.mubr.bf16.mxu0 %v909
        %1494 = vmatmul.mubr.bf16.gmra.mxu0 %v908
        %v1495 = vpop.f32.mrf.mxu0
        %v1496 = vadd.f32 %v1274, %v1495
        %v1497 = vpop.f32.mrf.mxu0
        %v1498 = vadd.f32 %v1278, %v1497
        %v1499 = vpop.f32.mrf.mxu0
        %v1500 = vadd.f32 %v1274, %v1499
        %v1501 = vpop.f32.mrf.mxu0
        %v1502 = vadd.f32 %v1278, %v1501
        %1503 = vmatprep.mubr.bf16.mxu0 %v911
        %1504 = vmatmul.mubr.bf16.gmra.mxu0 %v910
        %v1505 = vpop.f32.mrf.mxu0
        %v1506 = vadd.f32 %v1274, %v1505
        %v1507 = vpop.f32.mrf.mxu0
        %v1508 = vadd.f32 %v1278, %v1507
        %v1509 = vpop.f32.mrf.mxu0
        %v1510 = vadd.f32 %v1274, %v1509
        %v1511 = vpop.f32.mrf.mxu0
        %v1512 = vadd.f32 %v1278, %v1511
        %1513 = vmatprep.mubr.bf16.mxu0 %v913
        %1514 = vmatmul.mubr.bf16.gmra.mxu0 %v912
        %v1515 = vpop.f32.mrf.mxu0
        %v1516 = vadd.f32 %v1274, %v1515
        %v1517 = vpop.f32.mrf.mxu0
        %v1518 = vadd.f32 %v1278, %v1517
        %v1519 = vpop.f32.mrf.mxu0
        %v1520 = vadd.f32 %v1274, %v1519
        %v1521 = vpop.f32.mrf.mxu0
        %v1522 = vadd.f32 %v1278, %v1521
        %1523 = vmatprep.mubr.bf16.mxu0 %v915
        %1524 = vmatmul.mubr.bf16.gmra.mxu0 %v914
        %v1525 = vpop.f32.mrf.mxu0
        %v1526 = vadd.f32 %v1274, %v1525
        %v1527 = vpop.f32.mrf.mxu0
        %v1528 = vadd.f32 %v1278, %v1527
        %v1529 = vpop.f32.mrf.mxu0
        %v1530 = vadd.f32 %v1274, %v1529
        %v1531 = vpop.f32.mrf.mxu0
        %v1532 = vadd.f32 %v1278, %v1531
        %1533 = vmatprep.mubr.bf16.mxu0 %v917
        %1534 = vmatmul.mubr.bf16.gmra.mxu0 %v916
        %v1535 = vpop.f32.mrf.mxu0
        %v1536 = vadd.f32 %v1274, %v1535
        %v1537 = vpop.f32.mrf.mxu0
        %v1538 = vadd.f32 %v1278, %v1537
        %v1539 = vpop.f32.mrf.mxu0
        %v1540 = vadd.f32 %v1274, %v1539
        %v1541 = vpop.f32.mrf.mxu0
        %v1542 = vadd.f32 %v1278, %v1541
        %1543 = vmatprep.mubr.bf16.mxu0 %v919
        %1544 = vmatmul.mubr.bf16.gmra.mxu0 %v918
        %v1545 = vpop.f32.mrf.mxu0
        %v1546 = vadd.f32 %v1274, %v1545
        %v1547 = vpop.f32.mrf.mxu0
        %v1548 = vadd.f32 %v1278, %v1547
        %v1549 = vpop.f32.mrf.mxu0
        %v1550 = vadd.f32 %v1274, %v1549
        %v1551 = vpop.f32.mrf.mxu0
        %v1552 = vadd.f32 %v1278, %v1551
        %1553 = vdwg.mxu0
        %v1554 = vld [vmem:[#allocation8] sm:$0xff]
        %v1555 = vld [vmem:[#allocation8 + $0x8] sm:$0xff]
        %v1556 = vld [vmem:[#allocation8 + $0x10] sm:$0xff]
        %v1557 = vld [vmem:[#allocation8 + $0x18] sm:$0xff]
        %v1558 = vld [vmem:[#allocation8 + $0x20] sm:$0xff]
        %v1559 = vld [vmem:[#allocation8 + $0x28] sm:$0xff]
        %v1560 = vld [vmem:[#allocation8 + $0x30] sm:$0xff]
        %v1561 = vld [vmem:[#allocation8 + $0x38] sm:$0xff]
        %v1562 = vld [vmem:[#allocation8 + $0x40] sm:$0xff]
        %v1563 = vld [vmem:[#allocation8 + $0x48] sm:$0xff]
        %v1564 = vld [vmem:[#allocation8 + $0x50] sm:$0xff]
        %v1565 = vld [vmem:[#allocation8 + $0x58] sm:$0xff]
        %v1566 = vld [vmem:[#allocation8 + $0x60] sm:$0xff]
        %v1567 = vld [vmem:[#allocation8 + $0x68] sm:$0xff]
        %v1568 = vld [vmem:[#allocation8 + $0x70] sm:$0xff]
        %v1569 = vld [vmem:[#allocation8 + $0x78] sm:$0xff]
        %v1570 = vld [vmem:[#allocation8 + $0x80] sm:$0xff]
        %v1571 = vld [vmem:[#allocation8 + $0x88] sm:$0xff]
        %v1572 = vld [vmem:[#allocation8 + $0x90] sm:$0xff]
        %v1573 = vld [vmem:[#allocation8 + $0x98] sm:$0xff]
        %v1574 = vld [vmem:[#allocation8 + $0xa0] sm:$0xff]
        %v1575 = vld [vmem:[#allocation8 + $0xa8] sm:$0xff]
        %v1576 = vld [vmem:[#allocation8 + $0xb0] sm:$0xff]
        %v1577 = vld [vmem:[#allocation8 + $0xb8] sm:$0xff]
        %v1578 = vld [vmem:[#allocation8 + $0xc0] sm:$0xff]
        %v1579 = vld [vmem:[#allocation8 + $0xc8] sm:$0xff]
        %v1580 = vld [vmem:[#allocation8 + $0xd0] sm:$0xff]
        %v1581 = vld [vmem:[#allocation8 + $0xd8] sm:$0xff]
        %v1582 = vld [vmem:[#allocation8 + $0xe0] sm:$0xff]
        %v1583 = vld [vmem:[#allocation8 + $0xe8] sm:$0xff]
        %v1584 = vld [vmem:[#allocation8 + $0xf0] sm:$0xff]
        %v1585 = vld [vmem:[#allocation8 + $0xf8] sm:$0xff]
        %v1586 = vld [vmem:[%s6] sm:$0x3]
        %v1588 = vlaneseq
        %v1589 = vshrl.u32 %v1588, 7
        %v1590 = vsub.s32 0, %v1589
        %v1591 = vrot.slane %v1586, %v1590
        %v1592 = vlaneseq
        %v1593 = vshrl.u32 %v1592, 7
        %v1594 = vsub.s32 1, %v1593
        %v1595 = vrot.slane %v1586, %v1594
        %v1630 = vunpack.c.l.b16 %v1554
        %v1631 = vunpack.c.h.b16 %v1554
        %v1632 = vunpack.c.l.b16 %v1555
        %v1633 = vunpack.c.h.b16 %v1555
        %v1634 = vunpack.c.l.b16 %v1556
        %v1635 = vunpack.c.h.b16 %v1556
        %v1636 = vunpack.c.l.b16 %v1557
        %v1637 = vunpack.c.h.b16 %v1557
        %v1638 = vunpack.c.l.b16 %v1558
        %v1639 = vunpack.c.h.b16 %v1558
        %v1640 = vunpack.c.l.b16 %v1559
        %v1641 = vunpack.c.h.b16 %v1559
        %v1642 = vunpack.c.l.b16 %v1560
        %v1643 = vunpack.c.h.b16 %v1560
        %v1644 = vunpack.c.l.b16 %v1561
        %v1645 = vunpack.c.h.b16 %v1561
        %v1646 = vunpack.c.l.b16 %v1562
        %v1647 = vunpack.c.h.b16 %v1562
        %v1648 = vunpack.c.l.b16 %v1563
        %v1649 = vunpack.c.h.b16 %v1563
        %v1650 = vunpack.c.l.b16 %v1564
        %v1651 = vunpack.c.h.b16 %v1564
        %v1652 = vunpack.c.l.b16 %v1565
        %v1653 = vunpack.c.h.b16 %v1565
        %v1654 = vunpack.c.l.b16 %v1566
        %v1655 = vunpack.c.h.b16 %v1566
        %v1656 = vunpack.c.l.b16 %v1567
        %v1657 = vunpack.c.h.b16 %v1567
        %v1658 = vunpack.c.l.b16 %v1568
        %v1659 = vunpack.c.h.b16 %v1568
        %v1660 = vunpack.c.l.b16 %v1569
        %v1661 = vunpack.c.h.b16 %v1569
        %v1662 = vunpack.c.l.b16 %v1570
        %v1663 = vunpack.c.h.b16 %v1570
        %v1664 = vunpack.c.l.b16 %v1571
        %v1665 = vunpack.c.h.b16 %v1571
        %v1666 = vunpack.c.l.b16 %v1572
        %v1667 = vunpack.c.h.b16 %v1572
        %v1668 = vunpack.c.l.b16 %v1573
        %v1669 = vunpack.c.h.b16 %v1573
        %v1670 = vunpack.c.l.b16 %v1574
        %v1671 = vunpack.c.h.b16 %v1574
        %v1672 = vunpack.c.l.b16 %v1575
        %v1673 = vunpack.c.h.b16 %v1575
        %v1674 = vunpack.c.l.b16 %v1576
        %v1675 = vunpack.c.h.b16 %v1576
        %v1676 = vunpack.c.l.b16 %v1577
        %v1677 = vunpack.c.h.b16 %v1577
        %v1678 = vunpack.c.l.b16 %v1578
        %v1679 = vunpack.c.h.b16 %v1578
        %v1680 = vunpack.c.l.b16 %v1579
        %v1681 = vunpack.c.h.b16 %v1579
        %v1682 = vunpack.c.l.b16 %v1580
        %v1683 = vunpack.c.h.b16 %v1580
        %v1684 = vunpack.c.l.b16 %v1581
        %v1685 = vunpack.c.h.b16 %v1581
        %v1686 = vunpack.c.l.b16 %v1582
        %v1687 = vunpack.c.h.b16 %v1582
        %v1688 = vunpack.c.l.b16 %v1583
        %v1689 = vunpack.c.h.b16 %v1583
        %v1690 = vunpack.c.l.b16 %v1584
        %v1691 = vunpack.c.h.b16 %v1584
        %v1692 = vunpack.c.l.b16 %v1585
        %v1693 = vunpack.c.h.b16 %v1585
        %v1694 = vpack.c.b16 %v1632, %v1630
        %v1695 = vpack.c.b16 %v1633, %v1631
        %v1696 = vpack.c.b16 %v1636, %v1634
        %v1697 = vpack.c.b16 %v1637, %v1635
        %v1698 = vpack.c.b16 %v1640, %v1638
        %v1699 = vpack.c.b16 %v1641, %v1639
        %v1700 = vpack.c.b16 %v1644, %v1642
        %v1701 = vpack.c.b16 %v1645, %v1643
        %v1702 = vpack.c.b16 %v1648, %v1646
        %v1703 = vpack.c.b16 %v1649, %v1647
        %v1704 = vpack.c.b16 %v1652, %v1650
        %v1705 = vpack.c.b16 %v1653, %v1651
        %v1706 = vpack.c.b16 %v1656, %v1654
        %v1707 = vpack.c.b16 %v1657, %v1655
        %v1708 = vpack.c.b16 %v1660, %v1658
        %v1709 = vpack.c.b16 %v1661, %v1659
        %v1710 = vpack.c.b16 %v1664, %v1662
        %v1711 = vpack.c.b16 %v1665, %v1663
        %v1712 = vpack.c.b16 %v1668, %v1666
        %v1713 = vpack.c.b16 %v1669, %v1667
        %v1714 = vpack.c.b16 %v1672, %v1670
        %v1715 = vpack.c.b16 %v1673, %v1671
        %v1716 = vpack.c.b16 %v1676, %v1674
        %v1717 = vpack.c.b16 %v1677, %v1675
        %v1718 = vpack.c.b16 %v1680, %v1678
        %v1719 = vpack.c.b16 %v1681, %v1679
        %v1720 = vpack.c.b16 %v1684, %v1682
        %v1721 = vpack.c.b16 %v1685, %v1683
        %v1722 = vpack.c.b16 %v1688, %v1686
        %v1723 = vpack.c.b16 %v1689, %v1687
        %v1724 = vpack.c.b16 %v1692, %v1690
        %v1725 = vpack.c.b16 %v1693, %v1691
        %1758 = vmatprep.subr.bf16.mxu0 %v1709
        %1759 = vmatpush1.bf16.msra.mxu0 %v1708
        %1760 = vmatprep.subr.bf16.mxu0 %v1707
        %1761 = vmatpush1.bf16.msra.mxu0 %v1706
        %1762 = vmatprep.subr.bf16.mxu0 %v1705
        %1763 = vmatpush1.bf16.msra.mxu0 %v1704
        %1764 = vmatprep.subr.bf16.mxu0 %v1703
        %1765 = vmatpush1.bf16.msra.mxu0 %v1702
        %1766 = vmatprep.subr.bf16.mxu0 %v1701
        %1767 = vmatpush1.bf16.msra.mxu0 %v1700
        %1768 = vmatprep.subr.bf16.mxu0 %v1699
        %1769 = vmatpush1.bf16.msra.mxu0 %v1698
        %1770 = vmatprep.subr.bf16.mxu0 %v1697
        %1771 = vmatpush1.bf16.msra.mxu0 %v1696
        %1772 = vmatprep.subr.bf16.mxu0 %v1695
        %1773 = vmatpush1.bf16.msra.mxu0 %v1694
        %1774 = vmatprep.subr.bf16.mxu0 %v1725
        %1775 = vmatpush2.bf16.msra.mxu0 %v1724
        %1776 = vmatprep.subr.bf16.mxu0 %v1723
        %1777 = vmatpush2.bf16.msra.mxu0 %v1722
        %1778 = vmatprep.subr.bf16.mxu0 %v1721
        %1779 = vmatpush2.bf16.msra.mxu0 %v1720
        %1780 = vmatprep.subr.bf16.mxu0 %v1719
        %1781 = vmatpush2.bf16.msra.mxu0 %v1718
        %1782 = vmatprep.subr.bf16.mxu0 %v1717
        %1783 = vmatpush2.bf16.msra.mxu0 %v1716
        %1784 = vmatprep.subr.bf16.mxu0 %v1715
        %1785 = vmatpush2.bf16.msra.mxu0 %v1714
        %1786 = vmatprep.subr.bf16.mxu0 %v1713
        %1787 = vmatpush2.bf16.msra.mxu0 %v1712
        %1788 = vmatprep.subr.bf16.mxu0 %v1711
        %1789 = vmatpush2.bf16.msra.mxu0 %v1710
        %1790 = vmatprep.mubr.bf16.mxu0 %v905
        %1791 = vmatmul.mubr.bf16.gmra.mxu0 %v904
        %v1792 = vpop.f32.mrf.mxu0
        %v1793 = vadd.f32 %v1591, %v1792
        %v1794 = vpop.f32.mrf.mxu0
        %v1795 = vadd.f32 %v1595, %v1794
        %v1796 = vpop.f32.mrf.mxu0
        %v1797 = vadd.f32 %v1591, %v1796
        %v1798 = vpop.f32.mrf.mxu0
        %v1799 = vadd.f32 %v1595, %v1798
        %1800 = vmatprep.mubr.bf16.mxu0 %v907
        %1801 = vmatmul.mubr.bf16.gmra.mxu0 %v906
        %v1802 = vpop.f32.mrf.mxu0
        %v1803 = vadd.f32 %v1591, %v1802
        %v1804 = vpop.f32.mrf.mxu0
        %v1805 = vadd.f32 %v1595, %v1804
        %v1806 = vpop.f32.mrf.mxu0
        %v1807 = vadd.f32 %v1591, %v1806
        %v1808 = vpop.f32.mrf.mxu0
        %v1809 = vadd.f32 %v1595, %v1808
        %1810 = vmatprep.mubr.bf16.mxu0 %v909
        %1811 = vmatmul.mubr.bf16.gmra.mxu0 %v908
        %v1812 = vpop.f32.mrf.mxu0
        %v1813 = vadd.f32 %v1591, %v1812
        %v1814 = vpop.f32.mrf.mxu0
        %v1815 = vadd.f32 %v1595, %v1814
        %v1816 = vpop.f32.mrf.mxu0
        %v1817 = vadd.f32 %v1591, %v1816
        %v1818 = vpop.f32.mrf.mxu0
        %v1819 = vadd.f32 %v1595, %v1818
        %1820 = vmatprep.mubr.bf16.mxu0 %v911
        %1821 = vmatmul.mubr.bf16.gmra.mxu0 %v910
        %v1822 = vpop.f32.mrf.mxu0
        %v1823 = vadd.f32 %v1591, %v1822
        %v1824 = vpop.f32.mrf.mxu0
        %v1825 = vadd.f32 %v1595, %v1824
        %v1826 = vpop.f32.mrf.mxu0
        %v1827 = vadd.f32 %v1591, %v1826
        %v1828 = vpop.f32.mrf.mxu0
        %v1829 = vadd.f32 %v1595, %v1828
        %1830 = vmatprep.mubr.bf16.mxu0 %v913
        %1831 = vmatmul.mubr.bf16.gmra.mxu0 %v912
        %v1832 = vpop.f32.mrf.mxu0
        %v1833 = vadd.f32 %v1591, %v1832
        %v1834 = vpop.f32.mrf.mxu0
        %v1835 = vadd.f32 %v1595, %v1834
        %v1836 = vpop.f32.mrf.mxu0
        %v1837 = vadd.f32 %v1591, %v1836
        %v1838 = vpop.f32.mrf.mxu0
        %v1839 = vadd.f32 %v1595, %v1838
        %1840 = vmatprep.mubr.bf16.mxu0 %v915
        %1841 = vmatmul.mubr.bf16.gmra.mxu0 %v914
        %v1842 = vpop.f32.mrf.mxu0
        %v1843 = vadd.f32 %v1591, %v1842
        %v1844 = vpop.f32.mrf.mxu0
        %v1845 = vadd.f32 %v1595, %v1844
        %v1846 = vpop.f32.mrf.mxu0
        %v1847 = vadd.f32 %v1591, %v1846
        %v1848 = vpop.f32.mrf.mxu0
        %v1849 = vadd.f32 %v1595, %v1848
        %1850 = vmatprep.mubr.bf16.mxu0 %v917
        %1851 = vmatmul.mubr.bf16.gmra.mxu0 %v916
        %v1852 = vpop.f32.mrf.mxu0
        %v1853 = vadd.f32 %v1591, %v1852
        %v1854 = vpop.f32.mrf.mxu0
        %v1855 = vadd.f32 %v1595, %v1854
        %v1856 = vpop.f32.mrf.mxu0
        %v1857 = vadd.f32 %v1591, %v1856
        %v1858 = vpop.f32.mrf.mxu0
        %v1859 = vadd.f32 %v1595, %v1858
        %1860 = vmatprep.mubr.bf16.mxu0 %v919
        %1861 = vmatmul.mubr.bf16.gmra.mxu0 %v918
        %v1862 = vpop.f32.mrf.mxu0
        %v1863 = vadd.f32 %v1591, %v1862
        %v1864 = vpop.f32.mrf.mxu0
        %v1865 = vadd.f32 %v1595, %v1864
        %v1866 = vpop.f32.mrf.mxu0
        %v1867 = vadd.f32 %v1591, %v1866
        %v1868 = vpop.f32.mrf.mxu0
        %v1869 = vadd.f32 %v1595, %v1868
        %1870 = vdwg.mxu0
        %v1871 = vmul.f32 %v1159, 0.088388346
        %v1872 = vmul.f32 %v1161, 0.088388346
        %v1873 = vmul.f32 %v1163, 0.088388346
        %v1874 = vmul.f32 %v1165, 0.088388346
        %v1875 = vmul.f32 %v1169, 0.088388346
        %v1876 = vmul.f32 %v1171, 0.088388346
        %v1877 = vmul.f32 %v1173, 0.088388346
        %v1878 = vmul.f32 %v1175, 0.088388346
        %v1879 = vmul.f32 %v1179, 0.088388346
        %v1880 = vmul.f32 %v1181, 0.088388346
        %v1881 = vmul.f32 %v1183, 0.088388346
        %v1882 = vmul.f32 %v1185, 0.088388346
        %v1883 = vmul.f32 %v1189, 0.088388346
        %v1884 = vmul.f32 %v1191, 0.088388346
        %v1885 = vmul.f32 %v1193, 0.088388346
        %v1886 = vmul.f32 %v1195, 0.088388346
        %v1887 = vmul.f32 %v1199, 0.088388346
        %v1888 = vmul.f32 %v1201, 0.088388346
        %v1889 = vmul.f32 %v1203, 0.088388346
        %v1890 = vmul.f32 %v1205, 0.088388346
        %v1891 = vmul.f32 %v1209, 0.088388346
        %v1892 = vmul.f32 %v1211, 0.088388346
        %v1893 = vmul.f32 %v1213, 0.088388346
        %v1894 = vmul.f32 %v1215, 0.088388346
        %v1895 = vmul.f32 %v1219, 0.088388346
        %v1896 = vmul.f32 %v1221, 0.088388346
        %v1897 = vmul.f32 %v1223, 0.088388346
        %v1898 = vmul.f32 %v1225, 0.088388346
        %v1899 = vmul.f32 %v1229, 0.088388346
        %v1900 = vmul.f32 %v1231, 0.088388346
        %v1901 = vmul.f32 %v1233, 0.088388346
        %v1902 = vmul.f32 %v1235, 0.088388346
        %v1903 = vpack.c.bf16 %v1873, %v1871
        %v1904 = vpack.c.bf16 %v1874, %v1872
        %v1905 = vpack.c.bf16 %v1877, %v1875
        %v1906 = vpack.c.bf16 %v1878, %v1876
        %v1907 = vpack.c.bf16 %v1881, %v1879
        %v1908 = vpack.c.bf16 %v1882, %v1880
        %v1909 = vpack.c.bf16 %v1885, %v1883
        %v1910 = vpack.c.bf16 %v1886, %v1884
        %v1911 = vpack.c.bf16 %v1889, %v1887
        %v1912 = vpack.c.bf16 %v1890, %v1888
        %v1913 = vpack.c.bf16 %v1893, %v1891
        %v1914 = vpack.c.bf16 %v1894, %v1892
        %v1915 = vpack.c.bf16 %v1897, %v1895
        %v1916 = vpack.c.bf16 %v1898, %v1896
        %v1917 = vpack.c.bf16 %v1901, %v1899
        %v1918 = vpack.c.bf16 %v1902, %v1900
        %v1935 = vunpack.c.l.b16 %v1903
        %v1936 = vunpack.c.l.b16 %v1904
        %v1937 = vunpack.c.h.b16 %v1903
        %v1938 = vunpack.c.h.b16 %v1904
        %v1939 = vunpack.c.l.b16 %v1905
        %v1940 = vunpack.c.l.b16 %v1906
        %v1941 = vunpack.c.h.b16 %v1905
        %v1942 = vunpack.c.h.b16 %v1906
        %v1943 = vunpack.c.l.b16 %v1907
        %v1944 = vunpack.c.l.b16 %v1908
        %v1945 = vunpack.c.h.b16 %v1907
        %v1946 = vunpack.c.h.b16 %v1908
        %v1947 = vunpack.c.l.b16 %v1909
        %v1948 = vunpack.c.l.b16 %v1910
        %v1949 = vunpack.c.h.b16 %v1909
        %v1950 = vunpack.c.h.b16 %v1910
        %v1951 = vunpack.c.l.b16 %v1911
        %v1952 = vunpack.c.l.b16 %v1912
        %v1953 = vunpack.c.h.b16 %v1911
        %v1954 = vunpack.c.h.b16 %v1912
        %v1955 = vunpack.c.l.b16 %v1913
        %v1956 = vunpack.c.l.b16 %v1914
        %v1957 = vunpack.c.h.b16 %v1913
        %v1958 = vunpack.c.h.b16 %v1914
        %v1959 = vunpack.c.l.b16 %v1915
        %v1960 = vunpack.c.l.b16 %v1916
        %v1961 = vunpack.c.h.b16 %v1915
        %v1962 = vunpack.c.h.b16 %v1916
        %v1963 = vunpack.c.l.b16 %v1917
        %v1964 = vunpack.c.l.b16 %v1918
        %v1965 = vunpack.c.h.b16 %v1917
        %v1966 = vunpack.c.h.b16 %v1918
        %v1967 = vpack.c.b16 %v1936, %v1935
        %v1968 = vpack.c.b16 %v1938, %v1937
        %v1969 = vpack.c.b16 %v1940, %v1939
        %v1970 = vpack.c.b16 %v1942, %v1941
        %v1971 = vpack.c.b16 %v1944, %v1943
        %v1972 = vpack.c.b16 %v1946, %v1945
        %v1973 = vpack.c.b16 %v1948, %v1947
        %v1974 = vpack.c.b16 %v1950, %v1949
        %v1975 = vpack.c.b16 %v1952, %v1951
        %v1976 = vpack.c.b16 %v1954, %v1953
        %v1977 = vpack.c.b16 %v1956, %v1955
        %v1978 = vpack.c.b16 %v1958, %v1957
        %v1979 = vpack.c.b16 %v1960, %v1959
        %v1980 = vpack.c.b16 %v1962, %v1961
        %v1981 = vpack.c.b16 %v1964, %v1963
        %v1982 = vpack.c.b16 %v1966, %v1965
        %1999 = vst [vmem:[%s421] sm:$0xff] %v1967
        %2000 = vst [vmem:[%s421 + $0x8] sm:$0xff] %v1968
        %2001 = vst [vmem:[%s421 + $0x10] sm:$0xff] %v1969
        %2002 = vst [vmem:[%s421 + $0x18] sm:$0xff] %v1970
        %2003 = vst [vmem:[%s421 + $0x20] sm:$0xff] %v1971
        %2004 = vst [vmem:[%s421 + $0x28] sm:$0xff] %v1972
        %2005 = vst [vmem:[%s421 + $0x30] sm:$0xff] %v1973
        %2006 = vst [vmem:[%s421 + $0x38] sm:$0xff] %v1974
        %2007 = vst [vmem:[%s421 + $0x40] sm:$0xff] %v1975
        %2008 = vst [vmem:[%s421 + $0x48] sm:$0xff] %v1976
        %2009 = vst [vmem:[%s421 + $0x50] sm:$0xff] %v1977
        %2010 = vst [vmem:[%s421 + $0x58] sm:$0xff] %v1978
        %2011 = vst [vmem:[%s421 + $0x60] sm:$0xff] %v1979
        %2012 = vst [vmem:[%s421 + $0x68] sm:$0xff] %v1980
        %2013 = vst [vmem:[%s421 + $0x70] sm:$0xff] %v1981
        %2014 = vst [vmem:[%s421 + $0x78] sm:$0xff] %v1982
        %v2015 = vpack.c.bf16 %v1480, %v1476
        %v2016 = vpack.c.bf16 %v1482, %v1478
        %v2017 = vpack.c.bf16 %v1490, %v1486
        %v2018 = vpack.c.bf16 %v1492, %v1488
        %v2019 = vpack.c.bf16 %v1500, %v1496
        %v2020 = vpack.c.bf16 %v1502, %v1498
        %v2021 = vpack.c.bf16 %v1510, %v1506
        %v2022 = vpack.c.bf16 %v1512, %v1508
        %v2023 = vpack.c.bf16 %v1520, %v1516
        %v2024 = vpack.c.bf16 %v1522, %v1518
        %v2025 = vpack.c.bf16 %v1530, %v1526
        %v2026 = vpack.c.bf16 %v1532, %v1528
        %v2027 = vpack.c.bf16 %v1540, %v1536
        %v2028 = vpack.c.bf16 %v1542, %v1538
        %v2029 = vpack.c.bf16 %v1550, %v1546
        %v2030 = vpack.c.bf16 %v1552, %v1548
        %v2047 = vunpack.c.l.b16 %v2015
        %v2048 = vunpack.c.l.b16 %v2016
        %v2049 = vunpack.c.h.b16 %v2015
        %v2050 = vunpack.c.h.b16 %v2016
        %v2051 = vunpack.c.l.b16 %v2017
        %v2052 = vunpack.c.l.b16 %v2018
        %v2053 = vunpack.c.h.b16 %v2017
        %v2054 = vunpack.c.h.b16 %v2018
        %v2055 = vunpack.c.l.b16 %v2019
        %v2056 = vunpack.c.l.b16 %v2020
        %v2057 = vunpack.c.h.b16 %v2019
        %v2058 = vunpack.c.h.b16 %v2020
        %v2059 = vunpack.c.l.b16 %v2021
        %v2060 = vunpack.c.l.b16 %v2022
        %v2061 = vunpack.c.h.b16 %v2021
        %v2062 = vunpack.c.h.b16 %v2022
        %v2063 = vunpack.c.l.b16 %v2023
        %v2064 = vunpack.c.l.b16 %v2024
        %v2065 = vunpack.c.h.b16 %v2023
        %v2066 = vunpack.c.h.b16 %v2024
        %v2067 = vunpack.c.l.b16 %v2025
        %v2068 = vunpack.c.l.b16 %v2026
        %v2069 = vunpack.c.h.b16 %v2025
        %v2070 = vunpack.c.h.b16 %v2026
        %v2071 = vunpack.c.l.b16 %v2027
        %v2072 = vunpack.c.l.b16 %v2028
        %v2073 = vunpack.c.h.b16 %v2027
        %v2074 = vunpack.c.h.b16 %v2028
        %v2075 = vunpack.c.l.b16 %v2029
        %v2076 = vunpack.c.l.b16 %v2030
        %v2077 = vunpack.c.h.b16 %v2029
        %v2078 = vunpack.c.h.b16 %v2030
        %v2079 = vpack.c.b16 %v2048, %v2047
        %v2080 = vpack.c.b16 %v2050, %v2049
        %v2081 = vpack.c.b16 %v2052, %v2051
        %v2082 = vpack.c.b16 %v2054, %v2053
        %v2083 = vpack.c.b16 %v2056, %v2055
        %v2084 = vpack.c.b16 %v2058, %v2057
        %v2085 = vpack.c.b16 %v2060, %v2059
        %v2086 = vpack.c.b16 %v2062, %v2061
        %v2087 = vpack.c.b16 %v2064, %v2063
        %v2088 = vpack.c.b16 %v2066, %v2065
        %v2089 = vpack.c.b16 %v2068, %v2067
        %v2090 = vpack.c.b16 %v2070, %v2069
        %v2091 = vpack.c.b16 %v2072, %v2071
        %v2092 = vpack.c.b16 %v2074, %v2073
        %v2093 = vpack.c.b16 %v2076, %v2075
        %v2094 = vpack.c.b16 %v2078, %v2077
        %2111 = vst [vmem:[%s428] sm:$0xff] %v2079
        %2112 = vst [vmem:[%s428 + $0x8] sm:$0xff] %v2080
        %2113 = vst [vmem:[%s428 + $0x10] sm:$0xff] %v2081
        %2114 = vst [vmem:[%s428 + $0x18] sm:$0xff] %v2082
        %2115 = vst [vmem:[%s428 + $0x20] sm:$0xff] %v2083
        %2116 = vst [vmem:[%s428 + $0x28] sm:$0xff] %v2084
        %2117 = vst [vmem:[%s428 + $0x30] sm:$0xff] %v2085
        %2118 = vst [vmem:[%s428 + $0x38] sm:$0xff] %v2086
        %2119 = vst [vmem:[%s428 + $0x40] sm:$0xff] %v2087
        %2120 = vst [vmem:[%s428 + $0x48] sm:$0xff] %v2088
        %2121 = vst [vmem:[%s428 + $0x50] sm:$0xff] %v2089
        %2122 = vst [vmem:[%s428 + $0x58] sm:$0xff] %v2090
        %2123 = vst [vmem:[%s428 + $0x60] sm:$0xff] %v2091
        %2124 = vst [vmem:[%s428 + $0x68] sm:$0xff] %v2092
        %2125 = vst [vmem:[%s428 + $0x70] sm:$0xff] %v2093
        %2126 = vst [vmem:[%s428 + $0x78] sm:$0xff] %v2094
        %v2127 = vpack.c.bf16 %v1797, %v1793
        %v2128 = vpack.c.bf16 %v1799, %v1795
        %v2129 = vpack.c.bf16 %v1807, %v1803
        %v2130 = vpack.c.bf16 %v1809, %v1805
        %v2131 = vpack.c.bf16 %v1817, %v1813
        %v2132 = vpack.c.bf16 %v1819, %v1815
        %v2133 = vpack.c.bf16 %v1827, %v1823
        %v2134 = vpack.c.bf16 %v1829, %v1825
        %v2135 = vpack.c.bf16 %v1837, %v1833
        %v2136 = vpack.c.bf16 %v1839, %v1835
        %v2137 = vpack.c.bf16 %v1847, %v1843
        %v2138 = vpack.c.bf16 %v1849, %v1845
        %v2139 = vpack.c.bf16 %v1857, %v1853
        %v2140 = vpack.c.bf16 %v1859, %v1855
        %v2141 = vpack.c.bf16 %v1867, %v1863
        %v2142 = vpack.c.bf16 %v1869, %v1865
        %v2159 = vunpack.c.l.b16 %v2127
        %v2160 = vunpack.c.l.b16 %v2128
        %v2161 = vunpack.c.h.b16 %v2127
        %v2162 = vunpack.c.h.b16 %v2128
        %v2163 = vunpack.c.l.b16 %v2129
        %v2164 = vunpack.c.l.b16 %v2130
        %v2165 = vunpack.c.h.b16 %v2129
        %v2166 = vunpack.c.h.b16 %v2130
        %v2167 = vunpack.c.l.b16 %v2131
        %v2168 = vunpack.c.l.b16 %v2132
        %v2169 = vunpack.c.h.b16 %v2131
        %v2170 = vunpack.c.h.b16 %v2132
        %v2171 = vunpack.c.l.b16 %v2133
        %v2172 = vunpack.c.l.b16 %v2134
        %v2173 = vunpack.c.h.b16 %v2133
        %v2174 = vunpack.c.h.b16 %v2134
        %v2175 = vunpack.c.l.b16 %v2135
        %v2176 = vunpack.c.l.b16 %v2136
        %v2177 = vunpack.c.h.b16 %v2135
        %v2178 = vunpack.c.h.b16 %v2136
        %v2179 = vunpack.c.l.b16 %v2137
        %v2180 = vunpack.c.l.b16 %v2138
        %v2181 = vunpack.c.h.b16 %v2137
        %v2182 = vunpack.c.h.b16 %v2138
        %v2183 = vunpack.c.l.b16 %v2139
        %v2184 = vunpack.c.l.b16 %v2140
        %v2185 = vunpack.c.h.b16 %v2139
        %v2186 = vunpack.c.h.b16 %v2140
        %v2187 = vunpack.c.l.b16 %v2141
        %v2188 = vunpack.c.l.b16 %v2142
        %v2189 = vunpack.c.h.b16 %v2141
        %v2190 = vunpack.c.h.b16 %v2142
        %v2191 = vpack.c.b16 %v2160, %v2159
        %v2192 = vpack.c.b16 %v2162, %v2161
        %v2193 = vpack.c.b16 %v2164, %v2163
        %v2194 = vpack.c.b16 %v2166, %v2165
        %v2195 = vpack.c.b16 %v2168, %v2167
        %v2196 = vpack.c.b16 %v2170, %v2169
        %v2197 = vpack.c.b16 %v2172, %v2171
        %v2198 = vpack.c.b16 %v2174, %v2173
        %v2199 = vpack.c.b16 %v2176, %v2175
        %v2200 = vpack.c.b16 %v2178, %v2177
        %v2201 = vpack.c.b16 %v2180, %v2179
        %v2202 = vpack.c.b16 %v2182, %v2181
        %v2203 = vpack.c.b16 %v2184, %v2183
        %v2204 = vpack.c.b16 %v2186, %v2185
        %v2205 = vpack.c.b16 %v2188, %v2187
        %v2206 = vpack.c.b16 %v2190, %v2189
        %2223 = vst [vmem:[%s435] sm:$0xff] %v2191
        %2224 = vst [vmem:[%s435 + $0x8] sm:$0xff] %v2192
        %2225 = vst [vmem:[%s435 + $0x10] sm:$0xff] %v2193
        %2226 = vst [vmem:[%s435 + $0x18] sm:$0xff] %v2194
        %2227 = vst [vmem:[%s435 + $0x20] sm:$0xff] %v2195
        %2228 = vst [vmem:[%s435 + $0x28] sm:$0xff] %v2196
        %2229 = vst [vmem:[%s435 + $0x30] sm:$0xff] %v2197
        %2230 = vst [vmem:[%s435 + $0x38] sm:$0xff] %v2198
        %2231 = vst [vmem:[%s435 + $0x40] sm:$0xff] %v2199
        %2232 = vst [vmem:[%s435 + $0x48] sm:$0xff] %v2200
        %2233 = vst [vmem:[%s435 + $0x50] sm:$0xff] %v2201
        %2234 = vst [vmem:[%s435 + $0x58] sm:$0xff] %v2202
        %2235 = vst [vmem:[%s435 + $0x60] sm:$0xff] %v2203
        %2236 = vst [vmem:[%s435 + $0x68] sm:$0xff] %v2204
        %2237 = vst [vmem:[%s435 + $0x70] sm:$0xff] %v2205
        %2238 = vst [vmem:[%s435 + $0x78] sm:$0xff] %v2206
        %s2239 = sand.u32 %s208, 1
        %s2240 = scalar_lea.sflag [#allocation4], %s2239
        %s2241 = sand.u32 %s208, 1
        %s2242 = smul.addr %s2241, 128
        %s2243 = scalar_lea.vmem [#allocation10], %s2242
        %s2244 = sand.u32 %s32, 1
        %s2245 = scalar_lea.sflag [#allocation12], %s2244
        %s2246 = sand.u32 %s236, 1
        %s2247 = smul.addr %s2246, 128
        %s2248 = scalar_lea.vmem [#allocation11], %s2247
        %s2249 = sand.u32 %s32, 1
        %s2250 = scalar_lea.sflag [#allocation12], %s2249
        %s2251 = sand.u32 %s264, 1
        %s2252 = smul.addr %s2251, 128
        %s2253 = scalar_lea.vmem [#allocation13], %s2252
        // Predicated region
        $region65: #{tpu_custom_call.1} parent=47 // pred_check
          %p2254 = pneg %p218
        $region66: #{tpu_custom_call.1} parent=47 // pred_check_branch
          %2256 = sbr.rel (%p2254) target = $region68
        $region67: #{tpu_custom_call.1} parent=47 // pred_region
          %s2257 = smul.u32 16, %s37
          %s2259 = ssub.s32 2048, 2048
          %2260 = vsyncadd %s2240, %s2259
          %s2261 = smul.addr %s2257, 2
          %s2262 = smul.addr %s36, 64
          %s2263 = sadd.s32 %s2261, %s2262
          %s2264 = smul.addr %s2263, 64
          %s2265 = scalar_lea.hbm %s7, %s2264
          %s2266 = sshll.u32 %s2243, 4
          %s2267 = int_to_ptr.vmem [resolvable:$true] %s2266
          %2272 = dma.vmem_to_hbm [thread:$0]  %s2267, 2048, %s2265, %s2240, 128, 128, 8
        $region68: #{tpu_custom_call.1} parent=47 // pred_fallthru
          _
        // Predicated region
        $region69: #{tpu_custom_call.1} parent=47 // pred_check
          %p2273 = pneg %p246
        $region70: #{tpu_custom_call.1} parent=47 // pred_check_branch
          %2275 = sbr.rel (%p2273) target = $region72
        $region71: #{tpu_custom_call.1} parent=47 // pred_region
          %s2276 = smul.u32 16, %s37
          %s2278 = ssub.s32 2048, 2048
          %2279 = vsyncadd %s2245, %s2278
          %s2280 = smul.addr %s2276, 2
          %s2281 = smul.addr %s36, 64
          %s2282 = sadd.s32 %s2280, %s2281
          %s2283 = smul.addr %s2282, 64
          %s2284 = scalar_lea.hbm %s8, %s2283
          %s2285 = sshll.u32 %s2248, 4
          %s2286 = int_to_ptr.vmem [resolvable:$true] %s2285
          %2291 = dma.vmem_to_hbm [thread:$0]  %s2286, 2048, %s2284, %s2245, 128, 128, 8
        $region72: #{tpu_custom_call.1} parent=47 // pred_fallthru
          _
        // Predicated region
        $region73: #{tpu_custom_call.1} parent=47 // pred_check
          %p2292 = pneg %p274
        $region74: #{tpu_custom_call.1} parent=47 // pred_check_branch
          %2294 = sbr.rel (%p2292) target = $region76
        $region75: #{tpu_custom_call.1} parent=47 // pred_region
          %s2295 = smul.u32 16, %s37
          %s2297 = ssub.s32 2048, 2048
          %2298 = vsyncadd %s2250, %s2297
          %s2299 = smul.addr %s2295, 2
          %s2300 = smul.addr %s36, 64
          %s2301 = sadd.s32 %s2299, %s2300
          %s2302 = smul.addr %s2301, 64
          %s2303 = scalar_lea.hbm %s9, %s2302
          %s2304 = sshll.u32 %s2253, 4
          %s2305 = int_to_ptr.vmem [resolvable:$true] %s2304
          %2310 = dma.vmem_to_hbm [thread:$0]  %s2305, 2048, %s2303, %s2250, 128, 128, 8
        $region76: #{tpu_custom_call.1} parent=47 // pred_fallthru
          _
      $region48: #{tpu_custom_call.1} parent=5 // pred_fallthru
        _
      %p2311 = scmp.le.s32.totalorder 2, %s27
      // Predicated region
      $region77: #{tpu_custom_call.1} parent=5 // pred_check
        %p2312 = pneg %p2311
      $region78: #{tpu_custom_call.1} parent=5 // pred_check_branch
        %2314 = sbr.rel (%p2312) target = $region80
      $region79: #{tpu_custom_call.1} parent=5 // pred_region
        %s2315 = ssub.s32 %s27, 2
        // Predicated region
        $region81: #{tpu_custom_call.1} parent=79 // pred_check
          %p2316 = pneg %p224
        $region82: #{tpu_custom_call.1} parent=79 // pred_check_branch
          %2318 = sbr.rel (%p2316) target = $region84
        $region83: #{tpu_custom_call.1} parent=79 // pred_region
          %s2319 = sand.u32 %s209, 1
          %s2320 = scalar_lea.sflag [#allocation4], %s2319
          %s2321 = sand.u32 %s209, 1
          %s2322 = smul.addr %s2321, 128
          %s2323 = scalar_lea.vmem [#allocation10], %s2322
          %2324 = dma.done %s2320, 2048
        $region84: #{tpu_custom_call.1} parent=79 // pred_fallthru
          _
        // Predicated region
        $region85: #{tpu_custom_call.1} parent=79 // pred_check
          %p2325 = pneg %p252
        $region86: #{tpu_custom_call.1} parent=79 // pred_check_branch
          %2327 = sbr.rel (%p2325) target = $region88
        $region87: #{tpu_custom_call.1} parent=79 // pred_region
          %s2328 = sand.u32 %s33, 1
          %s2329 = scalar_lea.sflag [#allocation12], %s2328
          %s2330 = sand.u32 %s237, 1
          %s2331 = smul.addr %s2330, 128
          %s2332 = scalar_lea.vmem [#allocation11], %s2331
          %2333 = dma.done %s2329, 2048
        $region88: #{tpu_custom_call.1} parent=79 // pred_fallthru
          _
        // Predicated region
        $region89: #{tpu_custom_call.1} parent=79 // pred_check
          %p2334 = pneg %p280
        $region90: #{tpu_custom_call.1} parent=79 // pred_check_branch
          %2336 = sbr.rel (%p2334) target = $region92
        $region91: #{tpu_custom_call.1} parent=79 // pred_region
          %s2337 = sand.u32 %s33, 1
          %s2338 = scalar_lea.sflag [#allocation12], %s2337
          %s2339 = sand.u32 %s265, 1
          %s2340 = smul.addr %s2339, 128
          %s2341 = scalar_lea.vmem [#allocation13], %s2340
          %2342 = dma.done %s2338, 2048
        $region92: #{tpu_custom_call.1} parent=79 // pred_fallthru
          _
      $region80: #{tpu_custom_call.1} parent=5 // pred_fallthru
        _
    $region6: #{tpu_custom_call.1} parent=1 // loop_footer
      %s31 = sadd.s32 1, %s27
    $region7: #{tpu_custom_call.1} parent=1 // loop_footer_branch
      %26 = sbr.rel target = $region3
    $region8: #{tpu_custom_call.1} parent=1 // loop_exit
      _
    %2343 = vsyncpa [#allocation3], 1
    %s2344 = scalar_lea.sflag [#allocation3], 1
    %2345 = vsyncpa %s2344, 1
    %2346 = vsyncpa [#allocation6], 1
    %2347 = vsyncpa [#allocation9], 1
    %2348 = vsyncpa [#allocation4], 1
    %s2349 = scalar_lea.sflag [#allocation4], 1
    %2350 = vsyncpa %s2349, 1
    %2351 = vsyncpa [#allocation12], 1
    %s2352 = scalar_lea.sflag [#allocation12], 1
    %2353 = vsyncpa %s2352, 1

</llo_original>
